<compile_context>
chip_gen: v5e
topology: v5e:2x2
jax: 0.10.0
libtpu: 0.0.40
codegen_flags: <defaults>
</compile_context>

<pallas_src>
import functools

import jax
import jax.numpy as jnp
import numpy as np
from jax import lax
from jax.experimental import pallas as pl
from jax.experimental.pallas import tpu as pltpu

INPUT_DIM = 371
D_PAD = 384              # feature dim padded to 3*128 lanes
HIDDEN = 180
LATENT = 90
HP = 256                 # lane-padded hidden size (multiple of 128)
G = 4 * HP               # padded gate width (i, f, g, o) = 1024


def _sigmoid(x):
    # sigmoid via tanh -> a single EUP op per gate (EUP slot has slack)
    return 0.5 * (jnp.tanh(0.5 * x) + 1.0)


def _softplus(x):
    # numerically-stable softplus using only exp/log/abs/max (no log1p)
    return jnp.maximum(x, 0.0) + jnp.log(1.0 + jnp.exp(-jnp.abs(x)))


# ------------------------- fused encoder kernel ------------------------------
def encoder_kernel(x_ref, wih_ref, bias_ref, whh_ref, wout_ref, bout_ref,
                   out_ref, xg_scr, h_scr, c_scr, *, seq_len, t_block, b_pad):
    blk = pl.program_id(0)

    @pl.when(blk == 0)
    def _():
        h_scr[...] = jnp.zeros_like(h_scr)
        c_scr[...] = jnp.zeros_like(c_scr)

    # Batched input projection for this whole block of timesteps: the W_ih
    # weights are pushed through the MXU once per block, not once per step,
    # and the result never leaves VMEM.
    xg_scr[...] = (
        jnp.dot(x_ref[...], wih_ref[...], preferred_element_type=jnp.float32)
        + bias_ref[...]
    )

    whh = whh_ref[...]          # (HP, G) bf16, resident across the inner loop
    h0 = h_scr[...]             # (B_pad, HP) f32
    c0 = c_scr[...]
    mask_needed = (seq_len % t_block) != 0     # static (trace-time) flag

    def step(i, carry):
        h, c = carry
        row = pl.multiple_of(i * b_pad, 8)     # aligned sublane offset
        xg = xg_scr[pl.ds(row, b_pad), :]      # (B_pad, G) f32, precomputed
        gates = xg + jnp.dot(h.astype(jnp.bfloat16), whh,
                             preferred_element_type=jnp.float32)
        # lane-aligned gate slices (offsets 0/256/512/768), PyTorch order i,f,g,o
        i_g = _sigmoid(gates[:, 0 * HP:1 * HP])
        f_g = _sigmoid(gates[:, 1 * HP:2 * HP])
        g_g = jnp.tanh(gates[:, 2 * HP:3 * HP])
        o_g = _sigmoid(gates[:, 3 * HP:4 * HP])
        c_new = f_g * c + i_g * g_g
        h_new = o_g * jnp.tanh(c_new)
        if mask_needed:
            # only possible in the last (ragged) block; skipped entirely at
            # trace time when S is a multiple of t_block
            valid = (blk * t_block + i) < seq_len
            h_new = jnp.where(valid, h_new, h)
            c_new = jnp.where(valid, c_new, c)
        return h_new, c_new

    h, c = lax.fori_loop(0, t_block, step, (h0, c0),
                         unroll=min(8, t_block))
    h_scr[...] = h
    c_scr[...] = c

    @pl.when(blk == pl.num_programs(0) - 1)
    def _():
        sp = _softplus(h)
        # fused (mu | logcovar) head; padded h columns hit zero weight rows
        out_ref[...] = (
            jnp.dot(sp.astype(jnp.bfloat16), wout_ref[...],
                    preferred_element_type=jnp.float32)
            + bout_ref[...]
        )


# ------------------------------- wrapper -------------------------------------
@jax.jit
def encoder_forward(x, wih_pad, bias_pad, whh_pad, wout_pad, bout):
    """x: (B, S, 371) batch-first, like the PyTorch module.  Returns (mu, logcovar)."""
    B, S, D = x.shape
    b_pad = ((B + 7) // 8) * 8                 # sublane-aligned batch
    t_block = min(128, S)                      # timesteps per grid step
    nb = int(pl.cdiv(S, t_block))
    s_pad = nb * t_block

    # (B,S,D) -> (S,B,D), zero-pad time / batch / features (all provably inert)
    x_sbd = jnp.transpose(x, (1, 0, 2))
    x_sbd = jnp.pad(x_sbd, ((0, s_pad - S), (0, b_pad - B), (0, D_PAD - D)))
    x_flat = x_sbd.reshape(s_pad * b_pad, D_PAD).astype(jnp.bfloat16)

    rows = t_block * b_pad
    kernel = functools.partial(encoder_kernel,
                               seq_len=S, t_block=t_block, b_pad=b_pad)

    out = pl.pallas_call(
        kernel,
        out_shape=jax.ShapeDtypeStruct((b_pad, 2 * LATENT), jnp.float32),
        grid_spec=pltpu.PrefetchScalarGridSpec(
            num_scalar_prefetch=0,
            grid=(nb,),
            in_specs=[
                pl.BlockSpec((rows, D_PAD), lambda t: (t, 0)),       # x rows (bf16)
                pl.BlockSpec((D_PAD, G), lambda t: (0, 0)),          # W_ih^T (padded, bf16)
                pl.BlockSpec((1, G), lambda t: (0, 0)),              # b_ih + b_hh (f32)
                pl.BlockSpec((HP, G), lambda t: (0, 0)),             # W_hh^T (padded, bf16)
                pl.BlockSpec((HP, 2 * LATENT), lambda t: (0, 0)),    # [W_mu^T | W_lc^T]
                pl.BlockSpec((1, 2 * LATENT), lambda t: (0, 0)),     # [b_mu | b_lc]
            ],
            out_specs=pl.BlockSpec((b_pad, 2 * LATENT), lambda t: (0, 0)),
            scratch_shapes=[
                pltpu.VMEM((rows, G), jnp.float32),      # per-block gates (never hits HBM)
                pltpu.VMEM((b_pad, HP), jnp.float32),    # h state
                pltpu.VMEM((b_pad, HP), jnp.float32),    # c state
            ],
        ),
        compiler_params=pltpu.CompilerParams(
            dimension_semantics=("arbitrary",),          # inherently sequential
            vmem_limit_bytes=32 * 1024 * 1024,           # explicit: v5e default is 16 MiB
        ),
    )(x_flat, wih_pad, bias_pad, whh_pad, wout_pad, bout)

    return out[:B, :LATENT], out[:B, LATENT:]


# ----------------------- parameter construction ------------------------------
def init_params(key):
    """Raw f32 parameters mimicking PyTorch's uniform(-1/sqrt(H), 1/sqrt(H))."""
    ks = jax.random.split(key, 8)
    k = 1.0 / np.sqrt(HIDDEN)
    wih = jax.random.uniform(ks[0], (4 * HIDDEN, INPUT_DIM), jnp.float32, -k, k)
    whh = jax.random.uniform(ks[1], (4 * HIDDEN, HIDDEN), jnp.float32, -k, k)
    bih = jax.random.uniform(ks[2], (4 * HIDDEN,), jnp.float32, -k, k)
    bhh = jax.random.uniform(ks[3], (4 * HIDDEN,), jnp.float32, -k, k)
    wmu = jax.random.uniform(ks[4], (LATENT, HIDDEN), jnp.float32, -k, k)
    bmu = jax.random.uniform(ks[5], (LATENT,), jnp.float32, -k, k)
    wlc = jax.random.uniform(ks[6], (LATENT, HIDDEN), jnp.float32, -k, k)
    blc = jax.random.uniform(ks[7], (LATENT,), jnp.float32, -k, k)
    return wih, whh, bih, bhh, wmu, bmu, wlc, blc


def pack_params(wih, whh, bih, bhh, wmu, bmu, wlc, blc):
    """Transpose, pad feature dim to 384, pad each gate to 256 lanes, fuse heads."""
    def pad_gate_cols(w_t):  # (rows, 4*HIDDEN) -> (rows, 4*HP), gate k at [k*HP, k*HP+HIDDEN)
        rows = w_t.shape[0]
        out = jnp.zeros((rows, G), w_t.dtype)
        for g in range(4):
            out = out.at[:, g * HP:g * HP + HIDDEN].set(
                w_t[:, g * HIDDEN:(g + 1) * HIDDEN])
        return out

    wih_rows = jnp.zeros((D_PAD, 4 * HIDDEN), jnp.float32).at[:INPUT_DIM].set(wih.T)
    wih_pad = pad_gate_cols(wih_rows).astype(jnp.bfloat16)             # (384, 1024)
    bias_pad = pad_gate_cols((bih + bhh).reshape(1, 4 * HIDDEN))       # (1, 1024) f32
    whh_rows = jnp.zeros((HP, 4 * HIDDEN), jnp.float32).at[:HIDDEN].set(whh.T)
    whh_pad = pad_gate_cols(whh_rows).astype(jnp.bfloat16)             # (256, 1024)

    wout = jnp.concatenate([wmu.T, wlc.T], axis=1)                     # (180, 180)
    wout_pad = (jnp.zeros((HP, 2 * LATENT), jnp.float32)
                .at[:HIDDEN].set(wout).astype(jnp.bfloat16))           # (256, 180)
    bout = jnp.concatenate([bmu, blc]).reshape(1, 2 * LATENT)          # (1, 180) f32
    return wih_pad, bias_pad, whh_pad, wout_pad, bout


# ------------------------------ references -----------------------------------
def matched_reference(x, wih_pad, bias_pad, whh_pad, wout_pad, bout):
    """Pure-JAX replica of the kernel arithmetic (same bf16 casts) - tight check."""
    B, S, D = x.shape
    x_sbd = jnp.transpose(x, (1, 0, 2))
    x_sbd = jnp.pad(x_sbd, ((0, 0), (0, 0), (0, D_PAD - D))).astype(jnp.bfloat16)
    xg = jnp.einsum("sbd,dg->sbg", x_sbd, wih_pad,
                    preferred_element_type=jnp.float32) + bias_pad

    def step(carry, xg_t):
        h, c = carry
        gates = xg_t + jnp.dot(h.astype(jnp.bfloat16), whh_pad,
                               preferred_element_type=jnp.float32)
        i_g = 0.5 * (jnp.tanh(0.5 * gates[:, 0 * HP:1 * HP]) + 1.0)
        f_g = 0.5 * (jnp.tanh(0.5 * gates[:, 1 * HP:2 * HP]) + 1.0)
        g_g = jnp.tanh(gates[:, 2 * HP:3 * HP])
        o_g = 0.5 * (jnp.tanh(0.5 * gates[:, 3 * HP:4 * HP]) + 1.0)
        c_new = f_g * c + i_g * g_g
        h_new = o_g * jnp.tanh(c_new)
        return (h_new, c_new), None

    init = (jnp.zeros((B, HP), jnp.float32), jnp.zeros((B, HP), jnp.float32))
    (h, _), _ = lax.scan(step, init, xg)
    sp = jnp.maximum(h, 0.0) + jnp.log(1.0 + jnp.exp(-jnp.abs(h)))
    out = jnp.dot(sp.astype(jnp.bfloat16), wout_pad,
                  preferred_element_type=jnp.float32) + bout
    return out[:, :LATENT], out[:, LATENT:]


def reference_f32(x, wih, whh, bih, bhh, wmu, bmu, wlc, blc):
    """Full-f32 reference of the original PyTorch forward (semantic check)."""
    B, S, D = x.shape
    bias = bih + bhh

    def step(carry, x_t):
        h, c = carry
        gates = x_t @ wih.T + h @ whh.T + bias
        H = HIDDEN
        i_g = jax.nn.sigmoid(gates[:, 0 * H:1 * H])
        f_g = jax.nn.sigmoid(gates[:, 1 * H:2 * H])
        g_g = jnp.tanh(gates[:, 2 * H:3 * H])
        o_g = jax.nn.sigmoid(gates[:, 3 * H:4 * H])
        c_new = f_g * c + i_g * g_g
        h_new = o_g * jnp.tanh(c_new)
        return (h_new, c_new), None

    init = (jnp.zeros((B, HIDDEN), jnp.float32), jnp.zeros((B, HIDDEN), jnp.float32))
    (h, _), _ = lax.scan(step, init, jnp.transpose(x, (1, 0, 2)))
    sp = jax.nn.softplus(h)
    return sp @ wmu.T + bmu, sp @ wlc.T + blc


if __name__ == "__main__":
    key = jax.random.PRNGKey(0)
    k_x, k_p = jax.random.split(key)

    B, S = 2, 8
    x = jax.random.normal(k_x, (B, S, INPUT_DIM), jnp.float32)
    raw = init_params(k_p)
    packed = pack_params(*raw)

    mu, logcovar = encoder_forward(x, *packed)
    jax.block_until_ready((mu, logcovar))

    # 1) structural correctness vs. a reference using the identical bf16 casts
    mu_m, lc_m = matched_reference(x, *packed)
    np.testing.assert_allclose(np.asarray(mu), np.asarray(mu_m), rtol=1e-3, atol=1e-3)
    np.testing.assert_allclose(np.asarray(logcovar), np.asarray(lc_m), rtol=1e-3, atol=1e-3)

    # 2) semantic fidelity vs. the full-f32 PyTorch-equivalent forward
    mu_r, lc_r = reference_f32(x, *raw)
    np.testing.assert_allclose(np.asarray(mu), np.asarray(mu_r), rtol=5e-2, atol=5e-2)
    np.testing.assert_allclose(np.asarray(logcovar), np.asarray(lc_r), rtol=5e-2, atol=5e-2)

    print("KERNEL_OK")
</pallas_src>

<mosaic_0001>
module attributes {stable_mosaic.version = 11 : i64} {
  func.func @encoder_kernel(%arg0: i32, %arg1: memref<64x384xbf16, #tpu.memory_space<vmem>>, %arg2: memref<384x1024xbf16, #tpu.memory_space<vmem>>, %arg3: memref<1x1024xf32, #tpu.memory_space<vmem>>, %arg4: memref<256x1024xbf16, #tpu.memory_space<vmem>>, %arg5: memref<256x180xbf16, #tpu.memory_space<vmem>>, %arg6: memref<1x180xf32, #tpu.memory_space<vmem>>, %arg7: memref<8x180xf32, #tpu.memory_space<vmem>>, %arg8: memref<64x1024xf32, #tpu.memory_space<vmem>>, %arg9: memref<8x256xf32, #tpu.memory_space<vmem>>, %arg10: memref<8x256xf32, #tpu.memory_space<vmem>>) attributes {dimension_semantics = [#tpu.dimension_semantics<arbitrary>], iteration_bounds = array<i64: 1>, scalar_prefetch = 0 : i64, scratch_operands = 3 : i64, tpu.core_type = #tpu.core_type<tc>, window_params = [{transform_indices = @transform_0, window_bounds = array<i64: 64, 384>}, {pipeline_mode = #tpu.pipeline_mode<synchronous>, transform_indices = @transform_1, window_bounds = array<i64: 384, 1024>}, {pipeline_mode = #tpu.pipeline_mode<synchronous>, transform_indices = @transform_2, window_bounds = array<i64: 1, 1024>}, {pipeline_mode = #tpu.pipeline_mode<synchronous>, transform_indices = @transform_3, window_bounds = array<i64: 256, 1024>}, {pipeline_mode = #tpu.pipeline_mode<synchronous>, transform_indices = @transform_4, window_bounds = array<i64: 256, 180>}, {pipeline_mode = #tpu.pipeline_mode<synchronous>, transform_indices = @transform_5, window_bounds = array<i64: 1, 180>}, {pipeline_mode = #tpu.pipeline_mode<synchronous>, transform_indices = @transform_6, window_bounds = array<i64: 8, 180>}]} {
    %c0_i32 = arith.constant 0 : i32
    %0 = arith.cmpi eq, %arg0, %c0_i32 : i32
    %1 = arith.extui %0 : i1 to i32
    %c0_i32_0 = arith.constant 0 : i32
    %2 = arith.cmpi ne, %1, %c0_i32_0 : i32
    scf.if %2 {
      %cst_117 = arith.constant 0.000000e+00 : f32
      %322 = vector.broadcast %cst_117 : f32 to vector<8x256xf32>
      %c0_118 = arith.constant 0 : index
      %c0_119 = arith.constant 0 : index
      %323 = vector.load %arg9[%c0_118, %c0_119] : memref<8x256xf32, #tpu.memory_space<vmem>>, vector<8x256xf32>
      tpu.vector_store %arg9[%c0_118, %c0_119], %322 {strides = array<i32>} : memref<8x256xf32, #tpu.memory_space<vmem>>, vector<8x256xf32>,
      %cst_120 = arith.constant 0.000000e+00 : f32
      %324 = vector.broadcast %cst_120 : f32 to vector<8x256xf32>
      %c0_121 = arith.constant 0 : index
      %c0_122 = arith.constant 0 : index
      %325 = vector.load %arg10[%c0_121, %c0_122] : memref<8x256xf32, #tpu.memory_space<vmem>>, vector<8x256xf32>
      tpu.vector_store %arg10[%c0_121, %c0_122], %324 {strides = array<i32>} : memref<8x256xf32, #tpu.memory_space<vmem>>, vector<8x256xf32>,
    } else {
    }
    %c0 = arith.constant 0 : index
    %c0_1 = arith.constant 0 : index
    %3 = vector.load %arg1[%c0, %c0_1] : memref<64x384xbf16, #tpu.memory_space<vmem>>, vector<64x384xbf16>
    %c0_2 = arith.constant 0 : index
    %c0_3 = arith.constant 0 : index
    %4 = vector.load %arg2[%c0_2, %c0_3] : memref<384x1024xbf16, #tpu.memory_space<vmem>>, vector<384x1024xbf16>
    %cst = arith.constant dense<0.000000e+00> : vector<64x1024xf32>
    %5 = tpu.matmul %3, %4, %cst {dimension_numbers = #tpu.dot_dimension_numbers<[1], [0], [0], [1], [0, 0, 1, 1], [], []>} : vector<64x384xbf16>, vector<384x1024xbf16>, vector<64x1024xf32> -> vector<64x1024xf32>
    %c0_4 = arith.constant 0 : index
    %c0_5 = arith.constant 0 : index
    %6 = vector.load %arg3[%c0_4, %c0_5] : memref<1x1024xf32, #tpu.memory_space<vmem>>, vector<1x1024xf32>
    %7 = vector.broadcast %6 : vector<1x1024xf32> to vector<64x1024xf32>
    %8 = arith.addf %5, %7 : vector<64x1024xf32>
    %c0_6 = arith.constant 0 : index
    %c0_7 = arith.constant 0 : index
    %9 = vector.load %arg8[%c0_6, %c0_7] : memref<64x1024xf32, #tpu.memory_space<vmem>>, vector<64x1024xf32>
    tpu.vector_store %arg8[%c0_6, %c0_7], %8 {strides = array<i32>} : memref<64x1024xf32, #tpu.memory_space<vmem>>, vector<64x1024xf32>,
    %c0_8 = arith.constant 0 : index
    %c0_9 = arith.constant 0 : index
    %10 = vector.load %arg4[%c0_8, %c0_9] : memref<256x1024xbf16, #tpu.memory_space<vmem>>, vector<256x1024xbf16>
    %c0_10 = arith.constant 0 : index
    %c0_11 = arith.constant 0 : index
    %11 = vector.load %arg9[%c0_10, %c0_11] : memref<8x256xf32, #tpu.memory_space<vmem>>, vector<8x256xf32>
    %c0_12 = arith.constant 0 : index
    %c0_13 = arith.constant 0 : index
    %12 = vector.load %arg10[%c0_12, %c0_13] : memref<8x256xf32, #tpu.memory_space<vmem>>, vector<8x256xf32>
    %c0_i32_14 = arith.constant 0 : i32
    %c8_i32 = arith.constant 8 : i32
    %13 = arith.muli %c0_i32_14, %c8_i32 : i32
    %14 = tpu.assume_multiple %13, 8 : i32
    %15 = arith.index_cast %14 : i32 to index
    %c0_15 = arith.constant 0 : index
    %16 = vector.load %arg8[%15, %c0_15] : memref<64x1024xf32, #tpu.memory_space<vmem>>, vector<8x1024xf32>
    %17 = arith.truncf %11 : vector<8x256xf32> to vector<8x256xbf16>
    %cst_16 = arith.constant dense<0.000000e+00> : vector<8x1024xf32>
    %18 = tpu.matmul %17, %10, %cst_16 {dimension_numbers = #tpu.dot_dimension_numbers<[1], [0], [0], [1], [0, 0, 1, 1], [], []>} : vector<8x256xbf16>, vector<256x1024xbf16>, vector<8x1024xf32> -> vector<8x1024xf32>
    %19 = arith.addf %16, %18 : vector<8x1024xf32>
    %20 = vector.extract_strided_slice %19 {offsets = [0, 0], sizes = [8, 256], strides = [1, 1]} : vector<8x1024xf32> to vector<8x256xf32>
    %cst_17 = arith.constant 5.000000e-01 : f32
    %21 = vector.broadcast %cst_17 : f32 to vector<8x256xf32>
    %22 = arith.mulf %21, %20 : vector<8x256xf32>
    %23 = math.tanh %22 : vector<8x256xf32>
    %cst_18 = arith.constant 1.000000e+00 : f32
    %24 = vector.broadcast %cst_18 : f32 to vector<8x256xf32>
    %25 = arith.addf %23, %24 : vector<8x256xf32>
    %cst_19 = arith.constant 5.000000e-01 : f32
    %26 = vector.broadcast %cst_19 : f32 to vector<8x256xf32>
    %27 = arith.mulf %26, %25 : vector<8x256xf32>
    %28 = vector.extract_strided_slice %19 {offsets = [0, 256], sizes = [8, 256], strides = [1, 1]} : vector<8x1024xf32> to vector<8x256xf32>
    %cst_20 = arith.constant 5.000000e-01 : f32
    %29 = vector.broadcast %cst_20 : f32 to vector<8x256xf32>
    %30 = arith.mulf %29, %28 : vector<8x256xf32>
    %31 = math.tanh %30 : vector<8x256xf32>
    %cst_21 = arith.constant 1.000000e+00 : f32
    %32 = vector.broadcast %cst_21 : f32 to vector<8x256xf32>
    %33 = arith.addf %31, %32 : vector<8x256xf32>
    %cst_22 = arith.constant 5.000000e-01 : f32
    %34 = vector.broadcast %cst_22 : f32 to vector<8x256xf32>
    %35 = arith.mulf %34, %33 : vector<8x256xf32>
    %36 = vector.extract_strided_slice %19 {offsets = [0, 512], sizes = [8, 256], strides = [1, 1]} : vector<8x1024xf32> to vector<8x256xf32>
    %37 = math.tanh %36 : vector<8x256xf32>
    %38 = vector.extract_strided_slice %19 {offsets = [0, 768], sizes = [8, 256], strides = [1, 1]} : vector<8x1024xf32> to vector<8x256xf32>
    %cst_23 = arith.constant 5.000000e-01 : f32
    %39 = vector.broadcast %cst_23 : f32 to vector<8x256xf32>
    %40 = arith.mulf %39, %38 : vector<8x256xf32>
    %41 = math.tanh %40 : vector<8x256xf32>
    %cst_24 = arith.constant 1.000000e+00 : f32
    %42 = vector.broadcast %cst_24 : f32 to vector<8x256xf32>
    %43 = arith.addf %41, %42 : vector<8x256xf32>
    %cst_25 = arith.constant 5.000000e-01 : f32
    %44 = vector.broadcast %cst_25 : f32 to vector<8x256xf32>
    %45 = arith.mulf %44, %43 : vector<8x256xf32>
    %46 = arith.mulf %35, %12 : vector<8x256xf32>
    %47 = arith.mulf %27, %37 : vector<8x256xf32>
    %48 = arith.addf %46, %47 : vector<8x256xf32>
    %49 = math.tanh %48 : vector<8x256xf32>
    %50 = arith.mulf %45, %49 : vector<8x256xf32>
    %c1_i32 = arith.constant 1 : i32
    %c8_i32_26 = arith.constant 8 : i32
    %51 = arith.muli %c1_i32, %c8_i32_26 : i32
    %52 = tpu.assume_multiple %51, 8 : i32
    %53 = arith.index_cast %52 : i32 to index
    %c0_27 = arith.constant 0 : index
    %54 = vector.load %arg8[%53, %c0_27] : memref<64x1024xf32, #tpu.memory_space<vmem>>, vector<8x1024xf32>
    %55 = arith.truncf %50 : vector<8x256xf32> to vector<8x256xbf16>
    %cst_28 = arith.constant dense<0.000000e+00> : vector<8x1024xf32>
    %56 = tpu.matmul %55, %10, %cst_28 {dimension_numbers = #tpu.dot_dimension_numbers<[1], [0], [0], [1], [0, 0, 1, 1], [], []>} : vector<8x256xbf16>, vector<256x1024xbf16>, vector<8x1024xf32> -> vector<8x1024xf32>
    %57 = arith.addf %54, %56 : vector<8x1024xf32>
    %58 = vector.extract_strided_slice %57 {offsets = [0, 0], sizes = [8, 256], strides = [1, 1]} : vector<8x1024xf32> to vector<8x256xf32>
    %cst_29 = arith.constant 5.000000e-01 : f32
    %59 = vector.broadcast %cst_29 : f32 to vector<8x256xf32>
    %60 = arith.mulf %59, %58 : vector<8x256xf32>
    %61 = math.tanh %60 : vector<8x256xf32>
    %cst_30 = arith.constant 1.000000e+00 : f32
    %62 = vector.broadcast %cst_30 : f32 to vector<8x256xf32>
    %63 = arith.addf %61, %62 : vector<8x256xf32>
    %cst_31 = arith.constant 5.000000e-01 : f32
    %64 = vector.broadcast %cst_31 : f32 to vector<8x256xf32>
    %65 = arith.mulf %64, %63 : vector<8x256xf32>
    %66 = vector.extract_strided_slice %57 {offsets = [0, 256], sizes = [8, 256], strides = [1, 1]} : vector<8x1024xf32> to vector<8x256xf32>
    %cst_32 = arith.constant 5.000000e-01 : f32
    %67 = vector.broadcast %cst_32 : f32 to vector<8x256xf32>
    %68 = arith.mulf %67, %66 : vector<8x256xf32>
    %69 = math.tanh %68 : vector<8x256xf32>
    %cst_33 = arith.constant 1.000000e+00 : f32
    %70 = vector.broadcast %cst_33 : f32 to vector<8x256xf32>
    %71 = arith.addf %69, %70 : vector<8x256xf32>
    %cst_34 = arith.constant 5.000000e-01 : f32
    %72 = vector.broadcast %cst_34 : f32 to vector<8x256xf32>
    %73 = arith.mulf %72, %71 : vector<8x256xf32>
    %74 = vector.extract_strided_slice %57 {offsets = [0, 512], sizes = [8, 256], strides = [1, 1]} : vector<8x1024xf32> to vector<8x256xf32>
    %75 = math.tanh %74 : vector<8x256xf32>
    %76 = vector.extract_strided_slice %57 {offsets = [0, 768], sizes = [8, 256], strides = [1, 1]} : vector<8x1024xf32> to vector<8x256xf32>
    %cst_35 = arith.constant 5.000000e-01 : f32
    %77 = vector.broadcast %cst_35 : f32 to vector<8x256xf32>
    %78 = arith.mulf %77, %76 : vector<8x256xf32>
    %79 = math.tanh %78 : vector<8x256xf32>
    %cst_36 = arith.constant 1.000000e+00 : f32
    %80 = vector.broadcast %cst_36 : f32 to vector<8x256xf32>
    %81 = arith.addf %79, %80 : vector<8x256xf32>
    %cst_37 = arith.constant 5.000000e-01 : f32
    %82 = vector.broadcast %cst_37 : f32 to vector<8x256xf32>
    %83 = arith.mulf %82, %81 : vector<8x256xf32>
    %84 = arith.mulf %73, %48 : vector<8x256xf32>
    %85 = arith.mulf %65, %75 : vector<8x256xf32>
    %86 = arith.addf %84, %85 : vector<8x256xf32>
    %87 = math.tanh %86 : vector<8x256xf32>
    %88 = arith.mulf %83, %87 : vector<8x256xf32>
    %c2_i32 = arith.constant 2 : i32
    %c8_i32_38 = arith.constant 8 : i32
    %89 = arith.muli %c2_i32, %c8_i32_38 : i32
    %90 = tpu.assume_multiple %89, 8 : i32
    %91 = arith.index_cast %90 : i32 to index
    %c0_39 = arith.constant 0 : index
    %92 = vector.load %arg8[%91, %c0_39] : memref<64x1024xf32, #tpu.memory_space<vmem>>, vector<8x1024xf32>
    %93 = arith.truncf %88 : vector<8x256xf32> to vector<8x256xbf16>
    %cst_40 = arith.constant dense<0.000000e+00> : vector<8x1024xf32>
    %94 = tpu.matmul %93, %10, %cst_40 {dimension_numbers = #tpu.dot_dimension_numbers<[1], [0], [0], [1], [0, 0, 1, 1], [], []>} : vector<8x256xbf16>, vector<256x1024xbf16>, vector<8x1024xf32> -> vector<8x1024xf32>
    %95 = arith.addf %92, %94 : vector<8x1024xf32>
    %96 = vector.extract_strided_slice %95 {offsets = [0, 0], sizes = [8, 256], strides = [1, 1]} : vector<8x1024xf32> to vector<8x256xf32>
    %cst_41 = arith.constant 5.000000e-01 : f32
    %97 = vector.broadcast %cst_41 : f32 to vector<8x256xf32>
    %98 = arith.mulf %97, %96 : vector<8x256xf32>
    %99 = math.tanh %98 : vector<8x256xf32>
    %cst_42 = arith.constant 1.000000e+00 : f32
    %100 = vector.broadcast %cst_42 : f32 to vector<8x256xf32>
    %101 = arith.addf %99, %100 : vector<8x256xf32>
    %cst_43 = arith.constant 5.000000e-01 : f32
    %102 = vector.broadcast %cst_43 : f32 to vector<8x256xf32>
    %103 = arith.mulf %102, %101 : vector<8x256xf32>
    %104 = vector.extract_strided_slice %95 {offsets = [0, 256], sizes = [8, 256], strides = [1, 1]} : vector<8x1024xf32> to vector<8x256xf32>
    %cst_44 = arith.constant 5.000000e-01 : f32
    %105 = vector.broadcast %cst_44 : f32 to vector<8x256xf32>
    %106 = arith.mulf %105, %104 : vector<8x256xf32>
    %107 = math.tanh %106 : vector<8x256xf32>
    %cst_45 = arith.constant 1.000000e+00 : f32
    %108 = vector.broadcast %cst_45 : f32 to vector<8x256xf32>
    %109 = arith.addf %107, %108 : vector<8x256xf32>
    %cst_46 = arith.constant 5.000000e-01 : f32
    %110 = vector.broadcast %cst_46 : f32 to vector<8x256xf32>
    %111 = arith.mulf %110, %109 : vector<8x256xf32>
    %112 = vector.extract_strided_slice %95 {offsets = [0, 512], sizes = [8, 256], strides = [1, 1]} : vector<8x1024xf32> to vector<8x256xf32>
    %113 = math.tanh %112 : vector<8x256xf32>
    %114 = vector.extract_strided_slice %95 {offsets = [0, 768], sizes = [8, 256], strides = [1, 1]} : vector<8x1024xf32> to vector<8x256xf32>
    %cst_47 = arith.constant 5.000000e-01 : f32
    %115 = vector.broadcast %cst_47 : f32 to vector<8x256xf32>
    %116 = arith.mulf %115, %114 : vector<8x256xf32>
    %117 = math.tanh %116 : vector<8x256xf32>
    %cst_48 = arith.constant 1.000000e+00 : f32
    %118 = vector.broadcast %cst_48 : f32 to vector<8x256xf32>
    %119 = arith.addf %117, %118 : vector<8x256xf32>
    %cst_49 = arith.constant 5.000000e-01 : f32
    %120 = vector.broadcast %cst_49 : f32 to vector<8x256xf32>
    %121 = arith.mulf %120, %119 : vector<8x256xf32>
    %122 = arith.mulf %111, %86 : vector<8x256xf32>
    %123 = arith.mulf %103, %113 : vector<8x256xf32>
    %124 = arith.addf %122, %123 : vector<8x256xf32>
    %125 = math.tanh %124 : vector<8x256xf32>
    %126 = arith.mulf %121, %125 : vector<8x256xf32>
    %c3_i32 = arith.constant 3 : i32
    %c8_i32_50 = arith.constant 8 : i32
    %127 = arith.muli %c3_i32, %c8_i32_50 : i32
    %128 = tpu.assume_multiple %127, 8 : i32
    %129 = arith.index_cast %128 : i32 to index
    %c0_51 = arith.constant 0 : index
    %130 = vector.load %arg8[%129, %c0_51] : memref<64x1024xf32, #tpu.memory_space<vmem>>, vector<8x1024xf32>
    %131 = arith.truncf %126 : vector<8x256xf32> to vector<8x256xbf16>
    %cst_52 = arith.constant dense<0.000000e+00> : vector<8x1024xf32>
    %132 = tpu.matmul %131, %10, %cst_52 {dimension_numbers = #tpu.dot_dimension_numbers<[1], [0], [0], [1], [0, 0, 1, 1], [], []>} : vector<8x256xbf16>, vector<256x1024xbf16>, vector<8x1024xf32> -> vector<8x1024xf32>
    %133 = arith.addf %130, %132 : vector<8x1024xf32>
    %134 = vector.extract_strided_slice %133 {offsets = [0, 0], sizes = [8, 256], strides = [1, 1]} : vector<8x1024xf32> to vector<8x256xf32>
    %cst_53 = arith.constant 5.000000e-01 : f32
    %135 = vector.broadcast %cst_53 : f32 to vector<8x256xf32>
    %136 = arith.mulf %135, %134 : vector<8x256xf32>
    %137 = math.tanh %136 : vector<8x256xf32>
    %cst_54 = arith.constant 1.000000e+00 : f32
    %138 = vector.broadcast %cst_54 : f32 to vector<8x256xf32>
    %139 = arith.addf %137, %138 : vector<8x256xf32>
    %cst_55 = arith.constant 5.000000e-01 : f32
    %140 = vector.broadcast %cst_55 : f32 to vector<8x256xf32>
    %141 = arith.mulf %140, %139 : vector<8x256xf32>
    %142 = vector.extract_strided_slice %133 {offsets = [0, 256], sizes = [8, 256], strides = [1, 1]} : vector<8x1024xf32> to vector<8x256xf32>
    %cst_56 = arith.constant 5.000000e-01 : f32
    %143 = vector.broadcast %cst_56 : f32 to vector<8x256xf32>
    %144 = arith.mulf %143, %142 : vector<8x256xf32>
    %145 = math.tanh %144 : vector<8x256xf32>
    %cst_57 = arith.constant 1.000000e+00 : f32
    %146 = vector.broadcast %cst_57 : f32 to vector<8x256xf32>
    %147 = arith.addf %145, %146 : vector<8x256xf32>
    %cst_58 = arith.constant 5.000000e-01 : f32
    %148 = vector.broadcast %cst_58 : f32 to vector<8x256xf32>
    %149 = arith.mulf %148, %147 : vector<8x256xf32>
    %150 = vector.extract_strided_slice %133 {offsets = [0, 512], sizes = [8, 256], strides = [1, 1]} : vector<8x1024xf32> to vector<8x256xf32>
    %151 = math.tanh %150 : vector<8x256xf32>
    %152 = vector.extract_strided_slice %133 {offsets = [0, 768], sizes = [8, 256], strides = [1, 1]} : vector<8x1024xf32> to vector<8x256xf32>
    %cst_59 = arith.constant 5.000000e-01 : f32
    %153 = vector.broadcast %cst_59 : f32 to vector<8x256xf32>
    %154 = arith.mulf %153, %152 : vector<8x256xf32>
    %155 = math.tanh %154 : vector<8x256xf32>
    %cst_60 = arith.constant 1.000000e+00 : f32
    %156 = vector.broadcast %cst_60 : f32 to vector<8x256xf32>
    %157 = arith.addf %155, %156 : vector<8x256xf32>
    %cst_61 = arith.constant 5.000000e-01 : f32
    %158 = vector.broadcast %cst_61 : f32 to vector<8x256xf32>
    %159 = arith.mulf %158, %157 : vector<8x256xf32>
    %160 = arith.mulf %149, %124 : vector<8x256xf32>
    %161 = arith.mulf %141, %151 : vector<8x256xf32>
    %162 = arith.addf %160, %161 : vector<8x256xf32>
    %163 = math.tanh %162 : vector<8x256xf32>
    %164 = arith.mulf %159, %163 : vector<8x256xf32>
    %c4_i32 = arith.constant 4 : i32
    %c8_i32_62 = arith.constant 8 : i32
    %165 = arith.muli %c4_i32, %c8_i32_62 : i32
    %166 = tpu.assume_multiple %165, 8 : i32
    %167 = arith.index_cast %166 : i32 to index
    %c0_63 = arith.constant 0 : index
    %168 = vector.load %arg8[%167, %c0_63] : memref<64x1024xf32, #tpu.memory_space<vmem>>, vector<8x1024xf32>
    %169 = arith.truncf %164 : vector<8x256xf32> to vector<8x256xbf16>
    %cst_64 = arith.constant dense<0.000000e+00> : vector<8x1024xf32>
    %170 = tpu.matmul %169, %10, %cst_64 {dimension_numbers = #tpu.dot_dimension_numbers<[1], [0], [0], [1], [0, 0, 1, 1], [], []>} : vector<8x256xbf16>, vector<256x1024xbf16>, vector<8x1024xf32> -> vector<8x1024xf32>
    %171 = arith.addf %168, %170 : vector<8x1024xf32>
    %172 = vector.extract_strided_slice %171 {offsets = [0, 0], sizes = [8, 256], strides = [1, 1]} : vector<8x1024xf32> to vector<8x256xf32>
    %cst_65 = arith.constant 5.000000e-01 : f32
    %173 = vector.broadcast %cst_65 : f32 to vector<8x256xf32>
    %174 = arith.mulf %173, %172 : vector<8x256xf32>
    %175 = math.tanh %174 : vector<8x256xf32>
    %cst_66 = arith.constant 1.000000e+00 : f32
    %176 = vector.broadcast %cst_66 : f32 to vector<8x256xf32>
    %177 = arith.addf %175, %176 : vector<8x256xf32>
    %cst_67 = arith.constant 5.000000e-01 : f32
    %178 = vector.broadcast %cst_67 : f32 to vector<8x256xf32>
    %179 = arith.mulf %178, %177 : vector<8x256xf32>
    %180 = vector.extract_strided_slice %171 {offsets = [0, 256], sizes = [8, 256], strides = [1, 1]} : vector<8x1024xf32> to vector<8x256xf32>
    %cst_68 = arith.constant 5.000000e-01 : f32
    %181 = vector.broadcast %cst_68 : f32 to vector<8x256xf32>
    %182 = arith.mulf %181, %180 : vector<8x256xf32>
    %183 = math.tanh %182 : vector<8x256xf32>
    %cst_69 = arith.constant 1.000000e+00 : f32
    %184 = vector.broadcast %cst_69 : f32 to vector<8x256xf32>
    %185 = arith.addf %183, %184 : vector<8x256xf32>
    %cst_70 = arith.constant 5.000000e-01 : f32
    %186 = vector.broadcast %cst_70 : f32 to vector<8x256xf32>
    %187 = arith.mulf %186, %185 : vector<8x256xf32>
    %188 = vector.extract_strided_slice %171 {offsets = [0, 512], sizes = [8, 256], strides = [1, 1]} : vector<8x1024xf32> to vector<8x256xf32>
    %189 = math.tanh %188 : vector<8x256xf32>
    %190 = vector.extract_strided_slice %171 {offsets = [0, 768], sizes = [8, 256], strides = [1, 1]} : vector<8x1024xf32> to vector<8x256xf32>
    %cst_71 = arith.constant 5.000000e-01 : f32
    %191 = vector.broadcast %cst_71 : f32 to vector<8x256xf32>
    %192 = arith.mulf %191, %190 : vector<8x256xf32>
    %193 = math.tanh %192 : vector<8x256xf32>
    %cst_72 = arith.constant 1.000000e+00 : f32
    %194 = vector.broadcast %cst_72 : f32 to vector<8x256xf32>
    %195 = arith.addf %193, %194 : vector<8x256xf32>
    %cst_73 = arith.constant 5.000000e-01 : f32
    %196 = vector.broadcast %cst_73 : f32 to vector<8x256xf32>
    %197 = arith.mulf %196, %195 : vector<8x256xf32>
    %198 = arith.mulf %187, %162 : vector<8x256xf32>
    %199 = arith.mulf %179, %189 : vector<8x256xf32>
    %200 = arith.addf %198, %199 : vector<8x256xf32>
    %201 = math.tanh %200 : vector<8x256xf32>
    %202 = arith.mulf %197, %201 : vector<8x256xf32>
    %c5_i32 = arith.constant 5 : i32
    %c8_i32_74 = arith.constant 8 : i32
    %203 = arith.muli %c5_i32, %c8_i32_74 : i32
    %204 = tpu.assume_multiple %203, 8 : i32
    %205 = arith.index_cast %204 : i32 to index
    %c0_75 = arith.constant 0 : index
    %206 = vector.load %arg8[%205, %c0_75] : memref<64x1024xf32, #tpu.memory_space<vmem>>, vector<8x1024xf32>
    %207 = arith.truncf %202 : vector<8x256xf32> to vector<8x256xbf16>
    %cst_76 = arith.constant dense<0.000000e+00> : vector<8x1024xf32>
    %208 = tpu.matmul %207, %10, %cst_76 {dimension_numbers = #tpu.dot_dimension_numbers<[1], [0], [0], [1], [0, 0, 1, 1], [], []>} : vector<8x256xbf16>, vector<256x1024xbf16>, vector<8x1024xf32> -> vector<8x1024xf32>
    %209 = arith.addf %206, %208 : vector<8x1024xf32>
    %210 = vector.extract_strided_slice %209 {offsets = [0, 0], sizes = [8, 256], strides = [1, 1]} : vector<8x1024xf32> to vector<8x256xf32>
    %cst_77 = arith.constant 5.000000e-01 : f32
    %211 = vector.broadcast %cst_77 : f32 to vector<8x256xf32>
    %212 = arith.mulf %211, %210 : vector<8x256xf32>
    %213 = math.tanh %212 : vector<8x256xf32>
    %cst_78 = arith.constant 1.000000e+00 : f32
    %214 = vector.broadcast %cst_78 : f32 to vector<8x256xf32>
    %215 = arith.addf %213, %214 : vector<8x256xf32>
    %cst_79 = arith.constant 5.000000e-01 : f32
    %216 = vector.broadcast %cst_79 : f32 to vector<8x256xf32>
    %217 = arith.mulf %216, %215 : vector<8x256xf32>
    %218 = vector.extract_strided_slice %209 {offsets = [0, 256], sizes = [8, 256], strides = [1, 1]} : vector<8x1024xf32> to vector<8x256xf32>
    %cst_80 = arith.constant 5.000000e-01 : f32
    %219 = vector.broadcast %cst_80 : f32 to vector<8x256xf32>
    %220 = arith.mulf %219, %218 : vector<8x256xf32>
    %221 = math.tanh %220 : vector<8x256xf32>
    %cst_81 = arith.constant 1.000000e+00 : f32
    %222 = vector.broadcast %cst_81 : f32 to vector<8x256xf32>
    %223 = arith.addf %221, %222 : vector<8x256xf32>
    %cst_82 = arith.constant 5.000000e-01 : f32
    %224 = vector.broadcast %cst_82 : f32 to vector<8x256xf32>
    %225 = arith.mulf %224, %223 : vector<8x256xf32>
    %226 = vector.extract_strided_slice %209 {offsets = [0, 512], sizes = [8, 256], strides = [1, 1]} : vector<8x1024xf32> to vector<8x256xf32>
    %227 = math.tanh %226 : vector<8x256xf32>
    %228 = vector.extract_strided_slice %209 {offsets = [0, 768], sizes = [8, 256], strides = [1, 1]} : vector<8x1024xf32> to vector<8x256xf32>
    %cst_83 = arith.constant 5.000000e-01 : f32
    %229 = vector.broadcast %cst_83 : f32 to vector<8x256xf32>
    %230 = arith.mulf %229, %228 : vector<8x256xf32>
    %231 = math.tanh %230 : vector<8x256xf32>
    %cst_84 = arith.constant 1.000000e+00 : f32
    %232 = vector.broadcast %cst_84 : f32 to vector<8x256xf32>
    %233 = arith.addf %231, %232 : vector<8x256xf32>
    %cst_85 = arith.constant 5.000000e-01 : f32
    %234 = vector.broadcast %cst_85 : f32 to vector<8x256xf32>
    %235 = arith.mulf %234, %233 : vector<8x256xf32>
    %236 = arith.mulf %225, %200 : vector<8x256xf32>
    %237 = arith.mulf %217, %227 : vector<8x256xf32>
    %238 = arith.addf %236, %237 : vector<8x256xf32>
    %239 = math.tanh %238 : vector<8x256xf32>
    %240 = arith.mulf %235, %239 : vector<8x256xf32>
    %c6_i32 = arith.constant 6 : i32
    %c8_i32_86 = arith.constant 8 : i32
    %241 = arith.muli %c6_i32, %c8_i32_86 : i32
    %242 = tpu.assume_multiple %241, 8 : i32
    %243 = arith.index_cast %242 : i32 to index
    %c0_87 = arith.constant 0 : index
    %244 = vector.load %arg8[%243, %c0_87] : memref<64x1024xf32, #tpu.memory_space<vmem>>, vector<8x1024xf32>
    %245 = arith.truncf %240 : vector<8x256xf32> to vector<8x256xbf16>
    %cst_88 = arith.constant dense<0.000000e+00> : vector<8x1024xf32>
    %246 = tpu.matmul %245, %10, %cst_88 {dimension_numbers = #tpu.dot_dimension_numbers<[1], [0], [0], [1], [0, 0, 1, 1], [], []>} : vector<8x256xbf16>, vector<256x1024xbf16>, vector<8x1024xf32> -> vector<8x1024xf32>
    %247 = arith.addf %244, %246 : vector<8x1024xf32>
    %248 = vector.extract_strided_slice %247 {offsets = [0, 0], sizes = [8, 256], strides = [1, 1]} : vector<8x1024xf32> to vector<8x256xf32>
    %cst_89 = arith.constant 5.000000e-01 : f32
    %249 = vector.broadcast %cst_89 : f32 to vector<8x256xf32>
    %250 = arith.mulf %249, %248 : vector<8x256xf32>
    %251 = math.tanh %250 : vector<8x256xf32>
    %cst_90 = arith.constant 1.000000e+00 : f32
    %252 = vector.broadcast %cst_90 : f32 to vector<8x256xf32>
    %253 = arith.addf %251, %252 : vector<8x256xf32>
    %cst_91 = arith.constant 5.000000e-01 : f32
    %254 = vector.broadcast %cst_91 : f32 to vector<8x256xf32>
    %255 = arith.mulf %254, %253 : vector<8x256xf32>
    %256 = vector.extract_strided_slice %247 {offsets = [0, 256], sizes = [8, 256], strides = [1, 1]} : vector<8x1024xf32> to vector<8x256xf32>
    %cst_92 = arith.constant 5.000000e-01 : f32
    %257 = vector.broadcast %cst_92 : f32 to vector<8x256xf32>
    %258 = arith.mulf %257, %256 : vector<8x256xf32>
    %259 = math.tanh %258 : vector<8x256xf32>
    %cst_93 = arith.constant 1.000000e+00 : f32
    %260 = vector.broadcast %cst_93 : f32 to vector<8x256xf32>
    %261 = arith.addf %259, %260 : vector<8x256xf32>
    %cst_94 = arith.constant 5.000000e-01 : f32
    %262 = vector.broadcast %cst_94 : f32 to vector<8x256xf32>
    %263 = arith.mulf %262, %261 : vector<8x256xf32>
    %264 = vector.extract_strided_slice %247 {offsets = [0, 512], sizes = [8, 256], strides = [1, 1]} : vector<8x1024xf32> to vector<8x256xf32>
    %265 = math.tanh %264 : vector<8x256xf32>
    %266 = vector.extract_strided_slice %247 {offsets = [0, 768], sizes = [8, 256], strides = [1, 1]} : vector<8x1024xf32> to vector<8x256xf32>
    %cst_95 = arith.constant 5.000000e-01 : f32
    %267 = vector.broadcast %cst_95 : f32 to vector<8x256xf32>
    %268 = arith.mulf %267, %266 : vector<8x256xf32>
    %269 = math.tanh %268 : vector<8x256xf32>
    %cst_96 = arith.constant 1.000000e+00 : f32
    %270 = vector.broadcast %cst_96 : f32 to vector<8x256xf32>
    %271 = arith.addf %269, %270 : vector<8x256xf32>
    %cst_97 = arith.constant 5.000000e-01 : f32
    %272 = vector.broadcast %cst_97 : f32 to vector<8x256xf32>
    %273 = arith.mulf %272, %271 : vector<8x256xf32>
    %274 = arith.mulf %263, %238 : vector<8x256xf32>
    %275 = arith.mulf %255, %265 : vector<8x256xf32>
    %276 = arith.addf %274, %275 : vector<8x256xf32>
    %277 = math.tanh %276 : vector<8x256xf32>
    %278 = arith.mulf %273, %277 : vector<8x256xf32>
    %c7_i32 = arith.constant 7 : i32
    %c8_i32_98 = arith.constant 8 : i32
    %279 = arith.muli %c7_i32, %c8_i32_98 : i32
    %280 = tpu.assume_multiple %279, 8 : i32
    %281 = arith.index_cast %280 : i32 to index
    %c0_99 = arith.constant 0 : index
    %282 = vector.load %arg8[%281, %c0_99] : memref<64x1024xf32, #tpu.memory_space<vmem>>, vector<8x1024xf32>
    %283 = arith.truncf %278 : vector<8x256xf32> to vector<8x256xbf16>
    %cst_100 = arith.constant dense<0.000000e+00> : vector<8x1024xf32>
    %284 = tpu.matmul %283, %10, %cst_100 {dimension_numbers = #tpu.dot_dimension_numbers<[1], [0], [0], [1], [0, 0, 1, 1], [], []>} : vector<8x256xbf16>, vector<256x1024xbf16>, vector<8x1024xf32> -> vector<8x1024xf32>
    %285 = arith.addf %282, %284 : vector<8x1024xf32>
    %286 = vector.extract_strided_slice %285 {offsets = [0, 0], sizes = [8, 256], strides = [1, 1]} : vector<8x1024xf32> to vector<8x256xf32>
    %cst_101 = arith.constant 5.000000e-01 : f32
    %287 = vector.broadcast %cst_101 : f32 to vector<8x256xf32>
    %288 = arith.mulf %287, %286 : vector<8x256xf32>
    %289 = math.tanh %288 : vector<8x256xf32>
    %cst_102 = arith.constant 1.000000e+00 : f32
    %290 = vector.broadcast %cst_102 : f32 to vector<8x256xf32>
    %291 = arith.addf %289, %290 : vector<8x256xf32>
    %cst_103 = arith.constant 5.000000e-01 : f32
    %292 = vector.broadcast %cst_103 : f32 to vector<8x256xf32>
    %293 = arith.mulf %292, %291 : vector<8x256xf32>
    %294 = vector.extract_strided_slice %285 {offsets = [0, 256], sizes = [8, 256], strides = [1, 1]} : vector<8x1024xf32> to vector<8x256xf32>
    %cst_104 = arith.constant 5.000000e-01 : f32
    %295 = vector.broadcast %cst_104 : f32 to vector<8x256xf32>
    %296 = arith.mulf %295, %294 : vector<8x256xf32>
    %297 = math.tanh %296 : vector<8x256xf32>
    %cst_105 = arith.constant 1.000000e+00 : f32
    %298 = vector.broadcast %cst_105 : f32 to vector<8x256xf32>
    %299 = arith.addf %297, %298 : vector<8x256xf32>
    %cst_106 = arith.constant 5.000000e-01 : f32
    %300 = vector.broadcast %cst_106 : f32 to vector<8x256xf32>
    %301 = arith.mulf %300, %299 : vector<8x256xf32>
    %302 = vector.extract_strided_slice %285 {offsets = [0, 512], sizes = [8, 256], strides = [1, 1]} : vector<8x1024xf32> to vector<8x256xf32>
    %303 = math.tanh %302 : vector<8x256xf32>
    %304 = vector.extract_strided_slice %285 {offsets = [0, 768], sizes = [8, 256], strides = [1, 1]} : vector<8x1024xf32> to vector<8x256xf32>
    %cst_107 = arith.constant 5.000000e-01 : f32
    %305 = vector.broadcast %cst_107 : f32 to vector<8x256xf32>
    %306 = arith.mulf %305, %304 : vector<8x256xf32>
    %307 = math.tanh %306 : vector<8x256xf32>
    %cst_108 = arith.constant 1.000000e+00 : f32
    %308 = vector.broadcast %cst_108 : f32 to vector<8x256xf32>
    %309 = arith.addf %307, %308 : vector<8x256xf32>
    %cst_109 = arith.constant 5.000000e-01 : f32
    %310 = vector.broadcast %cst_109 : f32 to vector<8x256xf32>
    %311 = arith.mulf %310, %309 : vector<8x256xf32>
    %312 = arith.mulf %301, %276 : vector<8x256xf32>
    %313 = arith.mulf %293, %303 : vector<8x256xf32>
    %314 = arith.addf %312, %313 : vector<8x256xf32>
    %315 = math.tanh %314 : vector<8x256xf32>
    %316 = arith.mulf %311, %315 : vector<8x256xf32>
    %c8_i32_110 = arith.constant 8 : i32
    %c0_111 = arith.constant 0 : index
    %c0_112 = arith.constant 0 : index
    %317 = vector.load %arg9[%c0_111, %c0_112] : memref<8x256xf32, #tpu.memory_space<vmem>>, vector<8x256xf32>
    tpu.vector_store %arg9[%c0_111, %c0_112], %316 {strides = array<i32>} : memref<8x256xf32, #tpu.memory_space<vmem>>, vector<8x256xf32>,
    %c0_113 = arith.constant 0 : index
    %c0_114 = arith.constant 0 : index
    %318 = vector.load %arg10[%c0_113, %c0_114] : memref<8x256xf32, #tpu.memory_space<vmem>>, vector<8x256xf32>
    tpu.vector_store %arg10[%c0_113, %c0_114], %314 {strides = array<i32>} : memref<8x256xf32, #tpu.memory_space<vmem>>, vector<8x256xf32>,
    %c0_i32_115 = arith.constant 0 : i32
    %319 = arith.cmpi eq, %arg0, %c0_i32_115 : i32
    %320 = arith.extui %319 : i1 to i32
    %c0_i32_116 = arith.constant 0 : i32
    %321 = arith.cmpi ne, %320, %c0_i32_116 : i32
    scf.if %321 {
      %cst_117 = arith.constant 0.000000e+00 : f32
      %322 = vector.broadcast %cst_117 : f32 to vector<8x256xf32>
      %323 = arith.maximumf %316, %322 : vector<8x256xf32>
      %324 = math.absf %316 : vector<8x256xf32>
      %cst_118 = arith.constant 0.000000e+00 : f32
      %325 = vector.broadcast %cst_118 : f32 to vector<8x256xf32>
      %326 = arith.subf %325, %324 : vector<8x256xf32>
      %327 = math.exp %326 : vector<8x256xf32>
      %cst_119 = arith.constant 1.000000e+00 : f32
      %328 = vector.broadcast %cst_119 : f32 to vector<8x256xf32>
      %329 = arith.addf %328, %327 : vector<8x256xf32>
      %330 = math.log %329 : vector<8x256xf32>
      %331 = arith.addf %323, %330 : vector<8x256xf32>
      %332 = arith.truncf %331 : vector<8x256xf32> to vector<8x256xbf16>
      %c0_120 = arith.constant 0 : index
      %c0_121 = arith.constant 0 : index
      %333 = vector.load %arg5[%c0_120, %c0_121] : memref<256x180xbf16, #tpu.memory_space<vmem>>, vector<256x180xbf16>
      %cst_122 = arith.constant dense<0.000000e+00> : vector<8x180xf32>
      %334 = tpu.matmul %332, %333, %cst_122 {dimension_numbers = #tpu.dot_dimension_numbers<[1], [0], [0], [1], [0, 0, 1, 1], [], []>} : vector<8x256xbf16>, vector<256x180xbf16>, vector<8x180xf32> -> vector<8x180xf32>
      %c0_123 = arith.constant 0 : index
      %c0_124 = arith.constant 0 : index
      %335 = vector.load %arg6[%c0_123, %c0_124] : memref<1x180xf32, #tpu.memory_space<vmem>>, vector<1x180xf32>
      %336 = vector.broadcast %335 : vector<1x180xf32> to vector<8x180xf32>
      %337 = arith.addf %334, %336 : vector<8x180xf32>
      %c0_125 = arith.constant 0 : index
      %c0_126 = arith.constant 0 : index
      %338 = vector.load %arg7[%c0_125, %c0_126] : memref<8x180xf32, #tpu.memory_space<vmem>>, vector<8x180xf32>
      tpu.vector_store %arg7[%c0_125, %c0_126], %337 {strides = array<i32>} : memref<8x180xf32, #tpu.memory_space<vmem>>, vector<8x180xf32>,
    } else {
    }
    return
  }
  func.func @transform_0(%arg0: i32) -> (i32, i32) {
    %c0_i32 = arith.constant 0 : i32
    %c0_i32_0 = arith.constant 0 : i32
    return %arg0, %c0_i32 : i32, i32
  }
  func.func @transform_1(%arg0: i32) -> (i32, i32) {
    %c0_i32 = arith.constant 0 : i32
    %c0_i32_0 = arith.constant 0 : i32
    %c0_i32_1 = arith.constant 0 : i32
    return %c0_i32, %c0_i32_0 : i32, i32
  }
  func.func @transform_2(%arg0: i32) -> (i32, i32) {
    %c0_i32 = arith.constant 0 : i32
    %c0_i32_0 = arith.constant 0 : i32
    %c0_i32_1 = arith.constant 0 : i32
    return %c0_i32, %c0_i32_0 : i32, i32
  }
  func.func @transform_3(%arg0: i32) -> (i32, i32) {
    %c0_i32 = arith.constant 0 : i32
    %c0_i32_0 = arith.constant 0 : i32
    %c0_i32_1 = arith.constant 0 : i32
    return %c0_i32, %c0_i32_0 : i32, i32
  }
  func.func @transform_4(%arg0: i32) -> (i32, i32) {
    %c0_i32 = arith.constant 0 : i32
    %c0_i32_0 = arith.constant 0 : i32
    %c0_i32_1 = arith.constant 0 : i32
    return %c0_i32, %c0_i32_0 : i32, i32
  }
  func.func @transform_5(%arg0: i32) -> (i32, i32) {
    %c0_i32 = arith.constant 0 : i32
    %c0_i32_0 = arith.constant 0 : i32
    %c0_i32_1 = arith.constant 0 : i32
    return %c0_i32, %c0_i32_0 : i32, i32
  }
  func.func @transform_6(%arg0: i32) -> (i32, i32) {
    %c0_i32 = arith.constant 0 : i32
    %c0_i32_0 = arith.constant 0 : i32
    %c0_i32_1 = arith.constant 0 : i32
    return %c0_i32, %c0_i32_0 : i32, i32
  }
}

</mosaic_0001>

<llo_original>
// kernel: encoder_forward.1
$region0: #{encoder_forward.1}
  #allocation0 [shape = 'u32[]', space=smem, size = 0x4, offset = 0x4, fixed_abs, tag = 'smem constant byte address 0x4 - core index']
  #allocation1 [shape = 'u32[72,128]{1,0:T(1,128)}', space=vmem, size = 0x9000, scoped, tag = 'internal scratch']
  #allocation2 [shape = 'f32[64,1024]{1,0:T(8,128)}', space=vmem, size = 0x40000, scoped, tag = 'scratch operand']
  #allocation3 [shape = 'f32[8,256]{1,0:T(8,128)}', space=vmem, size = 0x2000, scoped, tag = 'scratch operand']
  #allocation4 [shape = 'f32[8,256]{1,0:T(8,128)}', space=vmem, size = 0x2000, scoped, tag = 'scratch operand']
  %s0 = inlined_call_operand.vmem [shape: bf16[64,384], index: 0, kind: input, shape index: {}]
  %s1 = inlined_call_operand.hbm [shape: bf16[384,1024], index: 1, kind: input, shape index: {}]
  %s2 = inlined_call_operand.vmem [shape: f32[1,1024], index: 2, kind: input, shape index: {}]
  %s3 = inlined_call_operand.hbm [shape: bf16[256,1024], index: 3, kind: input, shape index: {}]
  %s4 = inlined_call_operand.vmem [shape: bf16[256,180], index: 4, kind: input, shape index: {}]
  %s5 = inlined_call_operand.vmem [shape: f32[1,180], index: 5, kind: input, shape index: {}]
  %s6 = inlined_call_operand.vmem [shape: f32[8,180], index: 6, kind: output, shape index: {}]
  %s7 = sld [smem:[#allocation0]]
  $region50: #{encoder_forward.1} parent=0
    _
  %s9 = ssub.s32 1, %s7
  %s10 = scalar_select 0, %s9, %s7
  $region1: #{encoder_forward.1} parent=0
    #allocation5 [shape = 'u8[786432]{0}', space=vmem, size = 0xc0000, scoped, tag = 'input window, operand 1, single buffered']
    #allocation6 [shape = 's32[1]{0}', space=sflag, size = 0x4, scoped, tag = 'scoped memory for encoder_forward.1']
    #allocation7 [shape = 'u8[524288]{0}', space=vmem, size = 0x80000, scoped, tag = 'input window, operand 3, single buffered']
    #allocation8 [shape = 's32[1]{0}', space=sflag, size = 0x4, scoped, tag = 'scoped memory for encoder_forward.1']
    %11 = vsyncpa [#allocation6], 0
    %12 = vsyncpa [#allocation8], 0
    // Predicated region
    $region2: #{encoder_forward.1} parent=1 // pred_check
      _
    $region3: #{encoder_forward.1} parent=1 // pred_check_branch
      %14 = sbr.rel (0) target = $region5
    $region4: #{encoder_forward.1} parent=1 // pred_region
      _
    $region5: #{encoder_forward.1} parent=1 // pred_fallthru
      _
    // Predicated region
    $region6: #{encoder_forward.1} parent=1 // pred_check
      _
    $region7: #{encoder_forward.1} parent=1 // pred_check_branch
      %16 = sbr.rel (0) target = $region9
    $region8: #{encoder_forward.1} parent=1 // pred_region
      %18 = vsyncadd [#allocation6], 0
      %s19 = sshll.u32 %s1, 4
      %s20 = int_to_ptr.hbm [resolvable:$true] %s19
      %s21 = sshll.u32 [#allocation5], 4
      %s22 = int_to_ptr.vmem [resolvable:$true] %s21
      %27 = dma.hbm_to_vmem [thread:$0]  %s20, 24576, %s22, [#allocation6], 512, 512, 32
    $region9: #{encoder_forward.1} parent=1 // pred_fallthru
      _
    // Predicated region
    $region10: #{encoder_forward.1} parent=1 // pred_check
      _
    $region11: #{encoder_forward.1} parent=1 // pred_check_branch
      %29 = sbr.rel (0) target = $region13
    $region12: #{encoder_forward.1} parent=1 // pred_region
      _
    $region13: #{encoder_forward.1} parent=1 // pred_fallthru
      _
    // Predicated region
    $region14: #{encoder_forward.1} parent=1 // pred_check
      _
    $region15: #{encoder_forward.1} parent=1 // pred_check_branch
      %31 = sbr.rel (0) target = $region17
    $region16: #{encoder_forward.1} parent=1 // pred_region
      %33 = vsyncadd [#allocation8], 0
      %s34 = sshll.u32 %s3, 4
      %s35 = int_to_ptr.hbm [resolvable:$true] %s34
      %s36 = sshll.u32 [#allocation7], 4
      %s37 = int_to_ptr.vmem [resolvable:$true] %s36
      %42 = dma.hbm_to_vmem [thread:$0]  %s35, 16384, %s37, [#allocation8], 512, 512, 32
    $region17: #{encoder_forward.1} parent=1 // pred_fallthru
      _
    // Predicated region
    $region18: #{encoder_forward.1} parent=1 // pred_check
      _
    $region19: #{encoder_forward.1} parent=1 // pred_check_branch
      %44 = sbr.rel (0) target = $region21
    $region20: #{encoder_forward.1} parent=1 // pred_region
      _
    $region21: #{encoder_forward.1} parent=1 // pred_fallthru
      _
    // Predicated region
    $region22: #{encoder_forward.1} parent=1 // pred_check
      _
    $region23: #{encoder_forward.1} parent=1 // pred_check_branch
      %46 = sbr.rel (0) target = $region25
    $region24: #{encoder_forward.1} parent=1 // pred_region
      _
    $region25: #{encoder_forward.1} parent=1 // pred_fallthru
      _
    // Predicated region
    $region26: #{encoder_forward.1} parent=1 // pred_check
      _
    $region27: #{encoder_forward.1} parent=1 // pred_check_branch
      %48 = sbr.rel (0) target = $region29
    $region28: #{encoder_forward.1} parent=1 // pred_region
      %50 = dma.done [#allocation6], 24576
    $region29: #{encoder_forward.1} parent=1 // pred_fallthru
      _
    // Predicated region
    $region30: #{encoder_forward.1} parent=1 // pred_check
      _
    $region31: #{encoder_forward.1} parent=1 // pred_check_branch
      %52 = sbr.rel (0) target = $region33
    $region32: #{encoder_forward.1} parent=1 // pred_region
      %54 = dma.done [#allocation8], 16384
    $region33: #{encoder_forward.1} parent=1 // pred_fallthru
      _
    %p55 = scmp.eq.s32.totalorder 0, 0
    // Predicated region
    $region34: #{encoder_forward.1} parent=1 // pred_check
      %p56 = pneg %p55
    $region35: #{encoder_forward.1} parent=1 // pred_check_branch
      %58 = sbr.rel (%p56) target = $region37
    $region36: #{encoder_forward.1} parent=1 // pred_region
      %59 = vst [vmem:[#allocation3] sm:$0xff] 0.0
      %60 = vst [vmem:[#allocation3 + $0x8] sm:$0xff] 0.0
      %61 = vst [vmem:[#allocation4] sm:$0xff] 0.0
      %62 = vst [vmem:[#allocation4 + $0x8] sm:$0xff] 0.0
    $region37: #{encoder_forward.1} parent=1 // pred_fallthru
      _
    %v63 = vld [vmem:[%s0] sm:$0xff]
    %v64 = vld [vmem:[%s0 + $0x8] sm:$0xf]
    %v65 = vld [vmem:[%s0 + $0xc] sm:$0xff]
    %v66 = vld [vmem:[%s0 + $0x14] sm:$0xf]
    %v67 = vld [vmem:[%s0 + $0x18] sm:$0xff]
    %v68 = vld [vmem:[%s0 + $0x20] sm:$0xf]
    %v69 = vld [vmem:[%s0 + $0x24] sm:$0xff]
    %v70 = vld [vmem:[%s0 + $0x2c] sm:$0xf]
    %v71 = vld [vmem:[%s0 + $0x30] sm:$0xff]
    %v72 = vld [vmem:[%s0 + $0x38] sm:$0xf]
    %v73 = vld [vmem:[%s0 + $0x3c] sm:$0xff]
    %v74 = vld [vmem:[%s0 + $0x44] sm:$0xf]
    %v75 = vld [vmem:[%s0 + $0x48] sm:$0xff]
    %v76 = vld [vmem:[%s0 + $0x50] sm:$0xf]
    %v77 = vld [vmem:[%s0 + $0x54] sm:$0xff]
    %v78 = vld [vmem:[%s0 + $0x5c] sm:$0xf]
    %v79 = vld [vmem:[#allocation5] sm:$0xff]
    %v80 = vld [vmem:[#allocation5 + $0x8] sm:$0xff]
    %v81 = vld [vmem:[#allocation5 + $0x10] sm:$0xff]
    %v82 = vld [vmem:[#allocation5 + $0x18] sm:$0xff]
    %v83 = vld [vmem:[#allocation5 + $0x20] sm:$0xff]
    %v84 = vld [vmem:[#allocation5 + $0x28] sm:$0xff]
    %v85 = vld [vmem:[#allocation5 + $0x30] sm:$0xff]
    %v86 = vld [vmem:[#allocation5 + $0x38] sm:$0xff]
    %v87 = vld [vmem:[#allocation5 + $0x40] sm:$0xff]
    %v88 = vld [vmem:[#allocation5 + $0x48] sm:$0xff]
    %v89 = vld [vmem:[#allocation5 + $0x50] sm:$0xff]
    %v90 = vld [vmem:[#allocation5 + $0x58] sm:$0xff]
    %v91 = vld [vmem:[#allocation5 + $0x60] sm:$0xff]
    %v92 = vld [vmem:[#allocation5 + $0x68] sm:$0xff]
    %v93 = vld [vmem:[#allocation5 + $0x70] sm:$0xff]
    %v94 = vld [vmem:[#allocation5 + $0x78] sm:$0xff]
    %v95 = vld [vmem:[#allocation5 + $0x80] sm:$0xff]
    %v96 = vld [vmem:[#allocation5 + $0x88] sm:$0xff]
    %v97 = vld [vmem:[#allocation5 + $0x90] sm:$0xff]
    %v98 = vld [vmem:[#allocation5 + $0x98] sm:$0xff]
    %v99 = vld [vmem:[#allocation5 + $0xa0] sm:$0xff]
    %v100 = vld [vmem:[#allocation5 + $0xa8] sm:$0xff]
    %v101 = vld [vmem:[#allocation5 + $0xb0] sm:$0xff]
    %v102 = vld [vmem:[#allocation5 + $0xb8] sm:$0xff]
    %v103 = vld [vmem:[#allocation5 + $0xc0] sm:$0xff]
    %v104 = vld [vmem:[#allocation5 + $0xc8] sm:$0xff]
    %v105 = vld [vmem:[#allocation5 + $0xd0] sm:$0xff]
    %v106 = vld [vmem:[#allocation5 + $0xd8] sm:$0xff]
    %v107 = vld [vmem:[#allocation5 + $0xe0] sm:$0xff]
    %v108 = vld [vmem:[#allocation5 + $0xe8] sm:$0xff]
    %v109 = vld [vmem:[#allocation5 + $0xf0] sm:$0xff]
    %v110 = vld [vmem:[#allocation5 + $0xf8] sm:$0xff]
    %v111 = vld [vmem:[#allocation5 + $0x100] sm:$0xff]
    %v112 = vld [vmem:[#allocation5 + $0x108] sm:$0xff]
    %v113 = vld [vmem:[#allocation5 + $0x110] sm:$0xff]
    %v114 = vld [vmem:[#allocation5 + $0x118] sm:$0xff]
    %v115 = vld [vmem:[#allocation5 + $0x120] sm:$0xff]
    %v116 = vld [vmem:[#allocation5 + $0x128] sm:$0xff]
    %v117 = vld [vmem:[#allocation5 + $0x130] sm:$0xff]
    %v118 = vld [vmem:[#allocation5 + $0x138] sm:$0xff]
    %v119 = vld [vmem:[#allocation5 + $0x140] sm:$0xff]
    %v120 = vld [vmem:[#allocation5 + $0x148] sm:$0xff]
    %v121 = vld [vmem:[#allocation5 + $0x150] sm:$0xff]
    %v122 = vld [vmem:[#allocation5 + $0x158] sm:$0xff]
    %v123 = vld [vmem:[#allocation5 + $0x160] sm:$0xff]
    %v124 = vld [vmem:[#allocation5 + $0x168] sm:$0xff]
    %v125 = vld [vmem:[#allocation5 + $0x170] sm:$0xff]
    %v126 = vld [vmem:[#allocation5 + $0x178] sm:$0xff]
    %v127 = vld [vmem:[#allocation5 + $0x180] sm:$0xff]
    %v128 = vld [vmem:[#allocation5 + $0x188] sm:$0xff]
    %v129 = vld [vmem:[#allocation5 + $0x190] sm:$0xff]
    %v130 = vld [vmem:[#allocation5 + $0x198] sm:$0xff]
    %v131 = vld [vmem:[#allocation5 + $0x1a0] sm:$0xff]
    %v132 = vld [vmem:[#allocation5 + $0x1a8] sm:$0xff]
    %v133 = vld [vmem:[#allocation5 + $0x1b0] sm:$0xff]
    %v134 = vld [vmem:[#allocation5 + $0x1b8] sm:$0xff]
    %v135 = vld [vmem:[#allocation5 + $0x1c0] sm:$0xff]
    %v136 = vld [vmem:[#allocation5 + $0x1c8] sm:$0xff]
    %v137 = vld [vmem:[#allocation5 + $0x1d0] sm:$0xff]
    %v138 = vld [vmem:[#allocation5 + $0x1d8] sm:$0xff]
    %v139 = vld [vmem:[#allocation5 + $0x1e0] sm:$0xff]
    %v140 = vld [vmem:[#allocation5 + $0x1e8] sm:$0xff]
    %v141 = vld [vmem:[#allocation5 + $0x1f0] sm:$0xff]
    %v142 = vld [vmem:[#allocation5 + $0x1f8] sm:$0xff]
    %v143 = vld [vmem:[#allocation5 + $0x200] sm:$0xff]
    %v144 = vld [vmem:[#allocation5 + $0x208] sm:$0xff]
    %v145 = vld [vmem:[#allocation5 + $0x210] sm:$0xff]
    %v146 = vld [vmem:[#allocation5 + $0x218] sm:$0xff]
    %v147 = vld [vmem:[#allocation5 + $0x220] sm:$0xff]
    %v148 = vld [vmem:[#allocation5 + $0x228] sm:$0xff]
    %v149 = vld [vmem:[#allocation5 + $0x230] sm:$0xff]
    %v150 = vld [vmem:[#allocation5 + $0x238] sm:$0xff]
    %v151 = vld [vmem:[#allocation5 + $0x240] sm:$0xff]
    %v152 = vld [vmem:[#allocation5 + $0x248] sm:$0xff]
    %v153 = vld [vmem:[#allocation5 + $0x250] sm:$0xff]
    %v154 = vld [vmem:[#allocation5 + $0x258] sm:$0xff]
    %v155 = vld [vmem:[#allocation5 + $0x260] sm:$0xff]
    %v156 = vld [vmem:[#allocation5 + $0x268] sm:$0xff]
    %v157 = vld [vmem:[#allocation5 + $0x270] sm:$0xff]
    %v158 = vld [vmem:[#allocation5 + $0x278] sm:$0xff]
    %v159 = vld [vmem:[#allocation5 + $0x280] sm:$0xff]
    %v160 = vld [vmem:[#allocation5 + $0x288] sm:$0xff]
    %v161 = vld [vmem:[#allocation5 + $0x290] sm:$0xff]
    %v162 = vld [vmem:[#allocation5 + $0x298] sm:$0xff]
    %v163 = vld [vmem:[#allocation5 + $0x2a0] sm:$0xff]
    %v164 = vld [vmem:[#allocation5 + $0x2a8] sm:$0xff]
    %v165 = vld [vmem:[#allocation5 + $0x2b0] sm:$0xff]
    %v166 = vld [vmem:[#allocation5 + $0x2b8] sm:$0xff]
    %v167 = vld [vmem:[#allocation5 + $0x2c0] sm:$0xff]
    %v168 = vld [vmem:[#allocation5 + $0x2c8] sm:$0xff]
    %v169 = vld [vmem:[#allocation5 + $0x2d0] sm:$0xff]
    %v170 = vld [vmem:[#allocation5 + $0x2d8] sm:$0xff]
    %v171 = vld [vmem:[#allocation5 + $0x2e0] sm:$0xff]
    %v172 = vld [vmem:[#allocation5 + $0x2e8] sm:$0xff]
    %v173 = vld [vmem:[#allocation5 + $0x2f0] sm:$0xff]
    %v174 = vld [vmem:[#allocation5 + $0x2f8] sm:$0xff]
    %v175 = vld [vmem:[#allocation5 + $0x300] sm:$0xff]
    %v176 = vld [vmem:[#allocation5 + $0x308] sm:$0xff]
    %v177 = vld [vmem:[#allocation5 + $0x310] sm:$0xff]
    %v178 = vld [vmem:[#allocation5 + $0x318] sm:$0xff]
    %v179 = vld [vmem:[#allocation5 + $0x320] sm:$0xff]
    %v180 = vld [vmem:[#allocation5 + $0x328] sm:$0xff]
    %v181 = vld [vmem:[#allocation5 + $0x330] sm:$0xff]
    %v182 = vld [vmem:[#allocation5 + $0x338] sm:$0xff]
    %v183 = vld [vmem:[#allocation5 + $0x340] sm:$0xff]
    %v184 = vld [vmem:[#allocation5 + $0x348] sm:$0xff]
    %v185 = vld [vmem:[#allocation5 + $0x350] sm:$0xff]
    %v186 = vld [vmem:[#allocation5 + $0x358] sm:$0xff]
    %v187 = vld [vmem:[#allocation5 + $0x360] sm:$0xff]
    %v188 = vld [vmem:[#allocation5 + $0x368] sm:$0xff]
    %v189 = vld [vmem:[#allocation5 + $0x370] sm:$0xff]
    %v190 = vld [vmem:[#allocation5 + $0x378] sm:$0xff]
    %v191 = vld [vmem:[#allocation5 + $0x380] sm:$0xff]
    %v192 = vld [vmem:[#allocation5 + $0x388] sm:$0xff]
    %v193 = vld [vmem:[#allocation5 + $0x390] sm:$0xff]
    %v194 = vld [vmem:[#allocation5 + $0x398] sm:$0xff]
    %v195 = vld [vmem:[#allocation5 + $0x3a0] sm:$0xff]
    %v196 = vld [vmem:[#allocation5 + $0x3a8] sm:$0xff]
    %v197 = vld [vmem:[#allocation5 + $0x3b0] sm:$0xff]
    %v198 = vld [vmem:[#allocation5 + $0x3b8] sm:$0xff]
    %v199 = vld [vmem:[#allocation5 + $0x3c0] sm:$0xff]
    %v200 = vld [vmem:[#allocation5 + $0x3c8] sm:$0xff]
    %v201 = vld [vmem:[#allocation5 + $0x3d0] sm:$0xff]
    %v202 = vld [vmem:[#allocation5 + $0x3d8] sm:$0xff]
    %v203 = vld [vmem:[#allocation5 + $0x3e0] sm:$0xff]
    %v204 = vld [vmem:[#allocation5 + $0x3e8] sm:$0xff]
    %v205 = vld [vmem:[#allocation5 + $0x3f0] sm:$0xff]
    %v206 = vld [vmem:[#allocation5 + $0x3f8] sm:$0xff]
    %v207 = vld [vmem:[#allocation5 + $0x400] sm:$0xff]
    %v208 = vld [vmem:[#allocation5 + $0x408] sm:$0xff]
    %v209 = vld [vmem:[#allocation5 + $0x410] sm:$0xff]
    %v210 = vld [vmem:[#allocation5 + $0x418] sm:$0xff]
    %v211 = vld [vmem:[#allocation5 + $0x420] sm:$0xff]
    %v212 = vld [vmem:[#allocation5 + $0x428] sm:$0xff]
    %v213 = vld [vmem:[#allocation5 + $0x430] sm:$0xff]
    %v214 = vld [vmem:[#allocation5 + $0x438] sm:$0xff]
    %v215 = vld [vmem:[#allocation5 + $0x440] sm:$0xff]
    %v216 = vld [vmem:[#allocation5 + $0x448] sm:$0xff]
    %v217 = vld [vmem:[#allocation5 + $0x450] sm:$0xff]
    %v218 = vld [vmem:[#allocation5 + $0x458] sm:$0xff]
    %v219 = vld [vmem:[#allocation5 + $0x460] sm:$0xff]
    %v220 = vld [vmem:[#allocation5 + $0x468] sm:$0xff]
    %v221 = vld [vmem:[#allocation5 + $0x470] sm:$0xff]
    %v222 = vld [vmem:[#allocation5 + $0x478] sm:$0xff]
    %v223 = vld [vmem:[#allocation5 + $0x480] sm:$0xff]
    %v224 = vld [vmem:[#allocation5 + $0x488] sm:$0xff]
    %v225 = vld [vmem:[#allocation5 + $0x490] sm:$0xff]
    %v226 = vld [vmem:[#allocation5 + $0x498] sm:$0xff]
    %v227 = vld [vmem:[#allocation5 + $0x4a0] sm:$0xff]
    %v228 = vld [vmem:[#allocation5 + $0x4a8] sm:$0xff]
    %v229 = vld [vmem:[#allocation5 + $0x4b0] sm:$0xff]
    %v230 = vld [vmem:[#allocation5 + $0x4b8] sm:$0xff]
    %v231 = vld [vmem:[#allocation5 + $0x4c0] sm:$0xff]
    %v232 = vld [vmem:[#allocation5 + $0x4c8] sm:$0xff]
    %v233 = vld [vmem:[#allocation5 + $0x4d0] sm:$0xff]
    %v234 = vld [vmem:[#allocation5 + $0x4d8] sm:$0xff]
    %v235 = vld [vmem:[#allocation5 + $0x4e0] sm:$0xff]
    %v236 = vld [vmem:[#allocation5 + $0x4e8] sm:$0xff]
    %v237 = vld [vmem:[#allocation5 + $0x4f0] sm:$0xff]
    %v238 = vld [vmem:[#allocation5 + $0x4f8] sm:$0xff]
    %v239 = vld [vmem:[#allocation5 + $0x500] sm:$0xff]
    %v240 = vld [vmem:[#allocation5 + $0x508] sm:$0xff]
    %v241 = vld [vmem:[#allocation5 + $0x510] sm:$0xff]
    %v242 = vld [vmem:[#allocation5 + $0x518] sm:$0xff]
    %v243 = vld [vmem:[#allocation5 + $0x520] sm:$0xff]
    %v244 = vld [vmem:[#allocation5 + $0x528] sm:$0xff]
    %v245 = vld [vmem:[#allocation5 + $0x530] sm:$0xff]
    %v246 = vld [vmem:[#allocation5 + $0x538] sm:$0xff]
    %v247 = vld [vmem:[#allocation5 + $0x540] sm:$0xff]
    %v248 = vld [vmem:[#allocation5 + $0x548] sm:$0xff]
    %v249 = vld [vmem:[#allocation5 + $0x550] sm:$0xff]
    %v250 = vld [vmem:[#allocation5 + $0x558] sm:$0xff]
    %v251 = vld [vmem:[#allocation5 + $0x560] sm:$0xff]
    %v252 = vld [vmem:[#allocation5 + $0x568] sm:$0xff]
    %v253 = vld [vmem:[#allocation5 + $0x570] sm:$0xff]
    %v254 = vld [vmem:[#allocation5 + $0x578] sm:$0xff]
    %v255 = vld [vmem:[#allocation5 + $0x580] sm:$0xff]
    %v256 = vld [vmem:[#allocation5 + $0x588] sm:$0xff]
    %v257 = vld [vmem:[#allocation5 + $0x590] sm:$0xff]
    %v258 = vld [vmem:[#allocation5 + $0x598] sm:$0xff]
    %v259 = vld [vmem:[#allocation5 + $0x5a0] sm:$0xff]
    %v260 = vld [vmem:[#allocation5 + $0x5a8] sm:$0xff]
    %v261 = vld [vmem:[#allocation5 + $0x5b0] sm:$0xff]
    %v262 = vld [vmem:[#allocation5 + $0x5b8] sm:$0xff]
    %v263 = vld [vmem:[#allocation5 + $0x5c0] sm:$0xff]
    %v264 = vld [vmem:[#allocation5 + $0x5c8] sm:$0xff]
    %v265 = vld [vmem:[#allocation5 + $0x5d0] sm:$0xff]
    %v266 = vld [vmem:[#allocation5 + $0x5d8] sm:$0xff]
    %v267 = vld [vmem:[#allocation5 + $0x5e0] sm:$0xff]
    %v268 = vld [vmem:[#allocation5 + $0x5e8] sm:$0xff]
    %v269 = vld [vmem:[#allocation5 + $0x5f0] sm:$0xff]
    %v270 = vld [vmem:[#allocation5 + $0x5f8] sm:$0xff]
    %v271 = vld [vmem:[%s2] sm:$0xff]
    %v273 = vperm.slane %v271, 0
    %v274 = vperm.slane %v271, 1
    %v275 = vperm.slane %v271, 2
    %v276 = vperm.slane %v271, 3
    %v277 = vperm.slane %v271, 4
    %v278 = vperm.slane %v271, 5
    %v279 = vperm.slane %v271, 6
    %v280 = vperm.slane %v271, 7
    %v305 = vunpack.c.l.b16 %v63
    %v306 = vunpack.c.h.b16 %v63
    %v307 = vunpack.c.l.b16 %v64
    %v308 = vunpack.c.l.b16 %v65
    %v309 = vunpack.c.h.b16 %v65
    %v310 = vunpack.c.l.b16 %v66
    %v311 = vunpack.c.l.b16 %v67
    %v312 = vunpack.c.h.b16 %v67
    %v313 = vunpack.c.l.b16 %v68
    %v314 = vunpack.c.l.b16 %v69
    %v315 = vunpack.c.h.b16 %v69
    %v316 = vunpack.c.l.b16 %v70
    %v317 = vunpack.c.l.b16 %v71
    %v318 = vunpack.c.h.b16 %v71
    %v319 = vunpack.c.l.b16 %v72
    %v320 = vunpack.c.l.b16 %v73
    %v321 = vunpack.c.h.b16 %v73
    %v322 = vunpack.c.l.b16 %v74
    %v323 = vunpack.c.l.b16 %v75
    %v324 = vunpack.c.h.b16 %v75
    %v325 = vunpack.c.l.b16 %v76
    %v326 = vunpack.c.l.b16 %v77
    %v327 = vunpack.c.h.b16 %v77
    %v328 = vunpack.c.l.b16 %v78
    %v329 = vpack.c.b16 %v308, %v305
    %v330 = vpack.c.b16 %v309, %v306
    %v331 = vpack.c.b16 %v310, %v307
    %v332 = vpack.c.b16 %v314, %v311
    %v333 = vpack.c.b16 %v315, %v312
    %v334 = vpack.c.b16 %v316, %v313
    %v335 = vpack.c.b16 %v320, %v317
    %v336 = vpack.c.b16 %v321, %v318
    %v337 = vpack.c.b16 %v322, %v319
    %v338 = vpack.c.b16 %v326, %v323
    %v339 = vpack.c.b16 %v327, %v324
    %v340 = vpack.c.b16 %v328, %v325
    %v545 = vunpack.c.l.b16 %v79
    %v546 = vunpack.c.h.b16 %v79
    %v547 = vunpack.c.l.b16 %v80
    %v548 = vunpack.c.h.b16 %v80
    %v549 = vunpack.c.l.b16 %v81
    %v550 = vunpack.c.h.b16 %v81
    %v551 = vunpack.c.l.b16 %v82
    %v552 = vunpack.c.h.b16 %v82
    %v553 = vunpack.c.l.b16 %v83
    %v554 = vunpack.c.h.b16 %v83
    %v555 = vunpack.c.l.b16 %v84
    %v556 = vunpack.c.h.b16 %v84
    %v557 = vunpack.c.l.b16 %v85
    %v558 = vunpack.c.h.b16 %v85
    %v559 = vunpack.c.l.b16 %v86
    %v560 = vunpack.c.h.b16 %v86
    %v561 = vunpack.c.l.b16 %v87
    %v562 = vunpack.c.h.b16 %v87
    %v563 = vunpack.c.l.b16 %v88
    %v564 = vunpack.c.h.b16 %v88
    %v565 = vunpack.c.l.b16 %v89
    %v566 = vunpack.c.h.b16 %v89
    %v567 = vunpack.c.l.b16 %v90
    %v568 = vunpack.c.h.b16 %v90
    %v569 = vunpack.c.l.b16 %v91
    %v570 = vunpack.c.h.b16 %v91
    %v571 = vunpack.c.l.b16 %v92
    %v572 = vunpack.c.h.b16 %v92
    %v573 = vunpack.c.l.b16 %v93
    %v574 = vunpack.c.h.b16 %v93
    %v575 = vunpack.c.l.b16 %v94
    %v576 = vunpack.c.h.b16 %v94
    %v577 = vunpack.c.l.b16 %v95
    %v578 = vunpack.c.h.b16 %v95
    %v579 = vunpack.c.l.b16 %v96
    %v580 = vunpack.c.h.b16 %v96
    %v581 = vunpack.c.l.b16 %v97
    %v582 = vunpack.c.h.b16 %v97
    %v583 = vunpack.c.l.b16 %v98
    %v584 = vunpack.c.h.b16 %v98
    %v585 = vunpack.c.l.b16 %v99
    %v586 = vunpack.c.h.b16 %v99
    %v587 = vunpack.c.l.b16 %v100
    %v588 = vunpack.c.h.b16 %v100
    %v589 = vunpack.c.l.b16 %v101
    %v590 = vunpack.c.h.b16 %v101
    %v591 = vunpack.c.l.b16 %v102
    %v592 = vunpack.c.h.b16 %v102
    %v593 = vunpack.c.l.b16 %v103
    %v594 = vunpack.c.h.b16 %v103
    %v595 = vunpack.c.l.b16 %v104
    %v596 = vunpack.c.h.b16 %v104
    %v597 = vunpack.c.l.b16 %v105
    %v598 = vunpack.c.h.b16 %v105
    %v599 = vunpack.c.l.b16 %v106
    %v600 = vunpack.c.h.b16 %v106
    %v601 = vunpack.c.l.b16 %v107
    %v602 = vunpack.c.h.b16 %v107
    %v603 = vunpack.c.l.b16 %v108
    %v604 = vunpack.c.h.b16 %v108
    %v605 = vunpack.c.l.b16 %v109
    %v606 = vunpack.c.h.b16 %v109
    %v607 = vunpack.c.l.b16 %v110
    %v608 = vunpack.c.h.b16 %v110
    %v609 = vunpack.c.l.b16 %v111
    %v610 = vunpack.c.h.b16 %v111
    %v611 = vunpack.c.l.b16 %v112
    %v612 = vunpack.c.h.b16 %v112
    %v613 = vunpack.c.l.b16 %v113
    %v614 = vunpack.c.h.b16 %v113
    %v615 = vunpack.c.l.b16 %v114
    %v616 = vunpack.c.h.b16 %v114
    %v617 = vunpack.c.l.b16 %v115
    %v618 = vunpack.c.h.b16 %v115
    %v619 = vunpack.c.l.b16 %v116
    %v620 = vunpack.c.h.b16 %v116
    %v621 = vunpack.c.l.b16 %v117
    %v622 = vunpack.c.h.b16 %v117
    %v623 = vunpack.c.l.b16 %v118
    %v624 = vunpack.c.h.b16 %v118
    %v625 = vunpack.c.l.b16 %v119
    %v626 = vunpack.c.h.b16 %v119
    %v627 = vunpack.c.l.b16 %v120
    %v628 = vunpack.c.h.b16 %v120
    %v629 = vunpack.c.l.b16 %v121
    %v630 = vunpack.c.h.b16 %v121
    %v631 = vunpack.c.l.b16 %v122
    %v632 = vunpack.c.h.b16 %v122
    %v633 = vunpack.c.l.b16 %v123
    %v634 = vunpack.c.h.b16 %v123
    %v635 = vunpack.c.l.b16 %v124
    %v636 = vunpack.c.h.b16 %v124
    %v637 = vunpack.c.l.b16 %v125
    %v638 = vunpack.c.h.b16 %v125
    %v639 = vunpack.c.l.b16 %v126
    %v640 = vunpack.c.h.b16 %v126
    %v641 = vunpack.c.l.b16 %v127
    %v642 = vunpack.c.h.b16 %v127
    %v643 = vunpack.c.l.b16 %v128
    %v644 = vunpack.c.h.b16 %v128
    %v645 = vunpack.c.l.b16 %v129
    %v646 = vunpack.c.h.b16 %v129
    %v647 = vunpack.c.l.b16 %v130
    %v648 = vunpack.c.h.b16 %v130
    %v649 = vunpack.c.l.b16 %v131
    %v650 = vunpack.c.h.b16 %v131
    %v651 = vunpack.c.l.b16 %v132
    %v652 = vunpack.c.h.b16 %v132
    %v653 = vunpack.c.l.b16 %v133
    %v654 = vunpack.c.h.b16 %v133
    %v655 = vunpack.c.l.b16 %v134
    %v656 = vunpack.c.h.b16 %v134
    %v657 = vunpack.c.l.b16 %v135
    %v658 = vunpack.c.h.b16 %v135
    %v659 = vunpack.c.l.b16 %v136
    %v660 = vunpack.c.h.b16 %v136
    %v661 = vunpack.c.l.b16 %v137
    %v662 = vunpack.c.h.b16 %v137
    %v663 = vunpack.c.l.b16 %v138
    %v664 = vunpack.c.h.b16 %v138
    %v665 = vunpack.c.l.b16 %v139
    %v666 = vunpack.c.h.b16 %v139
    %v667 = vunpack.c.l.b16 %v140
    %v668 = vunpack.c.h.b16 %v140
    %v669 = vunpack.c.l.b16 %v141
    %v670 = vunpack.c.h.b16 %v141
    %v671 = vunpack.c.l.b16 %v142
    %v672 = vunpack.c.h.b16 %v142
    %v673 = vunpack.c.l.b16 %v143
    %v674 = vunpack.c.h.b16 %v143
    %v675 = vunpack.c.l.b16 %v144
    %v676 = vunpack.c.h.b16 %v144
    %v677 = vunpack.c.l.b16 %v145
    %v678 = vunpack.c.h.b16 %v145
    %v679 = vunpack.c.l.b16 %v146
    %v680 = vunpack.c.h.b16 %v146
    %v681 = vunpack.c.l.b16 %v147
    %v682 = vunpack.c.h.b16 %v147
    %v683 = vunpack.c.l.b16 %v148
    %v684 = vunpack.c.h.b16 %v148
    %v685 = vunpack.c.l.b16 %v149
    %v686 = vunpack.c.h.b16 %v149
    %v687 = vunpack.c.l.b16 %v150
    %v688 = vunpack.c.h.b16 %v150
    %v689 = vunpack.c.l.b16 %v151
    %v690 = vunpack.c.h.b16 %v151
    %v691 = vunpack.c.l.b16 %v152
    %v692 = vunpack.c.h.b16 %v152
    %v693 = vunpack.c.l.b16 %v153
    %v694 = vunpack.c.h.b16 %v153
    %v695 = vunpack.c.l.b16 %v154
    %v696 = vunpack.c.h.b16 %v154
    %v697 = vunpack.c.l.b16 %v155
    %v698 = vunpack.c.h.b16 %v155
    %v699 = vunpack.c.l.b16 %v156
    %v700 = vunpack.c.h.b16 %v156
    %v701 = vunpack.c.l.b16 %v157
    %v702 = vunpack.c.h.b16 %v157
    %v703 = vunpack.c.l.b16 %v158
    %v704 = vunpack.c.h.b16 %v158
    %v705 = vunpack.c.l.b16 %v159
    %v706 = vunpack.c.h.b16 %v159
    %v707 = vunpack.c.l.b16 %v160
    %v708 = vunpack.c.h.b16 %v160
    %v709 = vunpack.c.l.b16 %v161
    %v710 = vunpack.c.h.b16 %v161
    %v711 = vunpack.c.l.b16 %v162
    %v712 = vunpack.c.h.b16 %v162
    %v713 = vunpack.c.l.b16 %v163
    %v714 = vunpack.c.h.b16 %v163
    %v715 = vunpack.c.l.b16 %v164
    %v716 = vunpack.c.h.b16 %v164
    %v717 = vunpack.c.l.b16 %v165
    %v718 = vunpack.c.h.b16 %v165
    %v719 = vunpack.c.l.b16 %v166
    %v720 = vunpack.c.h.b16 %v166
    %v721 = vunpack.c.l.b16 %v167
    %v722 = vunpack.c.h.b16 %v167
    %v723 = vunpack.c.l.b16 %v168
    %v724 = vunpack.c.h.b16 %v168
    %v725 = vunpack.c.l.b16 %v169
    %v726 = vunpack.c.h.b16 %v169
    %v727 = vunpack.c.l.b16 %v170
    %v728 = vunpack.c.h.b16 %v170
    %v729 = vunpack.c.l.b16 %v171
    %v730 = vunpack.c.h.b16 %v171
    %v731 = vunpack.c.l.b16 %v172
    %v732 = vunpack.c.h.b16 %v172
    %v733 = vunpack.c.l.b16 %v173
    %v734 = vunpack.c.h.b16 %v173
    %v735 = vunpack.c.l.b16 %v174
    %v736 = vunpack.c.h.b16 %v174
    %v737 = vunpack.c.l.b16 %v175
    %v738 = vunpack.c.h.b16 %v175
    %v739 = vunpack.c.l.b16 %v176
    %v740 = vunpack.c.h.b16 %v176
    %v741 = vunpack.c.l.b16 %v177
    %v742 = vunpack.c.h.b16 %v177
    %v743 = vunpack.c.l.b16 %v178
    %v744 = vunpack.c.h.b16 %v178
    %v745 = vunpack.c.l.b16 %v179
    %v746 = vunpack.c.h.b16 %v179
    %v747 = vunpack.c.l.b16 %v180
    %v748 = vunpack.c.h.b16 %v180
    %v749 = vunpack.c.l.b16 %v181
    %v750 = vunpack.c.h.b16 %v181
    %v751 = vunpack.c.l.b16 %v182
    %v752 = vunpack.c.h.b16 %v182
    %v753 = vunpack.c.l.b16 %v183
    %v754 = vunpack.c.h.b16 %v183
    %v755 = vunpack.c.l.b16 %v184
    %v756 = vunpack.c.h.b16 %v184
    %v757 = vunpack.c.l.b16 %v185
    %v758 = vunpack.c.h.b16 %v185
    %v759 = vunpack.c.l.b16 %v186
    %v760 = vunpack.c.h.b16 %v186
    %v761 = vunpack.c.l.b16 %v187
    %v762 = vunpack.c.h.b16 %v187
    %v763 = vunpack.c.l.b16 %v188
    %v764 = vunpack.c.h.b16 %v188
    %v765 = vunpack.c.l.b16 %v189
    %v766 = vunpack.c.h.b16 %v189
    %v767 = vunpack.c.l.b16 %v190
    %v768 = vunpack.c.h.b16 %v190
    %v769 = vunpack.c.l.b16 %v191
    %v770 = vunpack.c.h.b16 %v191
    %v771 = vunpack.c.l.b16 %v192
    %v772 = vunpack.c.h.b16 %v192
    %v773 = vunpack.c.l.b16 %v193
    %v774 = vunpack.c.h.b16 %v193
    %v775 = vunpack.c.l.b16 %v194
    %v776 = vunpack.c.h.b16 %v194
    %v777 = vunpack.c.l.b16 %v195
    %v778 = vunpack.c.h.b16 %v195
    %v779 = vunpack.c.l.b16 %v196
    %v780 = vunpack.c.h.b16 %v196
    %v781 = vunpack.c.l.b16 %v197
    %v782 = vunpack.c.h.b16 %v197
    %v783 = vunpack.c.l.b16 %v198
    %v784 = vunpack.c.h.b16 %v198
    %v785 = vunpack.c.l.b16 %v199
    %v786 = vunpack.c.h.b16 %v199
    %v787 = vunpack.c.l.b16 %v200
    %v788 = vunpack.c.h.b16 %v200
    %v789 = vunpack.c.l.b16 %v201
    %v790 = vunpack.c.h.b16 %v201
    %v791 = vunpack.c.l.b16 %v202
    %v792 = vunpack.c.h.b16 %v202
    %v793 = vunpack.c.l.b16 %v203
    %v794 = vunpack.c.h.b16 %v203
    %v795 = vunpack.c.l.b16 %v204
    %v796 = vunpack.c.h.b16 %v204
    %v797 = vunpack.c.l.b16 %v205
    %v798 = vunpack.c.h.b16 %v205
    %v799 = vunpack.c.l.b16 %v206
    %v800 = vunpack.c.h.b16 %v206
    %v801 = vunpack.c.l.b16 %v207
    %v802 = vunpack.c.h.b16 %v207
    %v803 = vunpack.c.l.b16 %v208
    %v804 = vunpack.c.h.b16 %v208
    %v805 = vunpack.c.l.b16 %v209
    %v806 = vunpack.c.h.b16 %v209
    %v807 = vunpack.c.l.b16 %v210
    %v808 = vunpack.c.h.b16 %v210
    %v809 = vunpack.c.l.b16 %v211
    %v810 = vunpack.c.h.b16 %v211
    %v811 = vunpack.c.l.b16 %v212
    %v812 = vunpack.c.h.b16 %v212
    %v813 = vunpack.c.l.b16 %v213
    %v814 = vunpack.c.h.b16 %v213
    %v815 = vunpack.c.l.b16 %v214
    %v816 = vunpack.c.h.b16 %v214
    %v817 = vunpack.c.l.b16 %v215
    %v818 = vunpack.c.h.b16 %v215
    %v819 = vunpack.c.l.b16 %v216
    %v820 = vunpack.c.h.b16 %v216
    %v821 = vunpack.c.l.b16 %v217
    %v822 = vunpack.c.h.b16 %v217
    %v823 = vunpack.c.l.b16 %v218
    %v824 = vunpack.c.h.b16 %v218
    %v825 = vunpack.c.l.b16 %v219
    %v826 = vunpack.c.h.b16 %v219
    %v827 = vunpack.c.l.b16 %v220
    %v828 = vunpack.c.h.b16 %v220
    %v829 = vunpack.c.l.b16 %v221
    %v830 = vunpack.c.h.b16 %v221
    %v831 = vunpack.c.l.b16 %v222
    %v832 = vunpack.c.h.b16 %v222
    %v833 = vunpack.c.l.b16 %v223
    %v834 = vunpack.c.h.b16 %v223
    %v835 = vunpack.c.l.b16 %v224
    %v836 = vunpack.c.h.b16 %v224
    %v837 = vunpack.c.l.b16 %v225
    %v838 = vunpack.c.h.b16 %v225
    %v839 = vunpack.c.l.b16 %v226
    %v840 = vunpack.c.h.b16 %v226
    %v841 = vunpack.c.l.b16 %v227
    %v842 = vunpack.c.h.b16 %v227
    %v843 = vunpack.c.l.b16 %v228
    %v844 = vunpack.c.h.b16 %v228
    %v845 = vunpack.c.l.b16 %v229
    %v846 = vunpack.c.h.b16 %v229
    %v847 = vunpack.c.l.b16 %v230
    %v848 = vunpack.c.h.b16 %v230
    %v849 = vunpack.c.l.b16 %v231
    %v850 = vunpack.c.h.b16 %v231
    %v851 = vunpack.c.l.b16 %v232
    %v852 = vunpack.c.h.b16 %v232
    %v853 = vunpack.c.l.b16 %v233
    %v854 = vunpack.c.h.b16 %v233
    %v855 = vunpack.c.l.b16 %v234
    %v856 = vunpack.c.h.b16 %v234
    %v857 = vunpack.c.l.b16 %v235
    %v858 = vunpack.c.h.b16 %v235
    %v859 = vunpack.c.l.b16 %v236
    %v860 = vunpack.c.h.b16 %v236
    %v861 = vunpack.c.l.b16 %v237
    %v862 = vunpack.c.h.b16 %v237
    %v863 = vunpack.c.l.b16 %v238
    %v864 = vunpack.c.h.b16 %v238
    %v865 = vunpack.c.l.b16 %v239
    %v866 = vunpack.c.h.b16 %v239
    %v867 = vunpack.c.l.b16 %v240
    %v868 = vunpack.c.h.b16 %v240
    %v869 = vunpack.c.l.b16 %v241
    %v870 = vunpack.c.h.b16 %v241
    %v871 = vunpack.c.l.b16 %v242
    %v872 = vunpack.c.h.b16 %v242
    %v873 = vunpack.c.l.b16 %v243
    %v874 = vunpack.c.h.b16 %v243
    %v875 = vunpack.c.l.b16 %v244
    %v876 = vunpack.c.h.b16 %v244
    %v877 = vunpack.c.l.b16 %v245
    %v878 = vunpack.c.h.b16 %v245
    %v879 = vunpack.c.l.b16 %v246
    %v880 = vunpack.c.h.b16 %v246
    %v881 = vunpack.c.l.b16 %v247
    %v882 = vunpack.c.h.b16 %v247
    %v883 = vunpack.c.l.b16 %v248
    %v884 = vunpack.c.h.b16 %v248
    %v885 = vunpack.c.l.b16 %v249
    %v886 = vunpack.c.h.b16 %v249
    %v887 = vunpack.c.l.b16 %v250
    %v888 = vunpack.c.h.b16 %v250
    %v889 = vunpack.c.l.b16 %v251
    %v890 = vunpack.c.h.b16 %v251
    %v891 = vunpack.c.l.b16 %v252
    %v892 = vunpack.c.h.b16 %v252
    %v893 = vunpack.c.l.b16 %v253
    %v894 = vunpack.c.h.b16 %v253
    %v895 = vunpack.c.l.b16 %v254
    %v896 = vunpack.c.h.b16 %v254
    %v897 = vunpack.c.l.b16 %v255
    %v898 = vunpack.c.h.b16 %v255
    %v899 = vunpack.c.l.b16 %v256
    %v900 = vunpack.c.h.b16 %v256
    %v901 = vunpack.c.l.b16 %v257
    %v902 = vunpack.c.h.b16 %v257
    %v903 = vunpack.c.l.b16 %v258
    %v904 = vunpack.c.h.b16 %v258
    %v905 = vunpack.c.l.b16 %v259
    %v906 = vunpack.c.h.b16 %v259
    %v907 = vunpack.c.l.b16 %v260
    %v908 = vunpack.c.h.b16 %v260
    %v909 = vunpack.c.l.b16 %v261
    %v910 = vunpack.c.h.b16 %v261
    %v911 = vunpack.c.l.b16 %v262
    %v912 = vunpack.c.h.b16 %v262
    %v913 = vunpack.c.l.b16 %v263
    %v914 = vunpack.c.h.b16 %v263
    %v915 = vunpack.c.l.b16 %v264
    %v916 = vunpack.c.h.b16 %v264
    %v917 = vunpack.c.l.b16 %v265
    %v918 = vunpack.c.h.b16 %v265
    %v919 = vunpack.c.l.b16 %v266
    %v920 = vunpack.c.h.b16 %v266
    %v921 = vunpack.c.l.b16 %v267
    %v922 = vunpack.c.h.b16 %v267
    %v923 = vunpack.c.l.b16 %v268
    %v924 = vunpack.c.h.b16 %v268
    %v925 = vunpack.c.l.b16 %v269
    %v926 = vunpack.c.h.b16 %v269
    %v927 = vunpack.c.l.b16 %v270
    %v928 = vunpack.c.h.b16 %v270
    %v929 = vpack.c.b16 %v553, %v545
    %v930 = vpack.c.b16 %v554, %v546
    %v931 = vpack.c.b16 %v555, %v547
    %v932 = vpack.c.b16 %v556, %v548
    %v933 = vpack.c.b16 %v557, %v549
    %v934 = vpack.c.b16 %v558, %v550
    %v935 = vpack.c.b16 %v559, %v551
    %v936 = vpack.c.b16 %v560, %v552
    %v937 = vpack.c.b16 %v569, %v561
    %v938 = vpack.c.b16 %v570, %v562
    %v939 = vpack.c.b16 %v571, %v563
    %v940 = vpack.c.b16 %v572, %v564
    %v941 = vpack.c.b16 %v573, %v565
    %v942 = vpack.c.b16 %v574, %v566
    %v943 = vpack.c.b16 %v575, %v567
    %v944 = vpack.c.b16 %v576, %v568
    %v945 = vpack.c.b16 %v585, %v577
    %v946 = vpack.c.b16 %v586, %v578
    %v947 = vpack.c.b16 %v587, %v579
    %v948 = vpack.c.b16 %v588, %v580
    %v949 = vpack.c.b16 %v589, %v581
    %v950 = vpack.c.b16 %v590, %v582
    %v951 = vpack.c.b16 %v591, %v583
    %v952 = vpack.c.b16 %v592, %v584
    %v953 = vpack.c.b16 %v601, %v593
    %v954 = vpack.c.b16 %v602, %v594
    %v955 = vpack.c.b16 %v603, %v595
    %v956 = vpack.c.b16 %v604, %v596
    %v957 = vpack.c.b16 %v605, %v597
    %v958 = vpack.c.b16 %v606, %v598
    %v959 = vpack.c.b16 %v607, %v599
    %v960 = vpack.c.b16 %v608, %v600
    %v961 = vpack.c.b16 %v617, %v609
    %v962 = vpack.c.b16 %v618, %v610
    %v963 = vpack.c.b16 %v619, %v611
    %v964 = vpack.c.b16 %v620, %v612
    %v965 = vpack.c.b16 %v621, %v613
    %v966 = vpack.c.b16 %v622, %v614
    %v967 = vpack.c.b16 %v623, %v615
    %v968 = vpack.c.b16 %v624, %v616
    %v969 = vpack.c.b16 %v633, %v625
    %v970 = vpack.c.b16 %v634, %v626
    %v971 = vpack.c.b16 %v635, %v627
    %v972 = vpack.c.b16 %v636, %v628
    %v973 = vpack.c.b16 %v637, %v629
    %v974 = vpack.c.b16 %v638, %v630
    %v975 = vpack.c.b16 %v639, %v631
    %v976 = vpack.c.b16 %v640, %v632
    %v977 = vpack.c.b16 %v649, %v641
    %v978 = vpack.c.b16 %v650, %v642
    %v979 = vpack.c.b16 %v651, %v643
    %v980 = vpack.c.b16 %v652, %v644
    %v981 = vpack.c.b16 %v653, %v645
    %v982 = vpack.c.b16 %v654, %v646
    %v983 = vpack.c.b16 %v655, %v647
    %v984 = vpack.c.b16 %v656, %v648
    %v985 = vpack.c.b16 %v665, %v657
    %v986 = vpack.c.b16 %v666, %v658
    %v987 = vpack.c.b16 %v667, %v659
    %v988 = vpack.c.b16 %v668, %v660
    %v989 = vpack.c.b16 %v669, %v661
    %v990 = vpack.c.b16 %v670, %v662
    %v991 = vpack.c.b16 %v671, %v663
    %v992 = vpack.c.b16 %v672, %v664
    %v993 = vpack.c.b16 %v681, %v673
    %v994 = vpack.c.b16 %v682, %v674
    %v995 = vpack.c.b16 %v683, %v675
    %v996 = vpack.c.b16 %v684, %v676
    %v997 = vpack.c.b16 %v685, %v677
    %v998 = vpack.c.b16 %v686, %v678
    %v999 = vpack.c.b16 %v687, %v679
    %v1000 = vpack.c.b16 %v688, %v680
    %v1001 = vpack.c.b16 %v697, %v689
    %v1002 = vpack.c.b16 %v698, %v690
    %v1003 = vpack.c.b16 %v699, %v691
    %v1004 = vpack.c.b16 %v700, %v692
    %v1005 = vpack.c.b16 %v701, %v693
    %v1006 = vpack.c.b16 %v702, %v694
    %v1007 = vpack.c.b16 %v703, %v695
    %v1008 = vpack.c.b16 %v704, %v696
    %v1009 = vpack.c.b16 %v713, %v705
    %v1010 = vpack.c.b16 %v714, %v706
    %v1011 = vpack.c.b16 %v715, %v707
    %v1012 = vpack.c.b16 %v716, %v708
    %v1013 = vpack.c.b16 %v717, %v709
    %v1014 = vpack.c.b16 %v718, %v710
    %v1015 = vpack.c.b16 %v719, %v711
    %v1016 = vpack.c.b16 %v720, %v712
    %v1017 = vpack.c.b16 %v729, %v721
    %v1018 = vpack.c.b16 %v730, %v722
    %v1019 = vpack.c.b16 %v731, %v723
    %v1020 = vpack.c.b16 %v732, %v724
    %v1021 = vpack.c.b16 %v733, %v725
    %v1022 = vpack.c.b16 %v734, %v726
    %v1023 = vpack.c.b16 %v735, %v727
    %v1024 = vpack.c.b16 %v736, %v728
    %v1025 = vpack.c.b16 %v745, %v737
    %v1026 = vpack.c.b16 %v746, %v738
    %v1027 = vpack.c.b16 %v747, %v739
    %v1028 = vpack.c.b16 %v748, %v740
    %v1029 = vpack.c.b16 %v749, %v741
    %v1030 = vpack.c.b16 %v750, %v742
    %v1031 = vpack.c.b16 %v751, %v743
    %v1032 = vpack.c.b16 %v752, %v744
    %v1033 = vpack.c.b16 %v761, %v753
    %v1034 = vpack.c.b16 %v762, %v754
    %v1035 = vpack.c.b16 %v763, %v755
    %v1036 = vpack.c.b16 %v764, %v756
    %v1037 = vpack.c.b16 %v765, %v757
    %v1038 = vpack.c.b16 %v766, %v758
    %v1039 = vpack.c.b16 %v767, %v759
    %v1040 = vpack.c.b16 %v768, %v760
    %v1041 = vpack.c.b16 %v777, %v769
    %v1042 = vpack.c.b16 %v778, %v770
    %v1043 = vpack.c.b16 %v779, %v771
    %v1044 = vpack.c.b16 %v780, %v772
    %v1045 = vpack.c.b16 %v781, %v773
    %v1046 = vpack.c.b16 %v782, %v774
    %v1047 = vpack.c.b16 %v783, %v775
    %v1048 = vpack.c.b16 %v784, %v776
    %v1049 = vpack.c.b16 %v793, %v785
    %v1050 = vpack.c.b16 %v794, %v786
    %v1051 = vpack.c.b16 %v795, %v787
    %v1052 = vpack.c.b16 %v796, %v788
    %v1053 = vpack.c.b16 %v797, %v789
    %v1054 = vpack.c.b16 %v798, %v790
    %v1055 = vpack.c.b16 %v799, %v791
    %v1056 = vpack.c.b16 %v800, %v792
    %v1057 = vpack.c.b16 %v809, %v801
    %v1058 = vpack.c.b16 %v810, %v802
    %v1059 = vpack.c.b16 %v811, %v803
    %v1060 = vpack.c.b16 %v812, %v804
    %v1061 = vpack.c.b16 %v813, %v805
    %v1062 = vpack.c.b16 %v814, %v806
    %v1063 = vpack.c.b16 %v815, %v807
    %v1064 = vpack.c.b16 %v816, %v808
    %v1065 = vpack.c.b16 %v825, %v817
    %v1066 = vpack.c.b16 %v826, %v818
    %v1067 = vpack.c.b16 %v827, %v819
    %v1068 = vpack.c.b16 %v828, %v820
    %v1069 = vpack.c.b16 %v829, %v821
    %v1070 = vpack.c.b16 %v830, %v822
    %v1071 = vpack.c.b16 %v831, %v823
    %v1072 = vpack.c.b16 %v832, %v824
    %v1073 = vpack.c.b16 %v841, %v833
    %v1074 = vpack.c.b16 %v842, %v834
    %v1075 = vpack.c.b16 %v843, %v835
    %v1076 = vpack.c.b16 %v844, %v836
    %v1077 = vpack.c.b16 %v845, %v837
    %v1078 = vpack.c.b16 %v846, %v838
    %v1079 = vpack.c.b16 %v847, %v839
    %v1080 = vpack.c.b16 %v848, %v840
    %v1081 = vpack.c.b16 %v857, %v849
    %v1082 = vpack.c.b16 %v858, %v850
    %v1083 = vpack.c.b16 %v859, %v851
    %v1084 = vpack.c.b16 %v860, %v852
    %v1085 = vpack.c.b16 %v861, %v853
    %v1086 = vpack.c.b16 %v862, %v854
    %v1087 = vpack.c.b16 %v863, %v855
    %v1088 = vpack.c.b16 %v864, %v856
    %v1089 = vpack.c.b16 %v873, %v865
    %v1090 = vpack.c.b16 %v874, %v866
    %v1091 = vpack.c.b16 %v875, %v867
    %v1092 = vpack.c.b16 %v876, %v868
    %v1093 = vpack.c.b16 %v877, %v869
    %v1094 = vpack.c.b16 %v878, %v870
    %v1095 = vpack.c.b16 %v879, %v871
    %v1096 = vpack.c.b16 %v880, %v872
    %v1097 = vpack.c.b16 %v889, %v881
    %v1098 = vpack.c.b16 %v890, %v882
    %v1099 = vpack.c.b16 %v891, %v883
    %v1100 = vpack.c.b16 %v892, %v884
    %v1101 = vpack.c.b16 %v893, %v885
    %v1102 = vpack.c.b16 %v894, %v886
    %v1103 = vpack.c.b16 %v895, %v887
    %v1104 = vpack.c.b16 %v896, %v888
    %v1105 = vpack.c.b16 %v905, %v897
    %v1106 = vpack.c.b16 %v906, %v898
    %v1107 = vpack.c.b16 %v907, %v899
    %v1108 = vpack.c.b16 %v908, %v900
    %v1109 = vpack.c.b16 %v909, %v901
    %v1110 = vpack.c.b16 %v910, %v902
    %v1111 = vpack.c.b16 %v911, %v903
    %v1112 = vpack.c.b16 %v912, %v904
    %v1113 = vpack.c.b16 %v921, %v913
    %v1114 = vpack.c.b16 %v922, %v914
    %v1115 = vpack.c.b16 %v923, %v915
    %v1116 = vpack.c.b16 %v924, %v916
    %v1117 = vpack.c.b16 %v925, %v917
    %v1118 = vpack.c.b16 %v926, %v918
    %v1119 = vpack.c.b16 %v927, %v919
    %v1120 = vpack.c.b16 %v928, %v920
    %1313 = vmatpush.bf16.msra.mxu0 %v985
    %1314 = vmatpush.bf16.msra.mxu0 %v977
    %1315 = vmatpush.bf16.msra.mxu0 %v969
    %1316 = vmatpush.bf16.msra.mxu0 %v961
    %1317 = vmatpush.bf16.msra.mxu0 %v953
    %1318 = vmatpush.bf16.msra.mxu0 %v945
    %1319 = vmatpush.bf16.msra.mxu0 %v937
    %1320 = vmatpush.bf16.msra.mxu0 %v929
    %1321 = vmatmul.bf16.gmra.mxu0 %v329
    %v1322 = vpop.f32.mrf.mxu0
    %v1323 = vadd.f32 %v273, %v1322
    %v1324 = vpop.f32.mrf.mxu0
    %v1325 = vadd.f32 %v273, %v1324
    %1326 = vmatmul.bf16.gmra.mxu0 %v332
    %v1327 = vpop.f32.mrf.mxu0
    %v1328 = vadd.f32 %v273, %v1327
    %v1329 = vpop.f32.mrf.mxu0
    %v1330 = vadd.f32 %v273, %v1329
    %1331 = vmatmul.bf16.gmra.mxu0 %v335
    %v1332 = vpop.f32.mrf.mxu0
    %v1333 = vadd.f32 %v273, %v1332
    %v1334 = vpop.f32.mrf.mxu0
    %v1335 = vadd.f32 %v273, %v1334
    %1336 = vmatmul.bf16.gmra.mxu0 %v338
    %v1337 = vpop.f32.mrf.mxu0
    %v1338 = vadd.f32 %v273, %v1337
    %v1339 = vpop.f32.mrf.mxu0
    %v1340 = vadd.f32 %v273, %v1339
    %1341 = vdwg.mxu0
    %1342 = vmatpush.bf16.msra.mxu0 %v1049
    %1343 = vmatpush.bf16.msra.mxu0 %v1041
    %1344 = vmatpush.bf16.msra.mxu0 %v1033
    %1345 = vmatpush.bf16.msra.mxu0 %v1025
    %1346 = vmatpush.bf16.msra.mxu0 %v1017
    %1347 = vmatpush.bf16.msra.mxu0 %v1009
    %1348 = vmatpush.bf16.msra.mxu0 %v1001
    %1349 = vmatpush.bf16.msra.mxu0 %v993
    %1350 = vmatmul.bf16.gmra.mxu0 %v330
    %v1351 = vpop.f32.mrf.mxu0
    %v1352 = vadd.f32 %v1323, %v1351
    %v1353 = vpop.f32.mrf.mxu0
    %v1354 = vadd.f32 %v1325, %v1353
    %1355 = vmatmul.bf16.gmra.mxu0 %v333
    %v1356 = vpop.f32.mrf.mxu0
    %v1357 = vadd.f32 %v1328, %v1356
    %v1358 = vpop.f32.mrf.mxu0
    %v1359 = vadd.f32 %v1330, %v1358
    %1360 = vmatmul.bf16.gmra.mxu0 %v336
    %v1361 = vpop.f32.mrf.mxu0
    %v1362 = vadd.f32 %v1333, %v1361
    %v1363 = vpop.f32.mrf.mxu0
    %v1364 = vadd.f32 %v1335, %v1363
    %1365 = vmatmul.bf16.gmra.mxu0 %v339
    %v1366 = vpop.f32.mrf.mxu0
    %v1367 = vadd.f32 %v1338, %v1366
    %v1368 = vpop.f32.mrf.mxu0
    %v1369 = vadd.f32 %v1340, %v1368
    %1370 = vdwg.mxu0
    %1371 = vmatpush.bf16.msra.mxu0 %v1113
    %1372 = vmatpush.bf16.msra.mxu0 %v1105
    %1373 = vmatpush.bf16.msra.mxu0 %v1097
    %1374 = vmatpush.bf16.msra.mxu0 %v1089
    %1375 = vmatpush.bf16.msra.mxu0 %v1081
    %1376 = vmatpush.bf16.msra.mxu0 %v1073
    %1377 = vmatpush.bf16.msra.mxu0 %v1065
    %1378 = vmatpush.bf16.msra.mxu0 %v1057
    %1379 = vmatmul.bf16.gmra.mxu0 %v331
    %v1380 = vpop.f32.mrf.mxu0
    %v1381 = vadd.f32 %v1352, %v1380
    %v1382 = vpop.f32.mrf.mxu0
    %v1383 = vadd.f32 %v1354, %v1382
    %1384 = vmatmul.bf16.gmra.mxu0 %v334
    %v1385 = vpop.f32.mrf.mxu0
    %v1386 = vadd.f32 %v1357, %v1385
    %v1387 = vpop.f32.mrf.mxu0
    %v1388 = vadd.f32 %v1359, %v1387
    %1389 = vmatmul.bf16.gmra.mxu0 %v337
    %v1390 = vpop.f32.mrf.mxu0
    %v1391 = vadd.f32 %v1362, %v1390
    %v1392 = vpop.f32.mrf.mxu0
    %v1393 = vadd.f32 %v1364, %v1392
    %1394 = vmatmul.bf16.gmra.mxu0 %v340
    %v1395 = vpop.f32.mrf.mxu0
    %v1396 = vadd.f32 %v1367, %v1395
    %v1397 = vpop.f32.mrf.mxu0
    %v1398 = vadd.f32 %v1369, %v1397
    %1399 = vdwg.mxu0
    %1400 = vmatpush.bf16.msra.mxu0 %v986
    %1401 = vmatpush.bf16.msra.mxu0 %v978
    %1402 = vmatpush.bf16.msra.mxu0 %v970
    %1403 = vmatpush.bf16.msra.mxu0 %v962
    %1404 = vmatpush.bf16.msra.mxu0 %v954
    %1405 = vmatpush.bf16.msra.mxu0 %v946
    %1406 = vmatpush.bf16.msra.mxu0 %v938
    %1407 = vmatpush.bf16.msra.mxu0 %v930
    %1408 = vmatmul.bf16.gmra.mxu0 %v329
    %v1409 = vpop.f32.mrf.mxu0
    %v1410 = vadd.f32 %v274, %v1409
    %v1411 = vpop.f32.mrf.mxu0
    %v1412 = vadd.f32 %v274, %v1411
    %1413 = vmatmul.bf16.gmra.mxu0 %v332
    %v1414 = vpop.f32.mrf.mxu0
    %v1415 = vadd.f32 %v274, %v1414
    %v1416 = vpop.f32.mrf.mxu0
    %v1417 = vadd.f32 %v274, %v1416
    %1418 = vmatmul.bf16.gmra.mxu0 %v335
    %v1419 = vpop.f32.mrf.mxu0
    %v1420 = vadd.f32 %v274, %v1419
    %v1421 = vpop.f32.mrf.mxu0
    %v1422 = vadd.f32 %v274, %v1421
    %1423 = vmatmul.bf16.gmra.mxu0 %v338
    %v1424 = vpop.f32.mrf.mxu0
    %v1425 = vadd.f32 %v274, %v1424
    %v1426 = vpop.f32.mrf.mxu0
    %v1427 = vadd.f32 %v274, %v1426
    %1428 = vdwg.mxu0
    %1429 = vmatpush.bf16.msra.mxu0 %v1050
    %1430 = vmatpush.bf16.msra.mxu0 %v1042
    %1431 = vmatpush.bf16.msra.mxu0 %v1034
    %1432 = vmatpush.bf16.msra.mxu0 %v1026
    %1433 = vmatpush.bf16.msra.mxu0 %v1018
    %1434 = vmatpush.bf16.msra.mxu0 %v1010
    %1435 = vmatpush.bf16.msra.mxu0 %v1002
    %1436 = vmatpush.bf16.msra.mxu0 %v994
    %1437 = vmatmul.bf16.gmra.mxu0 %v330
    %v1438 = vpop.f32.mrf.mxu0
    %v1439 = vadd.f32 %v1410, %v1438
    %v1440 = vpop.f32.mrf.mxu0
    %v1441 = vadd.f32 %v1412, %v1440
    %1442 = vmatmul.bf16.gmra.mxu0 %v333
    %v1443 = vpop.f32.mrf.mxu0
    %v1444 = vadd.f32 %v1415, %v1443
    %v1445 = vpop.f32.mrf.mxu0
    %v1446 = vadd.f32 %v1417, %v1445
    %1447 = vmatmul.bf16.gmra.mxu0 %v336
    %v1448 = vpop.f32.mrf.mxu0
    %v1449 = vadd.f32 %v1420, %v1448
    %v1450 = vpop.f32.mrf.mxu0
    %v1451 = vadd.f32 %v1422, %v1450
    %1452 = vmatmul.bf16.gmra.mxu0 %v339
    %v1453 = vpop.f32.mrf.mxu0
    %v1454 = vadd.f32 %v1425, %v1453
    %v1455 = vpop.f32.mrf.mxu0
    %v1456 = vadd.f32 %v1427, %v1455
    %1457 = vdwg.mxu0
    %1458 = vmatpush.bf16.msra.mxu0 %v1114
    %1459 = vmatpush.bf16.msra.mxu0 %v1106
    %1460 = vmatpush.bf16.msra.mxu0 %v1098
    %1461 = vmatpush.bf16.msra.mxu0 %v1090
    %1462 = vmatpush.bf16.msra.mxu0 %v1082
    %1463 = vmatpush.bf16.msra.mxu0 %v1074
    %1464 = vmatpush.bf16.msra.mxu0 %v1066
    %1465 = vmatpush.bf16.msra.mxu0 %v1058
    %1466 = vmatmul.bf16.gmra.mxu0 %v331
    %v1467 = vpop.f32.mrf.mxu0
    %v1468 = vadd.f32 %v1439, %v1467
    %v1469 = vpop.f32.mrf.mxu0
    %v1470 = vadd.f32 %v1441, %v1469
    %1471 = vmatmul.bf16.gmra.mxu0 %v334
    %v1472 = vpop.f32.mrf.mxu0
    %v1473 = vadd.f32 %v1444, %v1472
    %v1474 = vpop.f32.mrf.mxu0
    %v1475 = vadd.f32 %v1446, %v1474
    %1476 = vmatmul.bf16.gmra.mxu0 %v337
    %v1477 = vpop.f32.mrf.mxu0
    %v1478 = vadd.f32 %v1449, %v1477
    %v1479 = vpop.f32.mrf.mxu0
    %v1480 = vadd.f32 %v1451, %v1479
    %1481 = vmatmul.bf16.gmra.mxu0 %v340
    %v1482 = vpop.f32.mrf.mxu0
    %v1483 = vadd.f32 %v1454, %v1482
    %v1484 = vpop.f32.mrf.mxu0
    %v1485 = vadd.f32 %v1456, %v1484
    %1486 = vdwg.mxu0
    %1487 = vmatpush.bf16.msra.mxu0 %v987
    %1488 = vmatpush.bf16.msra.mxu0 %v979
    %1489 = vmatpush.bf16.msra.mxu0 %v971
    %1490 = vmatpush.bf16.msra.mxu0 %v963
    %1491 = vmatpush.bf16.msra.mxu0 %v955
    %1492 = vmatpush.bf16.msra.mxu0 %v947
    %1493 = vmatpush.bf16.msra.mxu0 %v939
    %1494 = vmatpush.bf16.msra.mxu0 %v931
    %1495 = vmatmul.bf16.gmra.mxu0 %v329
    %v1496 = vpop.f32.mrf.mxu0
    %v1497 = vadd.f32 %v275, %v1496
    %v1498 = vpop.f32.mrf.mxu0
    %v1499 = vadd.f32 %v275, %v1498
    %1500 = vmatmul.bf16.gmra.mxu0 %v332
    %v1501 = vpop.f32.mrf.mxu0
    %v1502 = vadd.f32 %v275, %v1501
    %v1503 = vpop.f32.mrf.mxu0
    %v1504 = vadd.f32 %v275, %v1503
    %1505 = vmatmul.bf16.gmra.mxu0 %v335
    %v1506 = vpop.f32.mrf.mxu0
    %v1507 = vadd.f32 %v275, %v1506
    %v1508 = vpop.f32.mrf.mxu0
    %v1509 = vadd.f32 %v275, %v1508
    %1510 = vmatmul.bf16.gmra.mxu0 %v338
    %v1511 = vpop.f32.mrf.mxu0
    %v1512 = vadd.f32 %v275, %v1511
    %v1513 = vpop.f32.mrf.mxu0
    %v1514 = vadd.f32 %v275, %v1513
    %1515 = vdwg.mxu0
    %1516 = vmatpush.bf16.msra.mxu0 %v1051
    %1517 = vmatpush.bf16.msra.mxu0 %v1043
    %1518 = vmatpush.bf16.msra.mxu0 %v1035
    %1519 = vmatpush.bf16.msra.mxu0 %v1027
    %1520 = vmatpush.bf16.msra.mxu0 %v1019
    %1521 = vmatpush.bf16.msra.mxu0 %v1011
    %1522 = vmatpush.bf16.msra.mxu0 %v1003
    %1523 = vmatpush.bf16.msra.mxu0 %v995
    %1524 = vmatmul.bf16.gmra.mxu0 %v330
    %v1525 = vpop.f32.mrf.mxu0
    %v1526 = vadd.f32 %v1497, %v1525
    %v1527 = vpop.f32.mrf.mxu0
    %v1528 = vadd.f32 %v1499, %v1527
    %1529 = vmatmul.bf16.gmra.mxu0 %v333
    %v1530 = vpop.f32.mrf.mxu0
    %v1531 = vadd.f32 %v1502, %v1530
    %v1532 = vpop.f32.mrf.mxu0
    %v1533 = vadd.f32 %v1504, %v1532
    %1534 = vmatmul.bf16.gmra.mxu0 %v336
    %v1535 = vpop.f32.mrf.mxu0
    %v1536 = vadd.f32 %v1507, %v1535
    %v1537 = vpop.f32.mrf.mxu0
    %v1538 = vadd.f32 %v1509, %v1537
    %1539 = vmatmul.bf16.gmra.mxu0 %v339
    %v1540 = vpop.f32.mrf.mxu0
    %v1541 = vadd.f32 %v1512, %v1540
    %v1542 = vpop.f32.mrf.mxu0
    %v1543 = vadd.f32 %v1514, %v1542
    %1544 = vdwg.mxu0
    %1545 = vmatpush.bf16.msra.mxu0 %v1115
    %1546 = vmatpush.bf16.msra.mxu0 %v1107
    %1547 = vmatpush.bf16.msra.mxu0 %v1099
    %1548 = vmatpush.bf16.msra.mxu0 %v1091
    %1549 = vmatpush.bf16.msra.mxu0 %v1083
    %1550 = vmatpush.bf16.msra.mxu0 %v1075
    %1551 = vmatpush.bf16.msra.mxu0 %v1067
    %1552 = vmatpush.bf16.msra.mxu0 %v1059
    %1553 = vmatmul.bf16.gmra.mxu0 %v331
    %v1554 = vpop.f32.mrf.mxu0
    %v1555 = vadd.f32 %v1526, %v1554
    %v1556 = vpop.f32.mrf.mxu0
    %v1557 = vadd.f32 %v1528, %v1556
    %1558 = vmatmul.bf16.gmra.mxu0 %v334
    %v1559 = vpop.f32.mrf.mxu0
    %v1560 = vadd.f32 %v1531, %v1559
    %v1561 = vpop.f32.mrf.mxu0
    %v1562 = vadd.f32 %v1533, %v1561
    %1563 = vmatmul.bf16.gmra.mxu0 %v337
    %v1564 = vpop.f32.mrf.mxu0
    %v1565 = vadd.f32 %v1536, %v1564
    %v1566 = vpop.f32.mrf.mxu0
    %v1567 = vadd.f32 %v1538, %v1566
    %1568 = vmatmul.bf16.gmra.mxu0 %v340
    %v1569 = vpop.f32.mrf.mxu0
    %v1570 = vadd.f32 %v1541, %v1569
    %v1571 = vpop.f32.mrf.mxu0
    %v1572 = vadd.f32 %v1543, %v1571
    %1573 = vdwg.mxu0
    %1574 = vmatpush.bf16.msra.mxu0 %v988
    %1575 = vmatpush.bf16.msra.mxu0 %v980
    %1576 = vmatpush.bf16.msra.mxu0 %v972
    %1577 = vmatpush.bf16.msra.mxu0 %v964
    %1578 = vmatpush.bf16.msra.mxu0 %v956
    %1579 = vmatpush.bf16.msra.mxu0 %v948
    %1580 = vmatpush.bf16.msra.mxu0 %v940
    %1581 = vmatpush.bf16.msra.mxu0 %v932
    %1582 = vmatmul.bf16.gmra.mxu0 %v329
    %v1583 = vpop.f32.mrf.mxu0
    %v1584 = vadd.f32 %v276, %v1583
    %v1585 = vpop.f32.mrf.mxu0
    %v1586 = vadd.f32 %v276, %v1585
    %1587 = vmatmul.bf16.gmra.mxu0 %v332
    %v1588 = vpop.f32.mrf.mxu0
    %v1589 = vadd.f32 %v276, %v1588
    %v1590 = vpop.f32.mrf.mxu0
    %v1591 = vadd.f32 %v276, %v1590
    %1592 = vmatmul.bf16.gmra.mxu0 %v335
    %v1593 = vpop.f32.mrf.mxu0
    %v1594 = vadd.f32 %v276, %v1593
    %v1595 = vpop.f32.mrf.mxu0
    %v1596 = vadd.f32 %v276, %v1595
    %1597 = vmatmul.bf16.gmra.mxu0 %v338
    %v1598 = vpop.f32.mrf.mxu0
    %v1599 = vadd.f32 %v276, %v1598
    %v1600 = vpop.f32.mrf.mxu0
    %v1601 = vadd.f32 %v276, %v1600
    %1602 = vdwg.mxu0
    %1603 = vmatpush.bf16.msra.mxu0 %v1052
    %1604 = vmatpush.bf16.msra.mxu0 %v1044
    %1605 = vmatpush.bf16.msra.mxu0 %v1036
    %1606 = vmatpush.bf16.msra.mxu0 %v1028
    %1607 = vmatpush.bf16.msra.mxu0 %v1020
    %1608 = vmatpush.bf16.msra.mxu0 %v1012
    %1609 = vmatpush.bf16.msra.mxu0 %v1004
    %1610 = vmatpush.bf16.msra.mxu0 %v996
    %1611 = vmatmul.bf16.gmra.mxu0 %v330
    %v1612 = vpop.f32.mrf.mxu0
    %v1613 = vadd.f32 %v1584, %v1612
    %v1614 = vpop.f32.mrf.mxu0
    %v1615 = vadd.f32 %v1586, %v1614
    %1616 = vmatmul.bf16.gmra.mxu0 %v333
    %v1617 = vpop.f32.mrf.mxu0
    %v1618 = vadd.f32 %v1589, %v1617
    %v1619 = vpop.f32.mrf.mxu0
    %v1620 = vadd.f32 %v1591, %v1619
    %1621 = vmatmul.bf16.gmra.mxu0 %v336
    %v1622 = vpop.f32.mrf.mxu0
    %v1623 = vadd.f32 %v1594, %v1622
    %v1624 = vpop.f32.mrf.mxu0
    %v1625 = vadd.f32 %v1596, %v1624
    %1626 = vmatmul.bf16.gmra.mxu0 %v339
    %v1627 = vpop.f32.mrf.mxu0
    %v1628 = vadd.f32 %v1599, %v1627
    %v1629 = vpop.f32.mrf.mxu0
    %v1630 = vadd.f32 %v1601, %v1629
    %1631 = vdwg.mxu0
    %1632 = vmatpush.bf16.msra.mxu0 %v1116
    %1633 = vmatpush.bf16.msra.mxu0 %v1108
    %1634 = vmatpush.bf16.msra.mxu0 %v1100
    %1635 = vmatpush.bf16.msra.mxu0 %v1092
    %1636 = vmatpush.bf16.msra.mxu0 %v1084
    %1637 = vmatpush.bf16.msra.mxu0 %v1076
    %1638 = vmatpush.bf16.msra.mxu0 %v1068
    %1639 = vmatpush.bf16.msra.mxu0 %v1060
    %1640 = vmatmul.bf16.gmra.mxu0 %v331
    %v1641 = vpop.f32.mrf.mxu0
    %v1642 = vadd.f32 %v1613, %v1641
    %v1643 = vpop.f32.mrf.mxu0
    %v1644 = vadd.f32 %v1615, %v1643
    %1645 = vmatmul.bf16.gmra.mxu0 %v334
    %v1646 = vpop.f32.mrf.mxu0
    %v1647 = vadd.f32 %v1618, %v1646
    %v1648 = vpop.f32.mrf.mxu0
    %v1649 = vadd.f32 %v1620, %v1648
    %1650 = vmatmul.bf16.gmra.mxu0 %v337
    %v1651 = vpop.f32.mrf.mxu0
    %v1652 = vadd.f32 %v1623, %v1651
    %v1653 = vpop.f32.mrf.mxu0
    %v1654 = vadd.f32 %v1625, %v1653
    %1655 = vmatmul.bf16.gmra.mxu0 %v340
    %v1656 = vpop.f32.mrf.mxu0
    %v1657 = vadd.f32 %v1628, %v1656
    %v1658 = vpop.f32.mrf.mxu0
    %v1659 = vadd.f32 %v1630, %v1658
    %1660 = vdwg.mxu0
    %1661 = vmatpush.bf16.msra.mxu0 %v989
    %1662 = vmatpush.bf16.msra.mxu0 %v981
    %1663 = vmatpush.bf16.msra.mxu0 %v973
    %1664 = vmatpush.bf16.msra.mxu0 %v965
    %1665 = vmatpush.bf16.msra.mxu0 %v957
    %1666 = vmatpush.bf16.msra.mxu0 %v949
    %1667 = vmatpush.bf16.msra.mxu0 %v941
    %1668 = vmatpush.bf16.msra.mxu0 %v933
    %1669 = vmatmul.bf16.gmra.mxu0 %v329
    %v1670 = vpop.f32.mrf.mxu0
    %v1671 = vadd.f32 %v277, %v1670
    %v1672 = vpop.f32.mrf.mxu0
    %v1673 = vadd.f32 %v277, %v1672
    %1674 = vmatmul.bf16.gmra.mxu0 %v332
    %v1675 = vpop.f32.mrf.mxu0
    %v1676 = vadd.f32 %v277, %v1675
    %v1677 = vpop.f32.mrf.mxu0
    %v1678 = vadd.f32 %v277, %v1677
    %1679 = vmatmul.bf16.gmra.mxu0 %v335
    %v1680 = vpop.f32.mrf.mxu0
    %v1681 = vadd.f32 %v277, %v1680
    %v1682 = vpop.f32.mrf.mxu0
    %v1683 = vadd.f32 %v277, %v1682
    %1684 = vmatmul.bf16.gmra.mxu0 %v338
    %v1685 = vpop.f32.mrf.mxu0
    %v1686 = vadd.f32 %v277, %v1685
    %v1687 = vpop.f32.mrf.mxu0
    %v1688 = vadd.f32 %v277, %v1687
    %1689 = vdwg.mxu0
    %1690 = vmatpush.bf16.msra.mxu0 %v1053
    %1691 = vmatpush.bf16.msra.mxu0 %v1045
    %1692 = vmatpush.bf16.msra.mxu0 %v1037
    %1693 = vmatpush.bf16.msra.mxu0 %v1029
    %1694 = vmatpush.bf16.msra.mxu0 %v1021
    %1695 = vmatpush.bf16.msra.mxu0 %v1013
    %1696 = vmatpush.bf16.msra.mxu0 %v1005
    %1697 = vmatpush.bf16.msra.mxu0 %v997
    %1698 = vmatmul.bf16.gmra.mxu0 %v330
    %v1699 = vpop.f32.mrf.mxu0
    %v1700 = vadd.f32 %v1671, %v1699
    %v1701 = vpop.f32.mrf.mxu0
    %v1702 = vadd.f32 %v1673, %v1701
    %1703 = vmatmul.bf16.gmra.mxu0 %v333
    %v1704 = vpop.f32.mrf.mxu0
    %v1705 = vadd.f32 %v1676, %v1704
    %v1706 = vpop.f32.mrf.mxu0
    %v1707 = vadd.f32 %v1678, %v1706
    %1708 = vmatmul.bf16.gmra.mxu0 %v336
    %v1709 = vpop.f32.mrf.mxu0
    %v1710 = vadd.f32 %v1681, %v1709
    %v1711 = vpop.f32.mrf.mxu0
    %v1712 = vadd.f32 %v1683, %v1711
    %1713 = vmatmul.bf16.gmra.mxu0 %v339
    %v1714 = vpop.f32.mrf.mxu0
    %v1715 = vadd.f32 %v1686, %v1714
    %v1716 = vpop.f32.mrf.mxu0
    %v1717 = vadd.f32 %v1688, %v1716
    %1718 = vdwg.mxu0
    %1719 = vmatpush.bf16.msra.mxu0 %v1117
    %1720 = vmatpush.bf16.msra.mxu0 %v1109
    %1721 = vmatpush.bf16.msra.mxu0 %v1101
    %1722 = vmatpush.bf16.msra.mxu0 %v1093
    %1723 = vmatpush.bf16.msra.mxu0 %v1085
    %1724 = vmatpush.bf16.msra.mxu0 %v1077
    %1725 = vmatpush.bf16.msra.mxu0 %v1069
    %1726 = vmatpush.bf16.msra.mxu0 %v1061
    %1727 = vmatmul.bf16.gmra.mxu0 %v331
    %v1728 = vpop.f32.mrf.mxu0
    %v1729 = vadd.f32 %v1700, %v1728
    %v1730 = vpop.f32.mrf.mxu0
    %v1731 = vadd.f32 %v1702, %v1730
    %1732 = vmatmul.bf16.gmra.mxu0 %v334
    %v1733 = vpop.f32.mrf.mxu0
    %v1734 = vadd.f32 %v1705, %v1733
    %v1735 = vpop.f32.mrf.mxu0
    %v1736 = vadd.f32 %v1707, %v1735
    %1737 = vmatmul.bf16.gmra.mxu0 %v337
    %v1738 = vpop.f32.mrf.mxu0
    %v1739 = vadd.f32 %v1710, %v1738
    %v1740 = vpop.f32.mrf.mxu0
    %v1741 = vadd.f32 %v1712, %v1740
    %1742 = vmatmul.bf16.gmra.mxu0 %v340
    %v1743 = vpop.f32.mrf.mxu0
    %v1744 = vadd.f32 %v1715, %v1743
    %v1745 = vpop.f32.mrf.mxu0
    %v1746 = vadd.f32 %v1717, %v1745
    %1747 = vdwg.mxu0
    %1748 = vmatpush.bf16.msra.mxu0 %v990
    %1749 = vmatpush.bf16.msra.mxu0 %v982
    %1750 = vmatpush.bf16.msra.mxu0 %v974
    %1751 = vmatpush.bf16.msra.mxu0 %v966
    %1752 = vmatpush.bf16.msra.mxu0 %v958
    %1753 = vmatpush.bf16.msra.mxu0 %v950
    %1754 = vmatpush.bf16.msra.mxu0 %v942
    %1755 = vmatpush.bf16.msra.mxu0 %v934
    %1756 = vmatmul.bf16.gmra.mxu0 %v329
    %v1757 = vpop.f32.mrf.mxu0
    %v1758 = vadd.f32 %v278, %v1757
    %v1759 = vpop.f32.mrf.mxu0
    %v1760 = vadd.f32 %v278, %v1759
    %1761 = vmatmul.bf16.gmra.mxu0 %v332
    %v1762 = vpop.f32.mrf.mxu0
    %v1763 = vadd.f32 %v278, %v1762
    %v1764 = vpop.f32.mrf.mxu0
    %v1765 = vadd.f32 %v278, %v1764
    %1766 = vmatmul.bf16.gmra.mxu0 %v335
    %v1767 = vpop.f32.mrf.mxu0
    %v1768 = vadd.f32 %v278, %v1767
    %v1769 = vpop.f32.mrf.mxu0
    %v1770 = vadd.f32 %v278, %v1769
    %1771 = vmatmul.bf16.gmra.mxu0 %v338
    %v1772 = vpop.f32.mrf.mxu0
    %v1773 = vadd.f32 %v278, %v1772
    %v1774 = vpop.f32.mrf.mxu0
    %v1775 = vadd.f32 %v278, %v1774
    %1776 = vdwg.mxu0
    %1777 = vmatpush.bf16.msra.mxu0 %v1054
    %1778 = vmatpush.bf16.msra.mxu0 %v1046
    %1779 = vmatpush.bf16.msra.mxu0 %v1038
    %1780 = vmatpush.bf16.msra.mxu0 %v1030
    %1781 = vmatpush.bf16.msra.mxu0 %v1022
    %1782 = vmatpush.bf16.msra.mxu0 %v1014
    %1783 = vmatpush.bf16.msra.mxu0 %v1006
    %1784 = vmatpush.bf16.msra.mxu0 %v998
    %1785 = vmatmul.bf16.gmra.mxu0 %v330
    %v1786 = vpop.f32.mrf.mxu0
    %v1787 = vadd.f32 %v1758, %v1786
    %v1788 = vpop.f32.mrf.mxu0
    %v1789 = vadd.f32 %v1760, %v1788
    %1790 = vmatmul.bf16.gmra.mxu0 %v333
    %v1791 = vpop.f32.mrf.mxu0
    %v1792 = vadd.f32 %v1763, %v1791
    %v1793 = vpop.f32.mrf.mxu0
    %v1794 = vadd.f32 %v1765, %v1793
    %1795 = vmatmul.bf16.gmra.mxu0 %v336
    %v1796 = vpop.f32.mrf.mxu0
    %v1797 = vadd.f32 %v1768, %v1796
    %v1798 = vpop.f32.mrf.mxu0
    %v1799 = vadd.f32 %v1770, %v1798
    %1800 = vmatmul.bf16.gmra.mxu0 %v339
    %v1801 = vpop.f32.mrf.mxu0
    %v1802 = vadd.f32 %v1773, %v1801
    %v1803 = vpop.f32.mrf.mxu0
    %v1804 = vadd.f32 %v1775, %v1803
    %1805 = vdwg.mxu0
    %1806 = vmatpush.bf16.msra.mxu0 %v1118
    %1807 = vmatpush.bf16.msra.mxu0 %v1110
    %1808 = vmatpush.bf16.msra.mxu0 %v1102
    %1809 = vmatpush.bf16.msra.mxu0 %v1094
    %1810 = vmatpush.bf16.msra.mxu0 %v1086
    %1811 = vmatpush.bf16.msra.mxu0 %v1078
    %1812 = vmatpush.bf16.msra.mxu0 %v1070
    %1813 = vmatpush.bf16.msra.mxu0 %v1062
    %1814 = vmatmul.bf16.gmra.mxu0 %v331
    %v1815 = vpop.f32.mrf.mxu0
    %v1816 = vadd.f32 %v1787, %v1815
    %v1817 = vpop.f32.mrf.mxu0
    %v1818 = vadd.f32 %v1789, %v1817
    %1819 = vmatmul.bf16.gmra.mxu0 %v334
    %v1820 = vpop.f32.mrf.mxu0
    %v1821 = vadd.f32 %v1792, %v1820
    %v1822 = vpop.f32.mrf.mxu0
    %v1823 = vadd.f32 %v1794, %v1822
    %1824 = vmatmul.bf16.gmra.mxu0 %v337
    %v1825 = vpop.f32.mrf.mxu0
    %v1826 = vadd.f32 %v1797, %v1825
    %v1827 = vpop.f32.mrf.mxu0
    %v1828 = vadd.f32 %v1799, %v1827
    %1829 = vmatmul.bf16.gmra.mxu0 %v340
    %v1830 = vpop.f32.mrf.mxu0
    %v1831 = vadd.f32 %v1802, %v1830
    %v1832 = vpop.f32.mrf.mxu0
    %v1833 = vadd.f32 %v1804, %v1832
    %1834 = vdwg.mxu0
    %1835 = vmatpush.bf16.msra.mxu0 %v991
    %1836 = vmatpush.bf16.msra.mxu0 %v983
    %1837 = vmatpush.bf16.msra.mxu0 %v975
    %1838 = vmatpush.bf16.msra.mxu0 %v967
    %1839 = vmatpush.bf16.msra.mxu0 %v959
    %1840 = vmatpush.bf16.msra.mxu0 %v951
    %1841 = vmatpush.bf16.msra.mxu0 %v943
    %1842 = vmatpush.bf16.msra.mxu0 %v935
    %1843 = vmatmul.bf16.gmra.mxu0 %v329
    %v1844 = vpop.f32.mrf.mxu0
    %v1845 = vadd.f32 %v279, %v1844
    %v1846 = vpop.f32.mrf.mxu0
    %v1847 = vadd.f32 %v279, %v1846
    %1848 = vmatmul.bf16.gmra.mxu0 %v332
    %v1849 = vpop.f32.mrf.mxu0
    %v1850 = vadd.f32 %v279, %v1849
    %v1851 = vpop.f32.mrf.mxu0
    %v1852 = vadd.f32 %v279, %v1851
    %1853 = vmatmul.bf16.gmra.mxu0 %v335
    %v1854 = vpop.f32.mrf.mxu0
    %v1855 = vadd.f32 %v279, %v1854
    %v1856 = vpop.f32.mrf.mxu0
    %v1857 = vadd.f32 %v279, %v1856
    %1858 = vmatmul.bf16.gmra.mxu0 %v338
    %v1859 = vpop.f32.mrf.mxu0
    %v1860 = vadd.f32 %v279, %v1859
    %v1861 = vpop.f32.mrf.mxu0
    %v1862 = vadd.f32 %v279, %v1861
    %1863 = vdwg.mxu0
    %1864 = vmatpush.bf16.msra.mxu0 %v1055
    %1865 = vmatpush.bf16.msra.mxu0 %v1047
    %1866 = vmatpush.bf16.msra.mxu0 %v1039
    %1867 = vmatpush.bf16.msra.mxu0 %v1031
    %1868 = vmatpush.bf16.msra.mxu0 %v1023
    %1869 = vmatpush.bf16.msra.mxu0 %v1015
    %1870 = vmatpush.bf16.msra.mxu0 %v1007
    %1871 = vmatpush.bf16.msra.mxu0 %v999
    %1872 = vmatmul.bf16.gmra.mxu0 %v330
    %v1873 = vpop.f32.mrf.mxu0
    %v1874 = vadd.f32 %v1845, %v1873
    %v1875 = vpop.f32.mrf.mxu0
    %v1876 = vadd.f32 %v1847, %v1875
    %1877 = vmatmul.bf16.gmra.mxu0 %v333
    %v1878 = vpop.f32.mrf.mxu0
    %v1879 = vadd.f32 %v1850, %v1878
    %v1880 = vpop.f32.mrf.mxu0
    %v1881 = vadd.f32 %v1852, %v1880
    %1882 = vmatmul.bf16.gmra.mxu0 %v336
    %v1883 = vpop.f32.mrf.mxu0
    %v1884 = vadd.f32 %v1855, %v1883
    %v1885 = vpop.f32.mrf.mxu0
    %v1886 = vadd.f32 %v1857, %v1885
    %1887 = vmatmul.bf16.gmra.mxu0 %v339
    %v1888 = vpop.f32.mrf.mxu0
    %v1889 = vadd.f32 %v1860, %v1888
    %v1890 = vpop.f32.mrf.mxu0
    %v1891 = vadd.f32 %v1862, %v1890
    %1892 = vdwg.mxu0
    %1893 = vmatpush.bf16.msra.mxu0 %v1119
    %1894 = vmatpush.bf16.msra.mxu0 %v1111
    %1895 = vmatpush.bf16.msra.mxu0 %v1103
    %1896 = vmatpush.bf16.msra.mxu0 %v1095
    %1897 = vmatpush.bf16.msra.mxu0 %v1087
    %1898 = vmatpush.bf16.msra.mxu0 %v1079
    %1899 = vmatpush.bf16.msra.mxu0 %v1071
    %1900 = vmatpush.bf16.msra.mxu0 %v1063
    %1901 = vmatmul.bf16.gmra.mxu0 %v331
    %v1902 = vpop.f32.mrf.mxu0
    %v1903 = vadd.f32 %v1874, %v1902
    %v1904 = vpop.f32.mrf.mxu0
    %v1905 = vadd.f32 %v1876, %v1904
    %1906 = vmatmul.bf16.gmra.mxu0 %v334
    %v1907 = vpop.f32.mrf.mxu0
    %v1908 = vadd.f32 %v1879, %v1907
    %v1909 = vpop.f32.mrf.mxu0
    %v1910 = vadd.f32 %v1881, %v1909
    %1911 = vmatmul.bf16.gmra.mxu0 %v337
    %v1912 = vpop.f32.mrf.mxu0
    %v1913 = vadd.f32 %v1884, %v1912
    %v1914 = vpop.f32.mrf.mxu0
    %v1915 = vadd.f32 %v1886, %v1914
    %1916 = vmatmul.bf16.gmra.mxu0 %v340
    %v1917 = vpop.f32.mrf.mxu0
    %v1918 = vadd.f32 %v1889, %v1917
    %v1919 = vpop.f32.mrf.mxu0
    %v1920 = vadd.f32 %v1891, %v1919
    %1921 = vdwg.mxu0
    %1922 = vmatpush.bf16.msra.mxu0 %v992
    %1923 = vmatpush.bf16.msra.mxu0 %v984
    %1924 = vmatpush.bf16.msra.mxu0 %v976
    %1925 = vmatpush.bf16.msra.mxu0 %v968
    %1926 = vmatpush.bf16.msra.mxu0 %v960
    %1927 = vmatpush.bf16.msra.mxu0 %v952
    %1928 = vmatpush.bf16.msra.mxu0 %v944
    %1929 = vmatpush.bf16.msra.mxu0 %v936
    %1930 = vmatmul.bf16.gmra.mxu0 %v329
    %v1931 = vpop.f32.mrf.mxu0
    %v1932 = vadd.f32 %v280, %v1931
    %v1933 = vpop.f32.mrf.mxu0
    %v1934 = vadd.f32 %v280, %v1933
    %1935 = vmatmul.bf16.gmra.mxu0 %v332
    %v1936 = vpop.f32.mrf.mxu0
    %v1937 = vadd.f32 %v280, %v1936
    %v1938 = vpop.f32.mrf.mxu0
    %v1939 = vadd.f32 %v280, %v1938
    %1940 = vmatmul.bf16.gmra.mxu0 %v335
    %v1941 = vpop.f32.mrf.mxu0
    %v1942 = vadd.f32 %v280, %v1941
    %v1943 = vpop.f32.mrf.mxu0
    %v1944 = vadd.f32 %v280, %v1943
    %1945 = vmatmul.bf16.gmra.mxu0 %v338
    %v1946 = vpop.f32.mrf.mxu0
    %v1947 = vadd.f32 %v280, %v1946
    %v1948 = vpop.f32.mrf.mxu0
    %v1949 = vadd.f32 %v280, %v1948
    %1950 = vdwg.mxu0
    %1951 = vmatpush.bf16.msra.mxu0 %v1056
    %1952 = vmatpush.bf16.msra.mxu0 %v1048
    %1953 = vmatpush.bf16.msra.mxu0 %v1040
    %1954 = vmatpush.bf16.msra.mxu0 %v1032
    %1955 = vmatpush.bf16.msra.mxu0 %v1024
    %1956 = vmatpush.bf16.msra.mxu0 %v1016
    %1957 = vmatpush.bf16.msra.mxu0 %v1008
    %1958 = vmatpush.bf16.msra.mxu0 %v1000
    %1959 = vmatmul.bf16.gmra.mxu0 %v330
    %v1960 = vpop.f32.mrf.mxu0
    %v1961 = vadd.f32 %v1932, %v1960
    %v1962 = vpop.f32.mrf.mxu0
    %v1963 = vadd.f32 %v1934, %v1962
    %1964 = vmatmul.bf16.gmra.mxu0 %v333
    %v1965 = vpop.f32.mrf.mxu0
    %v1966 = vadd.f32 %v1937, %v1965
    %v1967 = vpop.f32.mrf.mxu0
    %v1968 = vadd.f32 %v1939, %v1967
    %1969 = vmatmul.bf16.gmra.mxu0 %v336
    %v1970 = vpop.f32.mrf.mxu0
    %v1971 = vadd.f32 %v1942, %v1970
    %v1972 = vpop.f32.mrf.mxu0
    %v1973 = vadd.f32 %v1944, %v1972
    %1974 = vmatmul.bf16.gmra.mxu0 %v339
    %v1975 = vpop.f32.mrf.mxu0
    %v1976 = vadd.f32 %v1947, %v1975
    %v1977 = vpop.f32.mrf.mxu0
    %v1978 = vadd.f32 %v1949, %v1977
    %1979 = vdwg.mxu0
    %1980 = vmatpush.bf16.msra.mxu0 %v1120
    %1981 = vmatpush.bf16.msra.mxu0 %v1112
    %1982 = vmatpush.bf16.msra.mxu0 %v1104
    %1983 = vmatpush.bf16.msra.mxu0 %v1096
    %1984 = vmatpush.bf16.msra.mxu0 %v1088
    %1985 = vmatpush.bf16.msra.mxu0 %v1080
    %1986 = vmatpush.bf16.msra.mxu0 %v1072
    %1987 = vmatpush.bf16.msra.mxu0 %v1064
    %1988 = vmatmul.bf16.gmra.mxu0 %v331
    %v1989 = vpop.f32.mrf.mxu0
    %v1990 = vadd.f32 %v1961, %v1989
    %v1991 = vpop.f32.mrf.mxu0
    %v1992 = vadd.f32 %v1963, %v1991
    %1993 = vmatmul.bf16.gmra.mxu0 %v334
    %v1994 = vpop.f32.mrf.mxu0
    %v1995 = vadd.f32 %v1966, %v1994
    %v1996 = vpop.f32.mrf.mxu0
    %v1997 = vadd.f32 %v1968, %v1996
    %1998 = vmatmul.bf16.gmra.mxu0 %v337
    %v1999 = vpop.f32.mrf.mxu0
    %v2000 = vadd.f32 %v1971, %v1999
    %v2001 = vpop.f32.mrf.mxu0
    %v2002 = vadd.f32 %v1973, %v2001
    %2003 = vmatmul.bf16.gmra.mxu0 %v340
    %v2004 = vpop.f32.mrf.mxu0
    %v2005 = vadd.f32 %v1976, %v2004
    %v2006 = vpop.f32.mrf.mxu0
    %v2007 = vadd.f32 %v1978, %v2006
    %2008 = vdwg.mxu0
    %2009 = vst [vmem:[#allocation2] sm:$0xff] %v1381
    %2010 = vst [vmem:[#allocation2 + $0x8] sm:$0xff] %v1468
    %2011 = vst [vmem:[#allocation2 + $0x10] sm:$0xff] %v1555
    %2012 = vst [vmem:[#allocation2 + $0x18] sm:$0xff] %v1642
    %2013 = vst [vmem:[#allocation2 + $0x20] sm:$0xff] %v1729
    %2014 = vst [vmem:[#allocation2 + $0x28] sm:$0xff] %v1816
    %2015 = vst [vmem:[#allocation2 + $0x30] sm:$0xff] %v1903
    %2016 = vst [vmem:[#allocation2 + $0x38] sm:$0xff] %v1990
    %2017 = vst [vmem:[#allocation2 + $0x40] sm:$0xff] %v1383
    %2018 = vst [vmem:[#allocation2 + $0x48] sm:$0xff] %v1470
    %2019 = vst [vmem:[#allocation2 + $0x50] sm:$0xff] %v1557
    %2020 = vst [vmem:[#allocation2 + $0x58] sm:$0xff] %v1644
    %2021 = vst [vmem:[#allocation2 + $0x60] sm:$0xff] %v1731
    %2022 = vst [vmem:[#allocation2 + $0x68] sm:$0xff] %v1818
    %2023 = vst [vmem:[#allocation2 + $0x70] sm:$0xff] %v1905
    %2024 = vst [vmem:[#allocation2 + $0x78] sm:$0xff] %v1992
    %2025 = vst [vmem:[#allocation2 + $0x80] sm:$0xff] %v1386
    %2026 = vst [vmem:[#allocation2 + $0x88] sm:$0xff] %v1473
    %2027 = vst [vmem:[#allocation2 + $0x90] sm:$0xff] %v1560
    %2028 = vst [vmem:[#allocation2 + $0x98] sm:$0xff] %v1647
    %2029 = vst [vmem:[#allocation2 + $0xa0] sm:$0xff] %v1734
    %2030 = vst [vmem:[#allocation2 + $0xa8] sm:$0xff] %v1821
    %2031 = vst [vmem:[#allocation2 + $0xb0] sm:$0xff] %v1908
    %2032 = vst [vmem:[#allocation2 + $0xb8] sm:$0xff] %v1995
    %2033 = vst [vmem:[#allocation2 + $0xc0] sm:$0xff] %v1388
    %2034 = vst [vmem:[#allocation2 + $0xc8] sm:$0xff] %v1475
    %2035 = vst [vmem:[#allocation2 + $0xd0] sm:$0xff] %v1562
    %2036 = vst [vmem:[#allocation2 + $0xd8] sm:$0xff] %v1649
    %2037 = vst [vmem:[#allocation2 + $0xe0] sm:$0xff] %v1736
    %2038 = vst [vmem:[#allocation2 + $0xe8] sm:$0xff] %v1823
    %2039 = vst [vmem:[#allocation2 + $0xf0] sm:$0xff] %v1910
    %2040 = vst [vmem:[#allocation2 + $0xf8] sm:$0xff] %v1997
    %2041 = vst [vmem:[#allocation2 + $0x100] sm:$0xff] %v1391
    %2042 = vst [vmem:[#allocation2 + $0x108] sm:$0xff] %v1478
    %2043 = vst [vmem:[#allocation2 + $0x110] sm:$0xff] %v1565
    %2044 = vst [vmem:[#allocation2 + $0x118] sm:$0xff] %v1652
    %2045 = vst [vmem:[#allocation2 + $0x120] sm:$0xff] %v1739
    %2046 = vst [vmem:[#allocation2 + $0x128] sm:$0xff] %v1826
    %2047 = vst [vmem:[#allocation2 + $0x130] sm:$0xff] %v1913
    %2048 = vst [vmem:[#allocation2 + $0x138] sm:$0xff] %v2000
    %2049 = vst [vmem:[#allocation2 + $0x140] sm:$0xff] %v1393
    %2050 = vst [vmem:[#allocation2 + $0x148] sm:$0xff] %v1480
    %2051 = vst [vmem:[#allocation2 + $0x150] sm:$0xff] %v1567
    %2052 = vst [vmem:[#allocation2 + $0x158] sm:$0xff] %v1654
    %2053 = vst [vmem:[#allocation2 + $0x160] sm:$0xff] %v1741
    %2054 = vst [vmem:[#allocation2 + $0x168] sm:$0xff] %v1828
    %2055 = vst [vmem:[#allocation2 + $0x170] sm:$0xff] %v1915
    %2056 = vst [vmem:[#allocation2 + $0x178] sm:$0xff] %v2002
    %2057 = vst [vmem:[#allocation2 + $0x180] sm:$0xff] %v1396
    %2058 = vst [vmem:[#allocation2 + $0x188] sm:$0xff] %v1483
    %2059 = vst [vmem:[#allocation2 + $0x190] sm:$0xff] %v1570
    %2060 = vst [vmem:[#allocation2 + $0x198] sm:$0xff] %v1657
    %2061 = vst [vmem:[#allocation2 + $0x1a0] sm:$0xff] %v1744
    %2062 = vst [vmem:[#allocation2 + $0x1a8] sm:$0xff] %v1831
    %2063 = vst [vmem:[#allocation2 + $0x1b0] sm:$0xff] %v1918
    %2064 = vst [vmem:[#allocation2 + $0x1b8] sm:$0xff] %v2005
    %2065 = vst [vmem:[#allocation2 + $0x1c0] sm:$0xff] %v1398
    %2066 = vst [vmem:[#allocation2 + $0x1c8] sm:$0xff] %v1485
    %2067 = vst [vmem:[#allocation2 + $0x1d0] sm:$0xff] %v1572
    %2068 = vst [vmem:[#allocation2 + $0x1d8] sm:$0xff] %v1659
    %2069 = vst [vmem:[#allocation2 + $0x1e0] sm:$0xff] %v1746
    %2070 = vst [vmem:[#allocation2 + $0x1e8] sm:$0xff] %v1833
    %2071 = vst [vmem:[#allocation2 + $0x1f0] sm:$0xff] %v1920
    %2072 = vst [vmem:[#allocation2 + $0x1f8] sm:$0xff] %v2007
    %v2073 = vld [vmem:[#allocation7] sm:$0xff]
    %v2074 = vld [vmem:[#allocation7 + $0x8] sm:$0xff]
    %v2075 = vld [vmem:[#allocation7 + $0x10] sm:$0xff]
    %v2076 = vld [vmem:[#allocation7 + $0x18] sm:$0xff]
    %v2077 = vld [vmem:[#allocation7 + $0x20] sm:$0xff]
    %v2078 = vld [vmem:[#allocation7 + $0x28] sm:$0xff]
    %v2079 = vld [vmem:[#allocation7 + $0x30] sm:$0xff]
    %v2080 = vld [vmem:[#allocation7 + $0x38] sm:$0xff]
    %v2081 = vld [vmem:[#allocation7 + $0x40] sm:$0xff]
    %v2082 = vld [vmem:[#allocation7 + $0x48] sm:$0xff]
    %v2083 = vld [vmem:[#allocation7 + $0x50] sm:$0xff]
    %v2084 = vld [vmem:[#allocation7 + $0x58] sm:$0xff]
    %v2085 = vld [vmem:[#allocation7 + $0x60] sm:$0xff]
    %v2086 = vld [vmem:[#allocation7 + $0x68] sm:$0xff]
    %v2087 = vld [vmem:[#allocation7 + $0x70] sm:$0xff]
    %v2088 = vld [vmem:[#allocation7 + $0x78] sm:$0xff]
    %v2089 = vld [vmem:[#allocation7 + $0x80] sm:$0xff]
    %v2090 = vld [vmem:[#allocation7 + $0x88] sm:$0xff]
    %v2091 = vld [vmem:[#allocation7 + $0x90] sm:$0xff]
    %v2092 = vld [vmem:[#allocation7 + $0x98] sm:$0xff]
    %v2093 = vld [vmem:[#allocation7 + $0xa0] sm:$0xff]
    %v2094 = vld [vmem:[#allocation7 + $0xa8] sm:$0xff]
    %v2095 = vld [vmem:[#allocation7 + $0xb0] sm:$0xff]
    %v2096 = vld [vmem:[#allocation7 + $0xb8] sm:$0xff]
    %v2097 = vld [vmem:[#allocation7 + $0xc0] sm:$0xff]
    %v2098 = vld [vmem:[#allocation7 + $0xc8] sm:$0xff]
    %v2099 = vld [vmem:[#allocation7 + $0xd0] sm:$0xff]
    %v2100 = vld [vmem:[#allocation7 + $0xd8] sm:$0xff]
    %v2101 = vld [vmem:[#allocation7 + $0xe0] sm:$0xff]
    %v2102 = vld [vmem:[#allocation7 + $0xe8] sm:$0xff]
    %v2103 = vld [vmem:[#allocation7 + $0xf0] sm:$0xff]
    %v2104 = vld [vmem:[#allocation7 + $0xf8] sm:$0xff]
    %v2105 = vld [vmem:[#allocation7 + $0x100] sm:$0xff]
    %v2106 = vld [vmem:[#allocation7 + $0x108] sm:$0xff]
    %v2107 = vld [vmem:[#allocation7 + $0x110] sm:$0xff]
    %v2108 = vld [vmem:[#allocation7 + $0x118] sm:$0xff]
    %v2109 = vld [vmem:[#allocation7 + $0x120] sm:$0xff]
    %v2110 = vld [vmem:[#allocation7 + $0x128] sm:$0xff]
    %v2111 = vld [vmem:[#allocation7 + $0x130] sm:$0xff]
    %v2112 = vld [vmem:[#allocation7 + $0x138] sm:$0xff]
    %v2113 = vld [vmem:[#allocation7 + $0x140] sm:$0xff]
    %v2114 = vld [vmem:[#allocation7 + $0x148] sm:$0xff]
    %v2115 = vld [vmem:[#allocation7 + $0x150] sm:$0xff]
    %v2116 = vld [vmem:[#allocation7 + $0x158] sm:$0xff]
    %v2117 = vld [vmem:[#allocation7 + $0x160] sm:$0xff]
    %v2118 = vld [vmem:[#allocation7 + $0x168] sm:$0xff]
    %v2119 = vld [vmem:[#allocation7 + $0x170] sm:$0xff]
    %v2120 = vld [vmem:[#allocation7 + $0x178] sm:$0xff]
    %v2121 = vld [vmem:[#allocation7 + $0x180] sm:$0xff]
    %v2122 = vld [vmem:[#allocation7 + $0x188] sm:$0xff]
    %v2123 = vld [vmem:[#allocation7 + $0x190] sm:$0xff]
    %v2124 = vld [vmem:[#allocation7 + $0x198] sm:$0xff]
    %v2125 = vld [vmem:[#allocation7 + $0x1a0] sm:$0xff]
    %v2126 = vld [vmem:[#allocation7 + $0x1a8] sm:$0xff]
    %v2127 = vld [vmem:[#allocation7 + $0x1b0] sm:$0xff]
    %v2128 = vld [vmem:[#allocation7 + $0x1b8] sm:$0xff]
    %v2129 = vld [vmem:[#allocation7 + $0x1c0] sm:$0xff]
    %v2130 = vld [vmem:[#allocation7 + $0x1c8] sm:$0xff]
    %v2131 = vld [vmem:[#allocation7 + $0x1d0] sm:$0xff]
    %v2132 = vld [vmem:[#allocation7 + $0x1d8] sm:$0xff]
    %v2133 = vld [vmem:[#allocation7 + $0x1e0] sm:$0xff]
    %v2134 = vld [vmem:[#allocation7 + $0x1e8] sm:$0xff]
    %v2135 = vld [vmem:[#allocation7 + $0x1f0] sm:$0xff]
    %v2136 = vld [vmem:[#allocation7 + $0x1f8] sm:$0xff]
    %v2137 = vld [vmem:[#allocation7 + $0x200] sm:$0xff]
    %v2138 = vld [vmem:[#allocation7 + $0x208] sm:$0xff]
    %v2139 = vld [vmem:[#allocation7 + $0x210] sm:$0xff]
    %v2140 = vld [vmem:[#allocation7 + $0x218] sm:$0xff]
    %v2141 = vld [vmem:[#allocation7 + $0x220] sm:$0xff]
    %v2142 = vld [vmem:[#allocation7 + $0x228] sm:$0xff]
    %v2143 = vld [vmem:[#allocation7 + $0x230] sm:$0xff]
    %v2144 = vld [vmem:[#allocation7 + $0x238] sm:$0xff]
    %v2145 = vld [vmem:[#allocation7 + $0x240] sm:$0xff]
    %v2146 = vld [vmem:[#allocation7 + $0x248] sm:$0xff]
    %v2147 = vld [vmem:[#allocation7 + $0x250] sm:$0xff]
    %v2148 = vld [vmem:[#allocation7 + $0x258] sm:$0xff]
    %v2149 = vld [vmem:[#allocation7 + $0x260] sm:$0xff]
    %v2150 = vld [vmem:[#allocation7 + $0x268] sm:$0xff]
    %v2151 = vld [vmem:[#allocation7 + $0x270] sm:$0xff]
    %v2152 = vld [vmem:[#allocation7 + $0x278] sm:$0xff]
    %v2153 = vld [vmem:[#allocation7 + $0x280] sm:$0xff]
    %v2154 = vld [vmem:[#allocation7 + $0x288] sm:$0xff]
    %v2155 = vld [vmem:[#allocation7 + $0x290] sm:$0xff]
    %v2156 = vld [vmem:[#allocation7 + $0x298] sm:$0xff]
    %v2157 = vld [vmem:[#allocation7 + $0x2a0] sm:$0xff]
    %v2158 = vld [vmem:[#allocation7 + $0x2a8] sm:$0xff]
    %v2159 = vld [vmem:[#allocation7 + $0x2b0] sm:$0xff]
    %v2160 = vld [vmem:[#allocation7 + $0x2b8] sm:$0xff]
    %v2161 = vld [vmem:[#allocation7 + $0x2c0] sm:$0xff]
    %v2162 = vld [vmem:[#allocation7 + $0x2c8] sm:$0xff]
    %v2163 = vld [vmem:[#allocation7 + $0x2d0] sm:$0xff]
    %v2164 = vld [vmem:[#allocation7 + $0x2d8] sm:$0xff]
    %v2165 = vld [vmem:[#allocation7 + $0x2e0] sm:$0xff]
    %v2166 = vld [vmem:[#allocation7 + $0x2e8] sm:$0xff]
    %v2167 = vld [vmem:[#allocation7 + $0x2f0] sm:$0xff]
    %v2168 = vld [vmem:[#allocation7 + $0x2f8] sm:$0xff]
    %v2169 = vld [vmem:[#allocation7 + $0x300] sm:$0xff]
    %v2170 = vld [vmem:[#allocation7 + $0x308] sm:$0xff]
    %v2171 = vld [vmem:[#allocation7 + $0x310] sm:$0xff]
    %v2172 = vld [vmem:[#allocation7 + $0x318] sm:$0xff]
    %v2173 = vld [vmem:[#allocation7 + $0x320] sm:$0xff]
    %v2174 = vld [vmem:[#allocation7 + $0x328] sm:$0xff]
    %v2175 = vld [vmem:[#allocation7 + $0x330] sm:$0xff]
    %v2176 = vld [vmem:[#allocation7 + $0x338] sm:$0xff]
    %v2177 = vld [vmem:[#allocation7 + $0x340] sm:$0xff]
    %v2178 = vld [vmem:[#allocation7 + $0x348] sm:$0xff]
    %v2179 = vld [vmem:[#allocation7 + $0x350] sm:$0xff]
    %v2180 = vld [vmem:[#allocation7 + $0x358] sm:$0xff]
    %v2181 = vld [vmem:[#allocation7 + $0x360] sm:$0xff]
    %v2182 = vld [vmem:[#allocation7 + $0x368] sm:$0xff]
    %v2183 = vld [vmem:[#allocation7 + $0x370] sm:$0xff]
    %v2184 = vld [vmem:[#allocation7 + $0x378] sm:$0xff]
    %v2185 = vld [vmem:[#allocation7 + $0x380] sm:$0xff]
    %v2186 = vld [vmem:[#allocation7 + $0x388] sm:$0xff]
    %v2187 = vld [vmem:[#allocation7 + $0x390] sm:$0xff]
    %v2188 = vld [vmem:[#allocation7 + $0x398] sm:$0xff]
    %v2189 = vld [vmem:[#allocation7 + $0x3a0] sm:$0xff]
    %v2190 = vld [vmem:[#allocation7 + $0x3a8] sm:$0xff]
    %v2191 = vld [vmem:[#allocation7 + $0x3b0] sm:$0xff]
    %v2192 = vld [vmem:[#allocation7 + $0x3b8] sm:$0xff]
    %v2193 = vld [vmem:[#allocation7 + $0x3c0] sm:$0xff]
    %v2194 = vld [vmem:[#allocation7 + $0x3c8] sm:$0xff]
    %v2195 = vld [vmem:[#allocation7 + $0x3d0] sm:$0xff]
    %v2196 = vld [vmem:[#allocation7 + $0x3d8] sm:$0xff]
    %v2197 = vld [vmem:[#allocation7 + $0x3e0] sm:$0xff]
    %v2198 = vld [vmem:[#allocation7 + $0x3e8] sm:$0xff]
    %v2199 = vld [vmem:[#allocation7 + $0x3f0] sm:$0xff]
    %v2200 = vld [vmem:[#allocation7 + $0x3f8] sm:$0xff]
    %v2201 = vld [vmem:[#allocation3] sm:$0xff]
    %v2202 = vld [vmem:[#allocation3 + $0x8] sm:$0xff]
    %v2203 = vld [vmem:[#allocation4] sm:$0xff]
    %v2204 = vld [vmem:[#allocation4 + $0x8] sm:$0xff]
    %s2205 = smul.u32 0, 8
    %s2206 = smul.addr %s2205, 8
    %s2207 = scalar_lea.vmem [#allocation2], %s2206
    %v2208 = vld [vmem:[%s2207] sm:$0xff]
    %v2209 = vld [vmem:[%s2207 + $0x8] sm:$0xff]
    %v2210 = vld [vmem:[%s2207 + $0x10] sm:$0xff]
    %v2211 = vld [vmem:[%s2207 + $0x18] sm:$0xff]
    %v2212 = vld [vmem:[%s2207 + $0x20] sm:$0xff]
    %v2213 = vld [vmem:[%s2207 + $0x28] sm:$0xff]
    %v2214 = vld [vmem:[%s2207 + $0x30] sm:$0xff]
    %v2215 = vld [vmem:[%s2207 + $0x38] sm:$0xff]
    %v2216 = vpack.c.bf16 %v2201, %v2201
    %v2217 = vpack.c.bf16 %v2202, %v2202
    %v2346 = vunpack.c.l.b16 %v2073
    %v2347 = vunpack.c.h.b16 %v2073
    %v2348 = vunpack.c.l.b16 %v2074
    %v2349 = vunpack.c.h.b16 %v2074
    %v2350 = vunpack.c.l.b16 %v2075
    %v2351 = vunpack.c.h.b16 %v2075
    %v2352 = vunpack.c.l.b16 %v2076
    %v2353 = vunpack.c.h.b16 %v2076
    %v2354 = vunpack.c.l.b16 %v2077
    %v2355 = vunpack.c.h.b16 %v2077
    %v2356 = vunpack.c.l.b16 %v2078
    %v2357 = vunpack.c.h.b16 %v2078
    %v2358 = vunpack.c.l.b16 %v2079
    %v2359 = vunpack.c.h.b16 %v2079
    %v2360 = vunpack.c.l.b16 %v2080
    %v2361 = vunpack.c.h.b16 %v2080
    %v2362 = vunpack.c.l.b16 %v2081
    %v2363 = vunpack.c.h.b16 %v2081
    %v2364 = vunpack.c.l.b16 %v2082
    %v2365 = vunpack.c.h.b16 %v2082
    %v2366 = vunpack.c.l.b16 %v2083
    %v2367 = vunpack.c.h.b16 %v2083
    %v2368 = vunpack.c.l.b16 %v2084
    %v2369 = vunpack.c.h.b16 %v2084
    %v2370 = vunpack.c.l.b16 %v2085
    %v2371 = vunpack.c.h.b16 %v2085
    %v2372 = vunpack.c.l.b16 %v2086
    %v2373 = vunpack.c.h.b16 %v2086
    %v2374 = vunpack.c.l.b16 %v2087
    %v2375 = vunpack.c.h.b16 %v2087
    %v2376 = vunpack.c.l.b16 %v2088
    %v2377 = vunpack.c.h.b16 %v2088
    %v2378 = vunpack.c.l.b16 %v2089
    %v2379 = vunpack.c.h.b16 %v2089
    %v2380 = vunpack.c.l.b16 %v2090
    %v2381 = vunpack.c.h.b16 %v2090
    %v2382 = vunpack.c.l.b16 %v2091
    %v2383 = vunpack.c.h.b16 %v2091
    %v2384 = vunpack.c.l.b16 %v2092
    %v2385 = vunpack.c.h.b16 %v2092
    %v2386 = vunpack.c.l.b16 %v2093
    %v2387 = vunpack.c.h.b16 %v2093
    %v2388 = vunpack.c.l.b16 %v2094
    %v2389 = vunpack.c.h.b16 %v2094
    %v2390 = vunpack.c.l.b16 %v2095
    %v2391 = vunpack.c.h.b16 %v2095
    %v2392 = vunpack.c.l.b16 %v2096
    %v2393 = vunpack.c.h.b16 %v2096
    %v2394 = vunpack.c.l.b16 %v2097
    %v2395 = vunpack.c.h.b16 %v2097
    %v2396 = vunpack.c.l.b16 %v2098
    %v2397 = vunpack.c.h.b16 %v2098
    %v2398 = vunpack.c.l.b16 %v2099
    %v2399 = vunpack.c.h.b16 %v2099
    %v2400 = vunpack.c.l.b16 %v2100
    %v2401 = vunpack.c.h.b16 %v2100
    %v2402 = vunpack.c.l.b16 %v2101
    %v2403 = vunpack.c.h.b16 %v2101
    %v2404 = vunpack.c.l.b16 %v2102
    %v2405 = vunpack.c.h.b16 %v2102
    %v2406 = vunpack.c.l.b16 %v2103
    %v2407 = vunpack.c.h.b16 %v2103
    %v2408 = vunpack.c.l.b16 %v2104
    %v2409 = vunpack.c.h.b16 %v2104
    %v2410 = vunpack.c.l.b16 %v2105
    %v2411 = vunpack.c.h.b16 %v2105
    %v2412 = vunpack.c.l.b16 %v2106
    %v2413 = vunpack.c.h.b16 %v2106
    %v2414 = vunpack.c.l.b16 %v2107
    %v2415 = vunpack.c.h.b16 %v2107
    %v2416 = vunpack.c.l.b16 %v2108
    %v2417 = vunpack.c.h.b16 %v2108
    %v2418 = vunpack.c.l.b16 %v2109
    %v2419 = vunpack.c.h.b16 %v2109
    %v2420 = vunpack.c.l.b16 %v2110
    %v2421 = vunpack.c.h.b16 %v2110
    %v2422 = vunpack.c.l.b16 %v2111
    %v2423 = vunpack.c.h.b16 %v2111
    %v2424 = vunpack.c.l.b16 %v2112
    %v2425 = vunpack.c.h.b16 %v2112
    %v2426 = vunpack.c.l.b16 %v2113
    %v2427 = vunpack.c.h.b16 %v2113
    %v2428 = vunpack.c.l.b16 %v2114
    %v2429 = vunpack.c.h.b16 %v2114
    %v2430 = vunpack.c.l.b16 %v2115
    %v2431 = vunpack.c.h.b16 %v2115
    %v2432 = vunpack.c.l.b16 %v2116
    %v2433 = vunpack.c.h.b16 %v2116
    %v2434 = vunpack.c.l.b16 %v2117
    %v2435 = vunpack.c.h.b16 %v2117
    %v2436 = vunpack.c.l.b16 %v2118
    %v2437 = vunpack.c.h.b16 %v2118
    %v2438 = vunpack.c.l.b16 %v2119
    %v2439 = vunpack.c.h.b16 %v2119
    %v2440 = vunpack.c.l.b16 %v2120
    %v2441 = vunpack.c.h.b16 %v2120
    %v2442 = vunpack.c.l.b16 %v2121
    %v2443 = vunpack.c.h.b16 %v2121
    %v2444 = vunpack.c.l.b16 %v2122
    %v2445 = vunpack.c.h.b16 %v2122
    %v2446 = vunpack.c.l.b16 %v2123
    %v2447 = vunpack.c.h.b16 %v2123
    %v2448 = vunpack.c.l.b16 %v2124
    %v2449 = vunpack.c.h.b16 %v2124
    %v2450 = vunpack.c.l.b16 %v2125
    %v2451 = vunpack.c.h.b16 %v2125
    %v2452 = vunpack.c.l.b16 %v2126
    %v2453 = vunpack.c.h.b16 %v2126
    %v2454 = vunpack.c.l.b16 %v2127
    %v2455 = vunpack.c.h.b16 %v2127
    %v2456 = vunpack.c.l.b16 %v2128
    %v2457 = vunpack.c.h.b16 %v2128
    %v2458 = vunpack.c.l.b16 %v2129
    %v2459 = vunpack.c.h.b16 %v2129
    %v2460 = vunpack.c.l.b16 %v2130
    %v2461 = vunpack.c.h.b16 %v2130
    %v2462 = vunpack.c.l.b16 %v2131
    %v2463 = vunpack.c.h.b16 %v2131
    %v2464 = vunpack.c.l.b16 %v2132
    %v2465 = vunpack.c.h.b16 %v2132
    %v2466 = vunpack.c.l.b16 %v2133
    %v2467 = vunpack.c.h.b16 %v2133
    %v2468 = vunpack.c.l.b16 %v2134
    %v2469 = vunpack.c.h.b16 %v2134
    %v2470 = vunpack.c.l.b16 %v2135
    %v2471 = vunpack.c.h.b16 %v2135
    %v2472 = vunpack.c.l.b16 %v2136
    %v2473 = vunpack.c.h.b16 %v2136
    %v2474 = vunpack.c.l.b16 %v2137
    %v2475 = vunpack.c.h.b16 %v2137
    %v2476 = vunpack.c.l.b16 %v2138
    %v2477 = vunpack.c.h.b16 %v2138
    %v2478 = vunpack.c.l.b16 %v2139
    %v2479 = vunpack.c.h.b16 %v2139
    %v2480 = vunpack.c.l.b16 %v2140
    %v2481 = vunpack.c.h.b16 %v2140
    %v2482 = vunpack.c.l.b16 %v2141
    %v2483 = vunpack.c.h.b16 %v2141
    %v2484 = vunpack.c.l.b16 %v2142
    %v2485 = vunpack.c.h.b16 %v2142
    %v2486 = vunpack.c.l.b16 %v2143
    %v2487 = vunpack.c.h.b16 %v2143
    %v2488 = vunpack.c.l.b16 %v2144
    %v2489 = vunpack.c.h.b16 %v2144
    %v2490 = vunpack.c.l.b16 %v2145
    %v2491 = vunpack.c.h.b16 %v2145
    %v2492 = vunpack.c.l.b16 %v2146
    %v2493 = vunpack.c.h.b16 %v2146
    %v2494 = vunpack.c.l.b16 %v2147
    %v2495 = vunpack.c.h.b16 %v2147
    %v2496 = vunpack.c.l.b16 %v2148
    %v2497 = vunpack.c.h.b16 %v2148
    %v2498 = vunpack.c.l.b16 %v2149
    %v2499 = vunpack.c.h.b16 %v2149
    %v2500 = vunpack.c.l.b16 %v2150
    %v2501 = vunpack.c.h.b16 %v2150
    %v2502 = vunpack.c.l.b16 %v2151
    %v2503 = vunpack.c.h.b16 %v2151
    %v2504 = vunpack.c.l.b16 %v2152
    %v2505 = vunpack.c.h.b16 %v2152
    %v2506 = vunpack.c.l.b16 %v2153
    %v2507 = vunpack.c.h.b16 %v2153
    %v2508 = vunpack.c.l.b16 %v2154
    %v2509 = vunpack.c.h.b16 %v2154
    %v2510 = vunpack.c.l.b16 %v2155
    %v2511 = vunpack.c.h.b16 %v2155
    %v2512 = vunpack.c.l.b16 %v2156
    %v2513 = vunpack.c.h.b16 %v2156
    %v2514 = vunpack.c.l.b16 %v2157
    %v2515 = vunpack.c.h.b16 %v2157
    %v2516 = vunpack.c.l.b16 %v2158
    %v2517 = vunpack.c.h.b16 %v2158
    %v2518 = vunpack.c.l.b16 %v2159
    %v2519 = vunpack.c.h.b16 %v2159
    %v2520 = vunpack.c.l.b16 %v2160
    %v2521 = vunpack.c.h.b16 %v2160
    %v2522 = vunpack.c.l.b16 %v2161
    %v2523 = vunpack.c.h.b16 %v2161
    %v2524 = vunpack.c.l.b16 %v2162
    %v2525 = vunpack.c.h.b16 %v2162
    %v2526 = vunpack.c.l.b16 %v2163
    %v2527 = vunpack.c.h.b16 %v2163
    %v2528 = vunpack.c.l.b16 %v2164
    %v2529 = vunpack.c.h.b16 %v2164
    %v2530 = vunpack.c.l.b16 %v2165
    %v2531 = vunpack.c.h.b16 %v2165
    %v2532 = vunpack.c.l.b16 %v2166
    %v2533 = vunpack.c.h.b16 %v2166
    %v2534 = vunpack.c.l.b16 %v2167
    %v2535 = vunpack.c.h.b16 %v2167
    %v2536 = vunpack.c.l.b16 %v2168
    %v2537 = vunpack.c.h.b16 %v2168
    %v2538 = vunpack.c.l.b16 %v2169
    %v2539 = vunpack.c.h.b16 %v2169
    %v2540 = vunpack.c.l.b16 %v2170
    %v2541 = vunpack.c.h.b16 %v2170
    %v2542 = vunpack.c.l.b16 %v2171
    %v2543 = vunpack.c.h.b16 %v2171
    %v2544 = vunpack.c.l.b16 %v2172
    %v2545 = vunpack.c.h.b16 %v2172
    %v2546 = vunpack.c.l.b16 %v2173
    %v2547 = vunpack.c.h.b16 %v2173
    %v2548 = vunpack.c.l.b16 %v2174
    %v2549 = vunpack.c.h.b16 %v2174
    %v2550 = vunpack.c.l.b16 %v2175
    %v2551 = vunpack.c.h.b16 %v2175
    %v2552 = vunpack.c.l.b16 %v2176
    %v2553 = vunpack.c.h.b16 %v2176
    %v2554 = vunpack.c.l.b16 %v2177
    %v2555 = vunpack.c.h.b16 %v2177
    %v2556 = vunpack.c.l.b16 %v2178
    %v2557 = vunpack.c.h.b16 %v2178
    %v2558 = vunpack.c.l.b16 %v2179
    %v2559 = vunpack.c.h.b16 %v2179
    %v2560 = vunpack.c.l.b16 %v2180
    %v2561 = vunpack.c.h.b16 %v2180
    %v2562 = vunpack.c.l.b16 %v2181
    %v2563 = vunpack.c.h.b16 %v2181
    %v2564 = vunpack.c.l.b16 %v2182
    %v2565 = vunpack.c.h.b16 %v2182
    %v2566 = vunpack.c.l.b16 %v2183
    %v2567 = vunpack.c.h.b16 %v2183
    %v2568 = vunpack.c.l.b16 %v2184
    %v2569 = vunpack.c.h.b16 %v2184
    %v2570 = vunpack.c.l.b16 %v2185
    %v2571 = vunpack.c.h.b16 %v2185
    %v2572 = vunpack.c.l.b16 %v2186
    %v2573 = vunpack.c.h.b16 %v2186
    %v2574 = vunpack.c.l.b16 %v2187
    %v2575 = vunpack.c.h.b16 %v2187
    %v2576 = vunpack.c.l.b16 %v2188
    %v2577 = vunpack.c.h.b16 %v2188
    %v2578 = vunpack.c.l.b16 %v2189
    %v2579 = vunpack.c.h.b16 %v2189
    %v2580 = vunpack.c.l.b16 %v2190
    %v2581 = vunpack.c.h.b16 %v2190
    %v2582 = vunpack.c.l.b16 %v2191
    %v2583 = vunpack.c.h.b16 %v2191
    %v2584 = vunpack.c.l.b16 %v2192
    %v2585 = vunpack.c.h.b16 %v2192
    %v2586 = vunpack.c.l.b16 %v2193
    %v2587 = vunpack.c.h.b16 %v2193
    %v2588 = vunpack.c.l.b16 %v2194
    %v2589 = vunpack.c.h.b16 %v2194
    %v2590 = vunpack.c.l.b16 %v2195
    %v2591 = vunpack.c.h.b16 %v2195
    %v2592 = vunpack.c.l.b16 %v2196
    %v2593 = vunpack.c.h.b16 %v2196
    %v2594 = vunpack.c.l.b16 %v2197
    %v2595 = vunpack.c.h.b16 %v2197
    %v2596 = vunpack.c.l.b16 %v2198
    %v2597 = vunpack.c.h.b16 %v2198
    %v2598 = vunpack.c.l.b16 %v2199
    %v2599 = vunpack.c.h.b16 %v2199
    %v2600 = vunpack.c.l.b16 %v2200
    %v2601 = vunpack.c.h.b16 %v2200
    %v2602 = vpack.c.b16 %v2354, %v2346
    %v2603 = vpack.c.b16 %v2355, %v2347
    %v2604 = vpack.c.b16 %v2356, %v2348
    %v2605 = vpack.c.b16 %v2357, %v2349
    %v2606 = vpack.c.b16 %v2358, %v2350
    %v2607 = vpack.c.b16 %v2359, %v2351
    %v2608 = vpack.c.b16 %v2360, %v2352
    %v2609 = vpack.c.b16 %v2361, %v2353
    %v2610 = vpack.c.b16 %v2370, %v2362
    %v2611 = vpack.c.b16 %v2371, %v2363
    %v2612 = vpack.c.b16 %v2372, %v2364
    %v2613 = vpack.c.b16 %v2373, %v2365
    %v2614 = vpack.c.b16 %v2374, %v2366
    %v2615 = vpack.c.b16 %v2375, %v2367
    %v2616 = vpack.c.b16 %v2376, %v2368
    %v2617 = vpack.c.b16 %v2377, %v2369
    %v2618 = vpack.c.b16 %v2386, %v2378
    %v2619 = vpack.c.b16 %v2387, %v2379
    %v2620 = vpack.c.b16 %v2388, %v2380
    %v2621 = vpack.c.b16 %v2389, %v2381
    %v2622 = vpack.c.b16 %v2390, %v2382
    %v2623 = vpack.c.b16 %v2391, %v2383
    %v2624 = vpack.c.b16 %v2392, %v2384
    %v2625 = vpack.c.b16 %v2393, %v2385
    %v2626 = vpack.c.b16 %v2402, %v2394
    %v2627 = vpack.c.b16 %v2403, %v2395
    %v2628 = vpack.c.b16 %v2404, %v2396
    %v2629 = vpack.c.b16 %v2405, %v2397
    %v2630 = vpack.c.b16 %v2406, %v2398
    %v2631 = vpack.c.b16 %v2407, %v2399
    %v2632 = vpack.c.b16 %v2408, %v2400
    %v2633 = vpack.c.b16 %v2409, %v2401
    %v2634 = vpack.c.b16 %v2418, %v2410
    %v2635 = vpack.c.b16 %v2419, %v2411
    %v2636 = vpack.c.b16 %v2420, %v2412
    %v2637 = vpack.c.b16 %v2421, %v2413
    %v2638 = vpack.c.b16 %v2422, %v2414
    %v2639 = vpack.c.b16 %v2423, %v2415
    %v2640 = vpack.c.b16 %v2424, %v2416
    %v2641 = vpack.c.b16 %v2425, %v2417
    %v2642 = vpack.c.b16 %v2434, %v2426
    %v2643 = vpack.c.b16 %v2435, %v2427
    %v2644 = vpack.c.b16 %v2436, %v2428
    %v2645 = vpack.c.b16 %v2437, %v2429
    %v2646 = vpack.c.b16 %v2438, %v2430
    %v2647 = vpack.c.b16 %v2439, %v2431
    %v2648 = vpack.c.b16 %v2440, %v2432
    %v2649 = vpack.c.b16 %v2441, %v2433
    %v2650 = vpack.c.b16 %v2450, %v2442
    %v2651 = vpack.c.b16 %v2451, %v2443
    %v2652 = vpack.c.b16 %v2452, %v2444
    %v2653 = vpack.c.b16 %v2453, %v2445
    %v2654 = vpack.c.b16 %v2454, %v2446
    %v2655 = vpack.c.b16 %v2455, %v2447
    %v2656 = vpack.c.b16 %v2456, %v2448
    %v2657 = vpack.c.b16 %v2457, %v2449
    %v2658 = vpack.c.b16 %v2466, %v2458
    %v2659 = vpack.c.b16 %v2467, %v2459
    %v2660 = vpack.c.b16 %v2468, %v2460
    %v2661 = vpack.c.b16 %v2469, %v2461
    %v2662 = vpack.c.b16 %v2470, %v2462
    %v2663 = vpack.c.b16 %v2471, %v2463
    %v2664 = vpack.c.b16 %v2472, %v2464
    %v2665 = vpack.c.b16 %v2473, %v2465
    %v2666 = vpack.c.b16 %v2482, %v2474
    %v2667 = vpack.c.b16 %v2483, %v2475
    %v2668 = vpack.c.b16 %v2484, %v2476
    %v2669 = vpack.c.b16 %v2485, %v2477
    %v2670 = vpack.c.b16 %v2486, %v2478
    %v2671 = vpack.c.b16 %v2487, %v2479
    %v2672 = vpack.c.b16 %v2488, %v2480
    %v2673 = vpack.c.b16 %v2489, %v2481
    %v2674 = vpack.c.b16 %v2498, %v2490
    %v2675 = vpack.c.b16 %v2499, %v2491
    %v2676 = vpack.c.b16 %v2500, %v2492
    %v2677 = vpack.c.b16 %v2501, %v2493
    %v2678 = vpack.c.b16 %v2502, %v2494
    %v2679 = vpack.c.b16 %v2503, %v2495
    %v2680 = vpack.c.b16 %v2504, %v2496
    %v2681 = vpack.c.b16 %v2505, %v2497
    %v2682 = vpack.c.b16 %v2514, %v2506
    %v2683 = vpack.c.b16 %v2515, %v2507
    %v2684 = vpack.c.b16 %v2516, %v2508
    %v2685 = vpack.c.b16 %v2517, %v2509
    %v2686 = vpack.c.b16 %v2518, %v2510
    %v2687 = vpack.c.b16 %v2519, %v2511
    %v2688 = vpack.c.b16 %v2520, %v2512
    %v2689 = vpack.c.b16 %v2521, %v2513
    %v2690 = vpack.c.b16 %v2530, %v2522
    %v2691 = vpack.c.b16 %v2531, %v2523
    %v2692 = vpack.c.b16 %v2532, %v2524
    %v2693 = vpack.c.b16 %v2533, %v2525
    %v2694 = vpack.c.b16 %v2534, %v2526
    %v2695 = vpack.c.b16 %v2535, %v2527
    %v2696 = vpack.c.b16 %v2536, %v2528
    %v2697 = vpack.c.b16 %v2537, %v2529
    %v2698 = vpack.c.b16 %v2546, %v2538
    %v2699 = vpack.c.b16 %v2547, %v2539
    %v2700 = vpack.c.b16 %v2548, %v2540
    %v2701 = vpack.c.b16 %v2549, %v2541
    %v2702 = vpack.c.b16 %v2550, %v2542
    %v2703 = vpack.c.b16 %v2551, %v2543
    %v2704 = vpack.c.b16 %v2552, %v2544
    %v2705 = vpack.c.b16 %v2553, %v2545
    %v2706 = vpack.c.b16 %v2562, %v2554
    %v2707 = vpack.c.b16 %v2563, %v2555
    %v2708 = vpack.c.b16 %v2564, %v2556
    %v2709 = vpack.c.b16 %v2565, %v2557
    %v2710 = vpack.c.b16 %v2566, %v2558
    %v2711 = vpack.c.b16 %v2567, %v2559
    %v2712 = vpack.c.b16 %v2568, %v2560
    %v2713 = vpack.c.b16 %v2569, %v2561
    %v2714 = vpack.c.b16 %v2578, %v2570
    %v2715 = vpack.c.b16 %v2579, %v2571
    %v2716 = vpack.c.b16 %v2580, %v2572
    %v2717 = vpack.c.b16 %v2581, %v2573
    %v2718 = vpack.c.b16 %v2582, %v2574
    %v2719 = vpack.c.b16 %v2583, %v2575
    %v2720 = vpack.c.b16 %v2584, %v2576
    %v2721 = vpack.c.b16 %v2585, %v2577
    %v2722 = vpack.c.b16 %v2594, %v2586
    %v2723 = vpack.c.b16 %v2595, %v2587
    %v2724 = vpack.c.b16 %v2596, %v2588
    %v2725 = vpack.c.b16 %v2597, %v2589
    %v2726 = vpack.c.b16 %v2598, %v2590
    %v2727 = vpack.c.b16 %v2599, %v2591
    %v2728 = vpack.c.b16 %v2600, %v2592
    %v2729 = vpack.c.b16 %v2601, %v2593
    %2858 = vmatpush.bf16.msra.mxu0 %v2658
    %2859 = vmatpush.bf16.msra.mxu0 %v2650
    %2860 = vmatpush.bf16.msra.mxu0 %v2642
    %2861 = vmatpush.bf16.msra.mxu0 %v2634
    %2862 = vmatpush.bf16.msra.mxu0 %v2626
    %2863 = vmatpush.bf16.msra.mxu0 %v2618
    %2864 = vmatpush.bf16.msra.mxu0 %v2610
    %2865 = vmatpush.bf16.msra.mxu0 %v2602
    %2866 = vmatmul.bf16.gmra.mxu0 %v2216
    %v2867 = vpop.f32.mrf.mxu0
    %v2868 = vadd.f32 0.0, %v2867
    %v2869 = vpop.f32.mrf.mxu0
    %2870 = vdwg.mxu0
    %2871 = vmatpush.bf16.msra.mxu0 %v2722
    %2872 = vmatpush.bf16.msra.mxu0 %v2714
    %2873 = vmatpush.bf16.msra.mxu0 %v2706
    %2874 = vmatpush.bf16.msra.mxu0 %v2698
    %2875 = vmatpush.bf16.msra.mxu0 %v2690
    %2876 = vmatpush.bf16.msra.mxu0 %v2682
    %2877 = vmatpush.bf16.msra.mxu0 %v2674
    %2878 = vmatpush.bf16.msra.mxu0 %v2666
    %2879 = vmatmul.bf16.gmra.mxu0 %v2217
    %v2880 = vpop.f32.mrf.mxu0
    %v2881 = vadd.f32 %v2868, %v2880
    %v2882 = vpop.f32.mrf.mxu0
    %2883 = vdwg.mxu0
    %2884 = vmatpush.bf16.msra.mxu0 %v2659
    %2885 = vmatpush.bf16.msra.mxu0 %v2651
    %2886 = vmatpush.bf16.msra.mxu0 %v2643
    %2887 = vmatpush.bf16.msra.mxu0 %v2635
    %2888 = vmatpush.bf16.msra.mxu0 %v2627
    %2889 = vmatpush.bf16.msra.mxu0 %v2619
    %2890 = vmatpush.bf16.msra.mxu0 %v2611
    %2891 = vmatpush.bf16.msra.mxu0 %v2603
    %2892 = vmatmul.bf16.gmra.mxu0 %v2216
    %v2893 = vpop.f32.mrf.mxu0
    %v2894 = vadd.f32 0.0, %v2893
    %v2895 = vpop.f32.mrf.mxu0
    %2896 = vdwg.mxu0
    %2897 = vmatpush.bf16.msra.mxu0 %v2723
    %2898 = vmatpush.bf16.msra.mxu0 %v2715
    %2899 = vmatpush.bf16.msra.mxu0 %v2707
    %2900 = vmatpush.bf16.msra.mxu0 %v2699
    %2901 = vmatpush.bf16.msra.mxu0 %v2691
    %2902 = vmatpush.bf16.msra.mxu0 %v2683
    %2903 = vmatpush.bf16.msra.mxu0 %v2675
    %2904 = vmatpush.bf16.msra.mxu0 %v2667
    %2905 = vmatmul.bf16.gmra.mxu0 %v2217
    %v2906 = vpop.f32.mrf.mxu0
    %v2907 = vadd.f32 %v2894, %v2906
    %v2908 = vpop.f32.mrf.mxu0
    %2909 = vdwg.mxu0
    %2910 = vmatpush.bf16.msra.mxu0 %v2660
    %2911 = vmatpush.bf16.msra.mxu0 %v2652
    %2912 = vmatpush.bf16.msra.mxu0 %v2644
    %2913 = vmatpush.bf16.msra.mxu0 %v2636
    %2914 = vmatpush.bf16.msra.mxu0 %v2628
    %2915 = vmatpush.bf16.msra.mxu0 %v2620
    %2916 = vmatpush.bf16.msra.mxu0 %v2612
    %2917 = vmatpush.bf16.msra.mxu0 %v2604
    %2918 = vmatmul.bf16.gmra.mxu0 %v2216
    %v2919 = vpop.f32.mrf.mxu0
    %v2920 = vadd.f32 0.0, %v2919
    %v2921 = vpop.f32.mrf.mxu0
    %2922 = vdwg.mxu0
    %2923 = vmatpush.bf16.msra.mxu0 %v2724
    %2924 = vmatpush.bf16.msra.mxu0 %v2716
    %2925 = vmatpush.bf16.msra.mxu0 %v2708
    %2926 = vmatpush.bf16.msra.mxu0 %v2700
    %2927 = vmatpush.bf16.msra.mxu0 %v2692
    %2928 = vmatpush.bf16.msra.mxu0 %v2684
    %2929 = vmatpush.bf16.msra.mxu0 %v2676
    %2930 = vmatpush.bf16.msra.mxu0 %v2668
    %2931 = vmatmul.bf16.gmra.mxu0 %v2217
    %v2932 = vpop.f32.mrf.mxu0
    %v2933 = vadd.f32 %v2920, %v2932
    %v2934 = vpop.f32.mrf.mxu0
    %2935 = vdwg.mxu0
    %2936 = vmatpush.bf16.msra.mxu0 %v2661
    %2937 = vmatpush.bf16.msra.mxu0 %v2653
    %2938 = vmatpush.bf16.msra.mxu0 %v2645
    %2939 = vmatpush.bf16.msra.mxu0 %v2637
    %2940 = vmatpush.bf16.msra.mxu0 %v2629
    %2941 = vmatpush.bf16.msra.mxu0 %v2621
    %2942 = vmatpush.bf16.msra.mxu0 %v2613
    %2943 = vmatpush.bf16.msra.mxu0 %v2605
    %2944 = vmatmul.bf16.gmra.mxu0 %v2216
    %v2945 = vpop.f32.mrf.mxu0
    %v2946 = vadd.f32 0.0, %v2945
    %v2947 = vpop.f32.mrf.mxu0
    %2948 = vdwg.mxu0
    %2949 = vmatpush.bf16.msra.mxu0 %v2725
    %2950 = vmatpush.bf16.msra.mxu0 %v2717
    %2951 = vmatpush.bf16.msra.mxu0 %v2709
    %2952 = vmatpush.bf16.msra.mxu0 %v2701
    %2953 = vmatpush.bf16.msra.mxu0 %v2693
    %2954 = vmatpush.bf16.msra.mxu0 %v2685
    %2955 = vmatpush.bf16.msra.mxu0 %v2677
    %2956 = vmatpush.bf16.msra.mxu0 %v2669
    %2957 = vmatmul.bf16.gmra.mxu0 %v2217
    %v2958 = vpop.f32.mrf.mxu0
    %v2959 = vadd.f32 %v2946, %v2958
    %v2960 = vpop.f32.mrf.mxu0
    %2961 = vdwg.mxu0
    %2962 = vmatpush.bf16.msra.mxu0 %v2662
    %2963 = vmatpush.bf16.msra.mxu0 %v2654
    %2964 = vmatpush.bf16.msra.mxu0 %v2646
    %2965 = vmatpush.bf16.msra.mxu0 %v2638
    %2966 = vmatpush.bf16.msra.mxu0 %v2630
    %2967 = vmatpush.bf16.msra.mxu0 %v2622
    %2968 = vmatpush.bf16.msra.mxu0 %v2614
    %2969 = vmatpush.bf16.msra.mxu0 %v2606
    %2970 = vmatmul.bf16.gmra.mxu0 %v2216
    %v2971 = vpop.f32.mrf.mxu0
    %v2972 = vadd.f32 0.0, %v2971
    %v2973 = vpop.f32.mrf.mxu0
    %2974 = vdwg.mxu0
    %2975 = vmatpush.bf16.msra.mxu0 %v2726
    %2976 = vmatpush.bf16.msra.mxu0 %v2718
    %2977 = vmatpush.bf16.msra.mxu0 %v2710
    %2978 = vmatpush.bf16.msra.mxu0 %v2702
    %2979 = vmatpush.bf16.msra.mxu0 %v2694
    %2980 = vmatpush.bf16.msra.mxu0 %v2686
    %2981 = vmatpush.bf16.msra.mxu0 %v2678
    %2982 = vmatpush.bf16.msra.mxu0 %v2670
    %2983 = vmatmul.bf16.gmra.mxu0 %v2217
    %v2984 = vpop.f32.mrf.mxu0
    %v2985 = vadd.f32 %v2972, %v2984
    %v2986 = vpop.f32.mrf.mxu0
    %2987 = vdwg.mxu0
    %2988 = vmatpush.bf16.msra.mxu0 %v2663
    %2989 = vmatpush.bf16.msra.mxu0 %v2655
    %2990 = vmatpush.bf16.msra.mxu0 %v2647
    %2991 = vmatpush.bf16.msra.mxu0 %v2639
    %2992 = vmatpush.bf16.msra.mxu0 %v2631
    %2993 = vmatpush.bf16.msra.mxu0 %v2623
    %2994 = vmatpush.bf16.msra.mxu0 %v2615
    %2995 = vmatpush.bf16.msra.mxu0 %v2607
    %2996 = vmatmul.bf16.gmra.mxu0 %v2216
    %v2997 = vpop.f32.mrf.mxu0
    %v2998 = vadd.f32 0.0, %v2997
    %v2999 = vpop.f32.mrf.mxu0
    %3000 = vdwg.mxu0
    %3001 = vmatpush.bf16.msra.mxu0 %v2727
    %3002 = vmatpush.bf16.msra.mxu0 %v2719
    %3003 = vmatpush.bf16.msra.mxu0 %v2711
    %3004 = vmatpush.bf16.msra.mxu0 %v2703
    %3005 = vmatpush.bf16.msra.mxu0 %v2695
    %3006 = vmatpush.bf16.msra.mxu0 %v2687
    %3007 = vmatpush.bf16.msra.mxu0 %v2679
    %3008 = vmatpush.bf16.msra.mxu0 %v2671
    %3009 = vmatmul.bf16.gmra.mxu0 %v2217
    %v3010 = vpop.f32.mrf.mxu0
    %v3011 = vadd.f32 %v2998, %v3010
    %v3012 = vpop.f32.mrf.mxu0
    %3013 = vdwg.mxu0
    %3014 = vmatpush.bf16.msra.mxu0 %v2664
    %3015 = vmatpush.bf16.msra.mxu0 %v2656
    %3016 = vmatpush.bf16.msra.mxu0 %v2648
    %3017 = vmatpush.bf16.msra.mxu0 %v2640
    %3018 = vmatpush.bf16.msra.mxu0 %v2632
    %3019 = vmatpush.bf16.msra.mxu0 %v2624
    %3020 = vmatpush.bf16.msra.mxu0 %v2616
    %3021 = vmatpush.bf16.msra.mxu0 %v2608
    %3022 = vmatmul.bf16.gmra.mxu0 %v2216
    %v3023 = vpop.f32.mrf.mxu0
    %v3024 = vadd.f32 0.0, %v3023
    %v3025 = vpop.f32.mrf.mxu0
    %3026 = vdwg.mxu0
    %3027 = vmatpush.bf16.msra.mxu0 %v2728
    %3028 = vmatpush.bf16.msra.mxu0 %v2720
    %3029 = vmatpush.bf16.msra.mxu0 %v2712
    %3030 = vmatpush.bf16.msra.mxu0 %v2704
    %3031 = vmatpush.bf16.msra.mxu0 %v2696
    %3032 = vmatpush.bf16.msra.mxu0 %v2688
    %3033 = vmatpush.bf16.msra.mxu0 %v2680
    %3034 = vmatpush.bf16.msra.mxu0 %v2672
    %3035 = vmatmul.bf16.gmra.mxu0 %v2217
    %v3036 = vpop.f32.mrf.mxu0
    %v3037 = vadd.f32 %v3024, %v3036
    %v3038 = vpop.f32.mrf.mxu0
    %3039 = vdwg.mxu0
    %3040 = vmatpush.bf16.msra.mxu0 %v2665
    %3041 = vmatpush.bf16.msra.mxu0 %v2657
    %3042 = vmatpush.bf16.msra.mxu0 %v2649
    %3043 = vmatpush.bf16.msra.mxu0 %v2641
    %3044 = vmatpush.bf16.msra.mxu0 %v2633
    %3045 = vmatpush.bf16.msra.mxu0 %v2625
    %3046 = vmatpush.bf16.msra.mxu0 %v2617
    %3047 = vmatpush.bf16.msra.mxu0 %v2609
    %3048 = vmatmul.bf16.gmra.mxu0 %v2216
    %v3049 = vpop.f32.mrf.mxu0
    %v3050 = vadd.f32 0.0, %v3049
    %v3051 = vpop.f32.mrf.mxu0
    %3052 = vdwg.mxu0
    %3053 = vmatpush.bf16.msra.mxu0 %v2729
    %3054 = vmatpush.bf16.msra.mxu0 %v2721
    %3055 = vmatpush.bf16.msra.mxu0 %v2713
    %3056 = vmatpush.bf16.msra.mxu0 %v2705
    %3057 = vmatpush.bf16.msra.mxu0 %v2697
    %3058 = vmatpush.bf16.msra.mxu0 %v2689
    %3059 = vmatpush.bf16.msra.mxu0 %v2681
    %3060 = vmatpush.bf16.msra.mxu0 %v2673
    %3061 = vmatmul.bf16.gmra.mxu0 %v2217
    %v3062 = vpop.f32.mrf.mxu0
    %v3063 = vadd.f32 %v3050, %v3062
    %v3064 = vpop.f32.mrf.mxu0
    %3065 = vdwg.mxu0
    %v3066 = vadd.f32 %v2208, %v2881
    %v3067 = vadd.f32 %v2209, %v2907
    %v3068 = vadd.f32 %v2210, %v2933
    %v3069 = vadd.f32 %v2211, %v2959
    %v3070 = vadd.f32 %v2212, %v2985
    %v3071 = vadd.f32 %v2213, %v3011
    %v3072 = vadd.f32 %v2214, %v3037
    %v3073 = vadd.f32 %v2215, %v3063
    %v3074 = vmul.f32 %v3066, 0.5
    %v3075 = vmul.f32 %v3067, 0.5
    %v3076 = vtanh.pop %v3074
    %v3077 = vtanh.pop %v3075
    %v3078 = vadd.f32 %v3076, 1.0
    %v3079 = vadd.f32 %v3077, 1.0
    %v3080 = vmul.f32 %v3078, 0.5
    %v3081 = vmul.f32 %v3079, 0.5
    %v3082 = vmul.f32 %v3068, 0.5
    %v3083 = vmul.f32 %v3069, 0.5
    %v3084 = vtanh.pop %v3082
    %v3085 = vtanh.pop %v3083
    %v3086 = vadd.f32 %v3084, 1.0
    %v3087 = vadd.f32 %v3085, 1.0
    %v3088 = vmul.f32 %v3086, 0.5
    %v3089 = vmul.f32 %v3087, 0.5
    %v3090 = vtanh.pop %v3070
    %v3091 = vtanh.pop %v3071
    %v3092 = vmul.f32 %v3072, 0.5
    %v3093 = vmul.f32 %v3073, 0.5
    %v3094 = vtanh.pop %v3092
    %v3095 = vtanh.pop %v3093
    %v3096 = vadd.f32 %v3094, 1.0
    %v3097 = vadd.f32 %v3095, 1.0
    %v3098 = vmul.f32 %v3096, 0.5
    %v3099 = vmul.f32 %v3097, 0.5
    %v3100 = vmul.f32 %v3088, %v2203
    %v3101 = vmul.f32 %v3089, %v2204
    %v3102 = vmul.f32 %v3080, %v3090
    %v3103 = vmul.f32 %v3081, %v3091
    %v3104 = vadd.f32 %v3100, %v3102
    %v3105 = vadd.f32 %v3101, %v3103
    %v3106 = vtanh.pop %v3104
    %v3107 = vtanh.pop %v3105
    %v3108 = vmul.f32 %v3098, %v3106
    %v3109 = vmul.f32 %v3099, %v3107
    %s3110 = smul.u32 1, 8
    %s3111 = smul.addr %s3110, 8
    %s3112 = scalar_lea.vmem [#allocation2], %s3111
    %v3113 = vld [vmem:[%s3112] sm:$0xff]
    %v3114 = vld [vmem:[%s3112 + $0x8] sm:$0xff]
    %v3115 = vld [vmem:[%s3112 + $0x10] sm:$0xff]
    %v3116 = vld [vmem:[%s3112 + $0x18] sm:$0xff]
    %v3117 = vld [vmem:[%s3112 + $0x20] sm:$0xff]
    %v3118 = vld [vmem:[%s3112 + $0x28] sm:$0xff]
    %v3119 = vld [vmem:[%s3112 + $0x30] sm:$0xff]
    %v3120 = vld [vmem:[%s3112 + $0x38] sm:$0xff]
    %v3121 = vpack.c.bf16 %v3108, %v3108
    %v3122 = vpack.c.bf16 %v3109, %v3109
    %3123 = vmatpush.bf16.msra.mxu0 %v2658
    %3124 = vmatpush.bf16.msra.mxu0 %v2650
    %3125 = vmatpush.bf16.msra.mxu0 %v2642
    %3126 = vmatpush.bf16.msra.mxu0 %v2634
    %3127 = vmatpush.bf16.msra.mxu0 %v2626
    %3128 = vmatpush.bf16.msra.mxu0 %v2618
    %3129 = vmatpush.bf16.msra.mxu0 %v2610
    %3130 = vmatpush.bf16.msra.mxu0 %v2602
    %3131 = vmatmul.bf16.gmra.mxu0 %v3121
    %v3132 = vpop.f32.mrf.mxu0
    %v3133 = vadd.f32 0.0, %v3132
    %v3134 = vpop.f32.mrf.mxu0
    %3135 = vdwg.mxu0
    %3136 = vmatpush.bf16.msra.mxu0 %v2722
    %3137 = vmatpush.bf16.msra.mxu0 %v2714
    %3138 = vmatpush.bf16.msra.mxu0 %v2706
    %3139 = vmatpush.bf16.msra.mxu0 %v2698
    %3140 = vmatpush.bf16.msra.mxu0 %v2690
    %3141 = vmatpush.bf16.msra.mxu0 %v2682
    %3142 = vmatpush.bf16.msra.mxu0 %v2674
    %3143 = vmatpush.bf16.msra.mxu0 %v2666
    %3144 = vmatmul.bf16.gmra.mxu0 %v3122
    %v3145 = vpop.f32.mrf.mxu0
    %v3146 = vadd.f32 %v3133, %v3145
    %v3147 = vpop.f32.mrf.mxu0
    %3148 = vdwg.mxu0
    %3149 = vmatpush.bf16.msra.mxu0 %v2659
    %3150 = vmatpush.bf16.msra.mxu0 %v2651
    %3151 = vmatpush.bf16.msra.mxu0 %v2643
    %3152 = vmatpush.bf16.msra.mxu0 %v2635
    %3153 = vmatpush.bf16.msra.mxu0 %v2627
    %3154 = vmatpush.bf16.msra.mxu0 %v2619
    %3155 = vmatpush.bf16.msra.mxu0 %v2611
    %3156 = vmatpush.bf16.msra.mxu0 %v2603
    %3157 = vmatmul.bf16.gmra.mxu0 %v3121
    %v3158 = vpop.f32.mrf.mxu0
    %v3159 = vadd.f32 0.0, %v3158
    %v3160 = vpop.f32.mrf.mxu0
    %3161 = vdwg.mxu0
    %3162 = vmatpush.bf16.msra.mxu0 %v2723
    %3163 = vmatpush.bf16.msra.mxu0 %v2715
    %3164 = vmatpush.bf16.msra.mxu0 %v2707
    %3165 = vmatpush.bf16.msra.mxu0 %v2699
    %3166 = vmatpush.bf16.msra.mxu0 %v2691
    %3167 = vmatpush.bf16.msra.mxu0 %v2683
    %3168 = vmatpush.bf16.msra.mxu0 %v2675
    %3169 = vmatpush.bf16.msra.mxu0 %v2667
    %3170 = vmatmul.bf16.gmra.mxu0 %v3122
    %v3171 = vpop.f32.mrf.mxu0
    %v3172 = vadd.f32 %v3159, %v3171
    %v3173 = vpop.f32.mrf.mxu0
    %3174 = vdwg.mxu0
    %3175 = vmatpush.bf16.msra.mxu0 %v2660
    %3176 = vmatpush.bf16.msra.mxu0 %v2652
    %3177 = vmatpush.bf16.msra.mxu0 %v2644
    %3178 = vmatpush.bf16.msra.mxu0 %v2636
    %3179 = vmatpush.bf16.msra.mxu0 %v2628
    %3180 = vmatpush.bf16.msra.mxu0 %v2620
    %3181 = vmatpush.bf16.msra.mxu0 %v2612
    %3182 = vmatpush.bf16.msra.mxu0 %v2604
    %3183 = vmatmul.bf16.gmra.mxu0 %v3121
    %v3184 = vpop.f32.mrf.mxu0
    %v3185 = vadd.f32 0.0, %v3184
    %v3186 = vpop.f32.mrf.mxu0
    %3187 = vdwg.mxu0
    %3188 = vmatpush.bf16.msra.mxu0 %v2724
    %3189 = vmatpush.bf16.msra.mxu0 %v2716
    %3190 = vmatpush.bf16.msra.mxu0 %v2708
    %3191 = vmatpush.bf16.msra.mxu0 %v2700
    %3192 = vmatpush.bf16.msra.mxu0 %v2692
    %3193 = vmatpush.bf16.msra.mxu0 %v2684
    %3194 = vmatpush.bf16.msra.mxu0 %v2676
    %3195 = vmatpush.bf16.msra.mxu0 %v2668
    %3196 = vmatmul.bf16.gmra.mxu0 %v3122
    %v3197 = vpop.f32.mrf.mxu0
    %v3198 = vadd.f32 %v3185, %v3197
    %v3199 = vpop.f32.mrf.mxu0
    %3200 = vdwg.mxu0
    %3201 = vmatpush.bf16.msra.mxu0 %v2661
    %3202 = vmatpush.bf16.msra.mxu0 %v2653
    %3203 = vmatpush.bf16.msra.mxu0 %v2645
    %3204 = vmatpush.bf16.msra.mxu0 %v2637
    %3205 = vmatpush.bf16.msra.mxu0 %v2629
    %3206 = vmatpush.bf16.msra.mxu0 %v2621
    %3207 = vmatpush.bf16.msra.mxu0 %v2613
    %3208 = vmatpush.bf16.msra.mxu0 %v2605
    %3209 = vmatmul.bf16.gmra.mxu0 %v3121
    %v3210 = vpop.f32.mrf.mxu0
    %v3211 = vadd.f32 0.0, %v3210
    %v3212 = vpop.f32.mrf.mxu0
    %3213 = vdwg.mxu0
    %3214 = vmatpush.bf16.msra.mxu0 %v2725
    %3215 = vmatpush.bf16.msra.mxu0 %v2717
    %3216 = vmatpush.bf16.msra.mxu0 %v2709
    %3217 = vmatpush.bf16.msra.mxu0 %v2701
    %3218 = vmatpush.bf16.msra.mxu0 %v2693
    %3219 = vmatpush.bf16.msra.mxu0 %v2685
    %3220 = vmatpush.bf16.msra.mxu0 %v2677
    %3221 = vmatpush.bf16.msra.mxu0 %v2669
    %3222 = vmatmul.bf16.gmra.mxu0 %v3122
    %v3223 = vpop.f32.mrf.mxu0
    %v3224 = vadd.f32 %v3211, %v3223
    %v3225 = vpop.f32.mrf.mxu0
    %3226 = vdwg.mxu0
    %3227 = vmatpush.bf16.msra.mxu0 %v2662
    %3228 = vmatpush.bf16.msra.mxu0 %v2654
    %3229 = vmatpush.bf16.msra.mxu0 %v2646
    %3230 = vmatpush.bf16.msra.mxu0 %v2638
    %3231 = vmatpush.bf16.msra.mxu0 %v2630
    %3232 = vmatpush.bf16.msra.mxu0 %v2622
    %3233 = vmatpush.bf16.msra.mxu0 %v2614
    %3234 = vmatpush.bf16.msra.mxu0 %v2606
    %3235 = vmatmul.bf16.gmra.mxu0 %v3121
    %v3236 = vpop.f32.mrf.mxu0
    %v3237 = vadd.f32 0.0, %v3236
    %v3238 = vpop.f32.mrf.mxu0
    %3239 = vdwg.mxu0
    %3240 = vmatpush.bf16.msra.mxu0 %v2726
    %3241 = vmatpush.bf16.msra.mxu0 %v2718
    %3242 = vmatpush.bf16.msra.mxu0 %v2710
    %3243 = vmatpush.bf16.msra.mxu0 %v2702
    %3244 = vmatpush.bf16.msra.mxu0 %v2694
    %3245 = vmatpush.bf16.msra.mxu0 %v2686
    %3246 = vmatpush.bf16.msra.mxu0 %v2678
    %3247 = vmatpush.bf16.msra.mxu0 %v2670
    %3248 = vmatmul.bf16.gmra.mxu0 %v3122
    %v3249 = vpop.f32.mrf.mxu0
    %v3250 = vadd.f32 %v3237, %v3249
    %v3251 = vpop.f32.mrf.mxu0
    %3252 = vdwg.mxu0
    %3253 = vmatpush.bf16.msra.mxu0 %v2663
    %3254 = vmatpush.bf16.msra.mxu0 %v2655
    %3255 = vmatpush.bf16.msra.mxu0 %v2647
    %3256 = vmatpush.bf16.msra.mxu0 %v2639
    %3257 = vmatpush.bf16.msra.mxu0 %v2631
    %3258 = vmatpush.bf16.msra.mxu0 %v2623
    %3259 = vmatpush.bf16.msra.mxu0 %v2615
    %3260 = vmatpush.bf16.msra.mxu0 %v2607
    %3261 = vmatmul.bf16.gmra.mxu0 %v3121
    %v3262 = vpop.f32.mrf.mxu0
    %v3263 = vadd.f32 0.0, %v3262
    %v3264 = vpop.f32.mrf.mxu0
    %3265 = vdwg.mxu0
    %3266 = vmatpush.bf16.msra.mxu0 %v2727
    %3267 = vmatpush.bf16.msra.mxu0 %v2719
    %3268 = vmatpush.bf16.msra.mxu0 %v2711
    %3269 = vmatpush.bf16.msra.mxu0 %v2703
    %3270 = vmatpush.bf16.msra.mxu0 %v2695
    %3271 = vmatpush.bf16.msra.mxu0 %v2687
    %3272 = vmatpush.bf16.msra.mxu0 %v2679
    %3273 = vmatpush.bf16.msra.mxu0 %v2671
    %3274 = vmatmul.bf16.gmra.mxu0 %v3122
    %v3275 = vpop.f32.mrf.mxu0
    %v3276 = vadd.f32 %v3263, %v3275
    %v3277 = vpop.f32.mrf.mxu0
    %3278 = vdwg.mxu0
    %3279 = vmatpush.bf16.msra.mxu0 %v2664
    %3280 = vmatpush.bf16.msra.mxu0 %v2656
    %3281 = vmatpush.bf16.msra.mxu0 %v2648
    %3282 = vmatpush.bf16.msra.mxu0 %v2640
    %3283 = vmatpush.bf16.msra.mxu0 %v2632
    %3284 = vmatpush.bf16.msra.mxu0 %v2624
    %3285 = vmatpush.bf16.msra.mxu0 %v2616
    %3286 = vmatpush.bf16.msra.mxu0 %v2608
    %3287 = vmatmul.bf16.gmra.mxu0 %v3121
    %v3288 = vpop.f32.mrf.mxu0
    %v3289 = vadd.f32 0.0, %v3288
    %v3290 = vpop.f32.mrf.mxu0
    %3291 = vdwg.mxu0
    %3292 = vmatpush.bf16.msra.mxu0 %v2728
    %3293 = vmatpush.bf16.msra.mxu0 %v2720
    %3294 = vmatpush.bf16.msra.mxu0 %v2712
    %3295 = vmatpush.bf16.msra.mxu0 %v2704
    %3296 = vmatpush.bf16.msra.mxu0 %v2696
    %3297 = vmatpush.bf16.msra.mxu0 %v2688
    %3298 = vmatpush.bf16.msra.mxu0 %v2680
    %3299 = vmatpush.bf16.msra.mxu0 %v2672
    %3300 = vmatmul.bf16.gmra.mxu0 %v3122
    %v3301 = vpop.f32.mrf.mxu0
    %v3302 = vadd.f32 %v3289, %v3301
    %v3303 = vpop.f32.mrf.mxu0
    %3304 = vdwg.mxu0
    %3305 = vmatpush.bf16.msra.mxu0 %v2665
    %3306 = vmatpush.bf16.msra.mxu0 %v2657
    %3307 = vmatpush.bf16.msra.mxu0 %v2649
    %3308 = vmatpush.bf16.msra.mxu0 %v2641
    %3309 = vmatpush.bf16.msra.mxu0 %v2633
    %3310 = vmatpush.bf16.msra.mxu0 %v2625
    %3311 = vmatpush.bf16.msra.mxu0 %v2617
    %3312 = vmatpush.bf16.msra.mxu0 %v2609
    %3313 = vmatmul.bf16.gmra.mxu0 %v3121
    %v3314 = vpop.f32.mrf.mxu0
    %v3315 = vadd.f32 0.0, %v3314
    %v3316 = vpop.f32.mrf.mxu0
    %3317 = vdwg.mxu0
    %3318 = vmatpush.bf16.msra.mxu0 %v2729
    %3319 = vmatpush.bf16.msra.mxu0 %v2721
    %3320 = vmatpush.bf16.msra.mxu0 %v2713
    %3321 = vmatpush.bf16.msra.mxu0 %v2705
    %3322 = vmatpush.bf16.msra.mxu0 %v2697
    %3323 = vmatpush.bf16.msra.mxu0 %v2689
    %3324 = vmatpush.bf16.msra.mxu0 %v2681
    %3325 = vmatpush.bf16.msra.mxu0 %v2673
    %3326 = vmatmul.bf16.gmra.mxu0 %v3122
    %v3327 = vpop.f32.mrf.mxu0
    %v3328 = vadd.f32 %v3315, %v3327
    %v3329 = vpop.f32.mrf.mxu0
    %3330 = vdwg.mxu0
    %v3331 = vadd.f32 %v3113, %v3146
    %v3332 = vadd.f32 %v3114, %v3172
    %v3333 = vadd.f32 %v3115, %v3198
    %v3334 = vadd.f32 %v3116, %v3224
    %v3335 = vadd.f32 %v3117, %v3250
    %v3336 = vadd.f32 %v3118, %v3276
    %v3337 = vadd.f32 %v3119, %v3302
    %v3338 = vadd.f32 %v3120, %v3328
    %v3339 = vmul.f32 %v3331, 0.5
    %v3340 = vmul.f32 %v3332, 0.5
    %v3341 = vtanh.pop %v3339
    %v3342 = vtanh.pop %v3340
    %v3343 = vadd.f32 %v3341, 1.0
    %v3344 = vadd.f32 %v3342, 1.0
    %v3345 = vmul.f32 %v3343, 0.5
    %v3346 = vmul.f32 %v3344, 0.5
    %v3347 = vmul.f32 %v3333, 0.5
    %v3348 = vmul.f32 %v3334, 0.5
    %v3349 = vtanh.pop %v3347
    %v3350 = vtanh.pop %v3348
    %v3351 = vadd.f32 %v3349, 1.0
    %v3352 = vadd.f32 %v3350, 1.0
    %v3353 = vmul.f32 %v3351, 0.5
    %v3354 = vmul.f32 %v3352, 0.5
    %v3355 = vtanh.pop %v3335
    %v3356 = vtanh.pop %v3336
    %v3357 = vmul.f32 %v3337, 0.5
    %v3358 = vmul.f32 %v3338, 0.5
    %v3359 = vtanh.pop %v3357
    %v3360 = vtanh.pop %v3358
    %v3361 = vadd.f32 %v3359, 1.0
    %v3362 = vadd.f32 %v3360, 1.0
    %v3363 = vmul.f32 %v3361, 0.5
    %v3364 = vmul.f32 %v3362, 0.5
    %v3365 = vmul.f32 %v3353, %v3104
    %v3366 = vmul.f32 %v3354, %v3105
    %v3367 = vmul.f32 %v3345, %v3355
    %v3368 = vmul.f32 %v3346, %v3356
    %v3369 = vadd.f32 %v3365, %v3367
    %v3370 = vadd.f32 %v3366, %v3368
    %v3371 = vtanh.pop %v3369
    %v3372 = vtanh.pop %v3370
    %v3373 = vmul.f32 %v3363, %v3371
    %v3374 = vmul.f32 %v3364, %v3372
    %s3375 = smul.u32 2, 8
    %s3376 = smul.addr %s3375, 8
    %s3377 = scalar_lea.vmem [#allocation2], %s3376
    %v3378 = vld [vmem:[%s3377] sm:$0xff]
    %v3379 = vld [vmem:[%s3377 + $0x8] sm:$0xff]
    %v3380 = vld [vmem:[%s3377 + $0x10] sm:$0xff]
    %v3381 = vld [vmem:[%s3377 + $0x18] sm:$0xff]
    %v3382 = vld [vmem:[%s3377 + $0x20] sm:$0xff]
    %v3383 = vld [vmem:[%s3377 + $0x28] sm:$0xff]
    %v3384 = vld [vmem:[%s3377 + $0x30] sm:$0xff]
    %v3385 = vld [vmem:[%s3377 + $0x38] sm:$0xff]
    %v3386 = vpack.c.bf16 %v3373, %v3373
    %v3387 = vpack.c.bf16 %v3374, %v3374
    %3388 = vmatpush.bf16.msra.mxu0 %v2658
    %3389 = vmatpush.bf16.msra.mxu0 %v2650
    %3390 = vmatpush.bf16.msra.mxu0 %v2642
    %3391 = vmatpush.bf16.msra.mxu0 %v2634
    %3392 = vmatpush.bf16.msra.mxu0 %v2626
    %3393 = vmatpush.bf16.msra.mxu0 %v2618
    %3394 = vmatpush.bf16.msra.mxu0 %v2610
    %3395 = vmatpush.bf16.msra.mxu0 %v2602
    %3396 = vmatmul.bf16.gmra.mxu0 %v3386
    %v3397 = vpop.f32.mrf.mxu0
    %v3398 = vadd.f32 0.0, %v3397
    %v3399 = vpop.f32.mrf.mxu0
    %3400 = vdwg.mxu0
    %3401 = vmatpush.bf16.msra.mxu0 %v2722
    %3402 = vmatpush.bf16.msra.mxu0 %v2714
    %3403 = vmatpush.bf16.msra.mxu0 %v2706
    %3404 = vmatpush.bf16.msra.mxu0 %v2698
    %3405 = vmatpush.bf16.msra.mxu0 %v2690
    %3406 = vmatpush.bf16.msra.mxu0 %v2682
    %3407 = vmatpush.bf16.msra.mxu0 %v2674
    %3408 = vmatpush.bf16.msra.mxu0 %v2666
    %3409 = vmatmul.bf16.gmra.mxu0 %v3387
    %v3410 = vpop.f32.mrf.mxu0
    %v3411 = vadd.f32 %v3398, %v3410
    %v3412 = vpop.f32.mrf.mxu0
    %3413 = vdwg.mxu0
    %3414 = vmatpush.bf16.msra.mxu0 %v2659
    %3415 = vmatpush.bf16.msra.mxu0 %v2651
    %3416 = vmatpush.bf16.msra.mxu0 %v2643
    %3417 = vmatpush.bf16.msra.mxu0 %v2635
    %3418 = vmatpush.bf16.msra.mxu0 %v2627
    %3419 = vmatpush.bf16.msra.mxu0 %v2619
    %3420 = vmatpush.bf16.msra.mxu0 %v2611
    %3421 = vmatpush.bf16.msra.mxu0 %v2603
    %3422 = vmatmul.bf16.gmra.mxu0 %v3386
    %v3423 = vpop.f32.mrf.mxu0
    %v3424 = vadd.f32 0.0, %v3423
    %v3425 = vpop.f32.mrf.mxu0
    %3426 = vdwg.mxu0
    %3427 = vmatpush.bf16.msra.mxu0 %v2723
    %3428 = vmatpush.bf16.msra.mxu0 %v2715
    %3429 = vmatpush.bf16.msra.mxu0 %v2707
    %3430 = vmatpush.bf16.msra.mxu0 %v2699
    %3431 = vmatpush.bf16.msra.mxu0 %v2691
    %3432 = vmatpush.bf16.msra.mxu0 %v2683
    %3433 = vmatpush.bf16.msra.mxu0 %v2675
    %3434 = vmatpush.bf16.msra.mxu0 %v2667
    %3435 = vmatmul.bf16.gmra.mxu0 %v3387
    %v3436 = vpop.f32.mrf.mxu0
    %v3437 = vadd.f32 %v3424, %v3436
    %v3438 = vpop.f32.mrf.mxu0
    %3439 = vdwg.mxu0
    %3440 = vmatpush.bf16.msra.mxu0 %v2660
    %3441 = vmatpush.bf16.msra.mxu0 %v2652
    %3442 = vmatpush.bf16.msra.mxu0 %v2644
    %3443 = vmatpush.bf16.msra.mxu0 %v2636
    %3444 = vmatpush.bf16.msra.mxu0 %v2628
    %3445 = vmatpush.bf16.msra.mxu0 %v2620
    %3446 = vmatpush.bf16.msra.mxu0 %v2612
    %3447 = vmatpush.bf16.msra.mxu0 %v2604
    %3448 = vmatmul.bf16.gmra.mxu0 %v3386
    %v3449 = vpop.f32.mrf.mxu0
    %v3450 = vadd.f32 0.0, %v3449
    %v3451 = vpop.f32.mrf.mxu0
    %3452 = vdwg.mxu0
    %3453 = vmatpush.bf16.msra.mxu0 %v2724
    %3454 = vmatpush.bf16.msra.mxu0 %v2716
    %3455 = vmatpush.bf16.msra.mxu0 %v2708
    %3456 = vmatpush.bf16.msra.mxu0 %v2700
    %3457 = vmatpush.bf16.msra.mxu0 %v2692
    %3458 = vmatpush.bf16.msra.mxu0 %v2684
    %3459 = vmatpush.bf16.msra.mxu0 %v2676
    %3460 = vmatpush.bf16.msra.mxu0 %v2668
    %3461 = vmatmul.bf16.gmra.mxu0 %v3387
    %v3462 = vpop.f32.mrf.mxu0
    %v3463 = vadd.f32 %v3450, %v3462
    %v3464 = vpop.f32.mrf.mxu0
    %3465 = vdwg.mxu0
    %3466 = vmatpush.bf16.msra.mxu0 %v2661
    %3467 = vmatpush.bf16.msra.mxu0 %v2653
    %3468 = vmatpush.bf16.msra.mxu0 %v2645
    %3469 = vmatpush.bf16.msra.mxu0 %v2637
    %3470 = vmatpush.bf16.msra.mxu0 %v2629
    %3471 = vmatpush.bf16.msra.mxu0 %v2621
    %3472 = vmatpush.bf16.msra.mxu0 %v2613
    %3473 = vmatpush.bf16.msra.mxu0 %v2605
    %3474 = vmatmul.bf16.gmra.mxu0 %v3386
    %v3475 = vpop.f32.mrf.mxu0
    %v3476 = vadd.f32 0.0, %v3475
    %v3477 = vpop.f32.mrf.mxu0
    %3478 = vdwg.mxu0
    %3479 = vmatpush.bf16.msra.mxu0 %v2725
    %3480 = vmatpush.bf16.msra.mxu0 %v2717
    %3481 = vmatpush.bf16.msra.mxu0 %v2709
    %3482 = vmatpush.bf16.msra.mxu0 %v2701
    %3483 = vmatpush.bf16.msra.mxu0 %v2693
    %3484 = vmatpush.bf16.msra.mxu0 %v2685
    %3485 = vmatpush.bf16.msra.mxu0 %v2677
    %3486 = vmatpush.bf16.msra.mxu0 %v2669
    %3487 = vmatmul.bf16.gmra.mxu0 %v3387
    %v3488 = vpop.f32.mrf.mxu0
    %v3489 = vadd.f32 %v3476, %v3488
    %v3490 = vpop.f32.mrf.mxu0
    %3491 = vdwg.mxu0
    %3492 = vmatpush.bf16.msra.mxu0 %v2662
    %3493 = vmatpush.bf16.msra.mxu0 %v2654
    %3494 = vmatpush.bf16.msra.mxu0 %v2646
    %3495 = vmatpush.bf16.msra.mxu0 %v2638
    %3496 = vmatpush.bf16.msra.mxu0 %v2630
    %3497 = vmatpush.bf16.msra.mxu0 %v2622
    %3498 = vmatpush.bf16.msra.mxu0 %v2614
    %3499 = vmatpush.bf16.msra.mxu0 %v2606
    %3500 = vmatmul.bf16.gmra.mxu0 %v3386
    %v3501 = vpop.f32.mrf.mxu0
    %v3502 = vadd.f32 0.0, %v3501
    %v3503 = vpop.f32.mrf.mxu0
    %3504 = vdwg.mxu0
    %3505 = vmatpush.bf16.msra.mxu0 %v2726
    %3506 = vmatpush.bf16.msra.mxu0 %v2718
    %3507 = vmatpush.bf16.msra.mxu0 %v2710
    %3508 = vmatpush.bf16.msra.mxu0 %v2702
    %3509 = vmatpush.bf16.msra.mxu0 %v2694
    %3510 = vmatpush.bf16.msra.mxu0 %v2686
    %3511 = vmatpush.bf16.msra.mxu0 %v2678
    %3512 = vmatpush.bf16.msra.mxu0 %v2670
    %3513 = vmatmul.bf16.gmra.mxu0 %v3387
    %v3514 = vpop.f32.mrf.mxu0
    %v3515 = vadd.f32 %v3502, %v3514
    %v3516 = vpop.f32.mrf.mxu0
    %3517 = vdwg.mxu0
    %3518 = vmatpush.bf16.msra.mxu0 %v2663
    %3519 = vmatpush.bf16.msra.mxu0 %v2655
    %3520 = vmatpush.bf16.msra.mxu0 %v2647
    %3521 = vmatpush.bf16.msra.mxu0 %v2639
    %3522 = vmatpush.bf16.msra.mxu0 %v2631
    %3523 = vmatpush.bf16.msra.mxu0 %v2623
    %3524 = vmatpush.bf16.msra.mxu0 %v2615
    %3525 = vmatpush.bf16.msra.mxu0 %v2607
    %3526 = vmatmul.bf16.gmra.mxu0 %v3386
    %v3527 = vpop.f32.mrf.mxu0
    %v3528 = vadd.f32 0.0, %v3527
    %v3529 = vpop.f32.mrf.mxu0
    %3530 = vdwg.mxu0
    %3531 = vmatpush.bf16.msra.mxu0 %v2727
    %3532 = vmatpush.bf16.msra.mxu0 %v2719
    %3533 = vmatpush.bf16.msra.mxu0 %v2711
    %3534 = vmatpush.bf16.msra.mxu0 %v2703
    %3535 = vmatpush.bf16.msra.mxu0 %v2695
    %3536 = vmatpush.bf16.msra.mxu0 %v2687
    %3537 = vmatpush.bf16.msra.mxu0 %v2679
    %3538 = vmatpush.bf16.msra.mxu0 %v2671
    %3539 = vmatmul.bf16.gmra.mxu0 %v3387
    %v3540 = vpop.f32.mrf.mxu0
    %v3541 = vadd.f32 %v3528, %v3540
    %v3542 = vpop.f32.mrf.mxu0
    %3543 = vdwg.mxu0
    %3544 = vmatpush.bf16.msra.mxu0 %v2664
    %3545 = vmatpush.bf16.msra.mxu0 %v2656
    %3546 = vmatpush.bf16.msra.mxu0 %v2648
    %3547 = vmatpush.bf16.msra.mxu0 %v2640
    %3548 = vmatpush.bf16.msra.mxu0 %v2632
    %3549 = vmatpush.bf16.msra.mxu0 %v2624
    %3550 = vmatpush.bf16.msra.mxu0 %v2616
    %3551 = vmatpush.bf16.msra.mxu0 %v2608
    %3552 = vmatmul.bf16.gmra.mxu0 %v3386
    %v3553 = vpop.f32.mrf.mxu0
    %v3554 = vadd.f32 0.0, %v3553
    %v3555 = vpop.f32.mrf.mxu0
    %3556 = vdwg.mxu0
    %3557 = vmatpush.bf16.msra.mxu0 %v2728
    %3558 = vmatpush.bf16.msra.mxu0 %v2720
    %3559 = vmatpush.bf16.msra.mxu0 %v2712
    %3560 = vmatpush.bf16.msra.mxu0 %v2704
    %3561 = vmatpush.bf16.msra.mxu0 %v2696
    %3562 = vmatpush.bf16.msra.mxu0 %v2688
    %3563 = vmatpush.bf16.msra.mxu0 %v2680
    %3564 = vmatpush.bf16.msra.mxu0 %v2672
    %3565 = vmatmul.bf16.gmra.mxu0 %v3387
    %v3566 = vpop.f32.mrf.mxu0
    %v3567 = vadd.f32 %v3554, %v3566
    %v3568 = vpop.f32.mrf.mxu0
    %3569 = vdwg.mxu0
    %3570 = vmatpush.bf16.msra.mxu0 %v2665
    %3571 = vmatpush.bf16.msra.mxu0 %v2657
    %3572 = vmatpush.bf16.msra.mxu0 %v2649
    %3573 = vmatpush.bf16.msra.mxu0 %v2641
    %3574 = vmatpush.bf16.msra.mxu0 %v2633
    %3575 = vmatpush.bf16.msra.mxu0 %v2625
    %3576 = vmatpush.bf16.msra.mxu0 %v2617
    %3577 = vmatpush.bf16.msra.mxu0 %v2609
    %3578 = vmatmul.bf16.gmra.mxu0 %v3386
    %v3579 = vpop.f32.mrf.mxu0
    %v3580 = vadd.f32 0.0, %v3579
    %v3581 = vpop.f32.mrf.mxu0
    %3582 = vdwg.mxu0
    %3583 = vmatpush.bf16.msra.mxu0 %v2729
    %3584 = vmatpush.bf16.msra.mxu0 %v2721
    %3585 = vmatpush.bf16.msra.mxu0 %v2713
    %3586 = vmatpush.bf16.msra.mxu0 %v2705
    %3587 = vmatpush.bf16.msra.mxu0 %v2697
    %3588 = vmatpush.bf16.msra.mxu0 %v2689
    %3589 = vmatpush.bf16.msra.mxu0 %v2681
    %3590 = vmatpush.bf16.msra.mxu0 %v2673
    %3591 = vmatmul.bf16.gmra.mxu0 %v3387
    %v3592 = vpop.f32.mrf.mxu0
    %v3593 = vadd.f32 %v3580, %v3592
    %v3594 = vpop.f32.mrf.mxu0
    %3595 = vdwg.mxu0
    %v3596 = vadd.f32 %v3378, %v3411
    %v3597 = vadd.f32 %v3379, %v3437
    %v3598 = vadd.f32 %v3380, %v3463
    %v3599 = vadd.f32 %v3381, %v3489
    %v3600 = vadd.f32 %v3382, %v3515
    %v3601 = vadd.f32 %v3383, %v3541
    %v3602 = vadd.f32 %v3384, %v3567
    %v3603 = vadd.f32 %v3385, %v3593
    %v3604 = vmul.f32 %v3596, 0.5
    %v3605 = vmul.f32 %v3597, 0.5
    %v3606 = vtanh.pop %v3604
    %v3607 = vtanh.pop %v3605
    %v3608 = vadd.f32 %v3606, 1.0
    %v3609 = vadd.f32 %v3607, 1.0
    %v3610 = vmul.f32 %v3608, 0.5
    %v3611 = vmul.f32 %v3609, 0.5
    %v3612 = vmul.f32 %v3598, 0.5
    %v3613 = vmul.f32 %v3599, 0.5
    %v3614 = vtanh.pop %v3612
    %v3615 = vtanh.pop %v3613
    %v3616 = vadd.f32 %v3614, 1.0
    %v3617 = vadd.f32 %v3615, 1.0
    %v3618 = vmul.f32 %v3616, 0.5
    %v3619 = vmul.f32 %v3617, 0.5
    %v3620 = vtanh.pop %v3600
    %v3621 = vtanh.pop %v3601
    %v3622 = vmul.f32 %v3602, 0.5
    %v3623 = vmul.f32 %v3603, 0.5
    %v3624 = vtanh.pop %v3622
    %v3625 = vtanh.pop %v3623
    %v3626 = vadd.f32 %v3624, 1.0
    %v3627 = vadd.f32 %v3625, 1.0
    %v3628 = vmul.f32 %v3626, 0.5
    %v3629 = vmul.f32 %v3627, 0.5
    %v3630 = vmul.f32 %v3618, %v3369
    %v3631 = vmul.f32 %v3619, %v3370
    %v3632 = vmul.f32 %v3610, %v3620
    %v3633 = vmul.f32 %v3611, %v3621
    %v3634 = vadd.f32 %v3630, %v3632
    %v3635 = vadd.f32 %v3631, %v3633
    %v3636 = vtanh.pop %v3634
    %v3637 = vtanh.pop %v3635
    %v3638 = vmul.f32 %v3628, %v3636
    %v3639 = vmul.f32 %v3629, %v3637
    %s3640 = smul.u32 3, 8
    %s3641 = smul.addr %s3640, 8
    %s3642 = scalar_lea.vmem [#allocation2], %s3641
    %v3643 = vld [vmem:[%s3642] sm:$0xff]
    %v3644 = vld [vmem:[%s3642 + $0x8] sm:$0xff]
    %v3645 = vld [vmem:[%s3642 + $0x10] sm:$0xff]
    %v3646 = vld [vmem:[%s3642 + $0x18] sm:$0xff]
    %v3647 = vld [vmem:[%s3642 + $0x20] sm:$0xff]
    %v3648 = vld [vmem:[%s3642 + $0x28] sm:$0xff]
    %v3649 = vld [vmem:[%s3642 + $0x30] sm:$0xff]
    %v3650 = vld [vmem:[%s3642 + $0x38] sm:$0xff]
    %v3651 = vpack.c.bf16 %v3638, %v3638
    %v3652 = vpack.c.bf16 %v3639, %v3639
    %3653 = vmatpush.bf16.msra.mxu0 %v2658
    %3654 = vmatpush.bf16.msra.mxu0 %v2650
    %3655 = vmatpush.bf16.msra.mxu0 %v2642
    %3656 = vmatpush.bf16.msra.mxu0 %v2634
    %3657 = vmatpush.bf16.msra.mxu0 %v2626
    %3658 = vmatpush.bf16.msra.mxu0 %v2618
    %3659 = vmatpush.bf16.msra.mxu0 %v2610
    %3660 = vmatpush.bf16.msra.mxu0 %v2602
    %3661 = vmatmul.bf16.gmra.mxu0 %v3651
    %v3662 = vpop.f32.mrf.mxu0
    %v3663 = vadd.f32 0.0, %v3662
    %v3664 = vpop.f32.mrf.mxu0
    %3665 = vdwg.mxu0
    %3666 = vmatpush.bf16.msra.mxu0 %v2722
    %3667 = vmatpush.bf16.msra.mxu0 %v2714
    %3668 = vmatpush.bf16.msra.mxu0 %v2706
    %3669 = vmatpush.bf16.msra.mxu0 %v2698
    %3670 = vmatpush.bf16.msra.mxu0 %v2690
    %3671 = vmatpush.bf16.msra.mxu0 %v2682
    %3672 = vmatpush.bf16.msra.mxu0 %v2674
    %3673 = vmatpush.bf16.msra.mxu0 %v2666
    %3674 = vmatmul.bf16.gmra.mxu0 %v3652
    %v3675 = vpop.f32.mrf.mxu0
    %v3676 = vadd.f32 %v3663, %v3675
    %v3677 = vpop.f32.mrf.mxu0
    %3678 = vdwg.mxu0
    %3679 = vmatpush.bf16.msra.mxu0 %v2659
    %3680 = vmatpush.bf16.msra.mxu0 %v2651
    %3681 = vmatpush.bf16.msra.mxu0 %v2643
    %3682 = vmatpush.bf16.msra.mxu0 %v2635
    %3683 = vmatpush.bf16.msra.mxu0 %v2627
    %3684 = vmatpush.bf16.msra.mxu0 %v2619
    %3685 = vmatpush.bf16.msra.mxu0 %v2611
    %3686 = vmatpush.bf16.msra.mxu0 %v2603
    %3687 = vmatmul.bf16.gmra.mxu0 %v3651
    %v3688 = vpop.f32.mrf.mxu0
    %v3689 = vadd.f32 0.0, %v3688
    %v3690 = vpop.f32.mrf.mxu0
    %3691 = vdwg.mxu0
    %3692 = vmatpush.bf16.msra.mxu0 %v2723
    %3693 = vmatpush.bf16.msra.mxu0 %v2715
    %3694 = vmatpush.bf16.msra.mxu0 %v2707
    %3695 = vmatpush.bf16.msra.mxu0 %v2699
    %3696 = vmatpush.bf16.msra.mxu0 %v2691
    %3697 = vmatpush.bf16.msra.mxu0 %v2683
    %3698 = vmatpush.bf16.msra.mxu0 %v2675
    %3699 = vmatpush.bf16.msra.mxu0 %v2667
    %3700 = vmatmul.bf16.gmra.mxu0 %v3652
    %v3701 = vpop.f32.mrf.mxu0
    %v3702 = vadd.f32 %v3689, %v3701
    %v3703 = vpop.f32.mrf.mxu0
    %3704 = vdwg.mxu0
    %3705 = vmatpush.bf16.msra.mxu0 %v2660
    %3706 = vmatpush.bf16.msra.mxu0 %v2652
    %3707 = vmatpush.bf16.msra.mxu0 %v2644
    %3708 = vmatpush.bf16.msra.mxu0 %v2636
    %3709 = vmatpush.bf16.msra.mxu0 %v2628
    %3710 = vmatpush.bf16.msra.mxu0 %v2620
    %3711 = vmatpush.bf16.msra.mxu0 %v2612
    %3712 = vmatpush.bf16.msra.mxu0 %v2604
    %3713 = vmatmul.bf16.gmra.mxu0 %v3651
    %v3714 = vpop.f32.mrf.mxu0
    %v3715 = vadd.f32 0.0, %v3714
    %v3716 = vpop.f32.mrf.mxu0
    %3717 = vdwg.mxu0
    %3718 = vmatpush.bf16.msra.mxu0 %v2724
    %3719 = vmatpush.bf16.msra.mxu0 %v2716
    %3720 = vmatpush.bf16.msra.mxu0 %v2708
    %3721 = vmatpush.bf16.msra.mxu0 %v2700
    %3722 = vmatpush.bf16.msra.mxu0 %v2692
    %3723 = vmatpush.bf16.msra.mxu0 %v2684
    %3724 = vmatpush.bf16.msra.mxu0 %v2676
    %3725 = vmatpush.bf16.msra.mxu0 %v2668
    %3726 = vmatmul.bf16.gmra.mxu0 %v3652
    %v3727 = vpop.f32.mrf.mxu0
    %v3728 = vadd.f32 %v3715, %v3727
    %v3729 = vpop.f32.mrf.mxu0
    %3730 = vdwg.mxu0
    %3731 = vmatpush.bf16.msra.mxu0 %v2661
    %3732 = vmatpush.bf16.msra.mxu0 %v2653
    %3733 = vmatpush.bf16.msra.mxu0 %v2645
    %3734 = vmatpush.bf16.msra.mxu0 %v2637
    %3735 = vmatpush.bf16.msra.mxu0 %v2629
    %3736 = vmatpush.bf16.msra.mxu0 %v2621
    %3737 = vmatpush.bf16.msra.mxu0 %v2613
    %3738 = vmatpush.bf16.msra.mxu0 %v2605
    %3739 = vmatmul.bf16.gmra.mxu0 %v3651
    %v3740 = vpop.f32.mrf.mxu0
    %v3741 = vadd.f32 0.0, %v3740
    %v3742 = vpop.f32.mrf.mxu0
    %3743 = vdwg.mxu0
    %3744 = vmatpush.bf16.msra.mxu0 %v2725
    %3745 = vmatpush.bf16.msra.mxu0 %v2717
    %3746 = vmatpush.bf16.msra.mxu0 %v2709
    %3747 = vmatpush.bf16.msra.mxu0 %v2701
    %3748 = vmatpush.bf16.msra.mxu0 %v2693
    %3749 = vmatpush.bf16.msra.mxu0 %v2685
    %3750 = vmatpush.bf16.msra.mxu0 %v2677
    %3751 = vmatpush.bf16.msra.mxu0 %v2669
    %3752 = vmatmul.bf16.gmra.mxu0 %v3652
    %v3753 = vpop.f32.mrf.mxu0
    %v3754 = vadd.f32 %v3741, %v3753
    %v3755 = vpop.f32.mrf.mxu0
    %3756 = vdwg.mxu0
    %3757 = vmatpush.bf16.msra.mxu0 %v2662
    %3758 = vmatpush.bf16.msra.mxu0 %v2654
    %3759 = vmatpush.bf16.msra.mxu0 %v2646
    %3760 = vmatpush.bf16.msra.mxu0 %v2638
    %3761 = vmatpush.bf16.msra.mxu0 %v2630
    %3762 = vmatpush.bf16.msra.mxu0 %v2622
    %3763 = vmatpush.bf16.msra.mxu0 %v2614
    %3764 = vmatpush.bf16.msra.mxu0 %v2606
    %3765 = vmatmul.bf16.gmra.mxu0 %v3651
    %v3766 = vpop.f32.mrf.mxu0
    %v3767 = vadd.f32 0.0, %v3766
    %v3768 = vpop.f32.mrf.mxu0
    %3769 = vdwg.mxu0
    %3770 = vmatpush.bf16.msra.mxu0 %v2726
    %3771 = vmatpush.bf16.msra.mxu0 %v2718
    %3772 = vmatpush.bf16.msra.mxu0 %v2710
    %3773 = vmatpush.bf16.msra.mxu0 %v2702
    %3774 = vmatpush.bf16.msra.mxu0 %v2694
    %3775 = vmatpush.bf16.msra.mxu0 %v2686
    %3776 = vmatpush.bf16.msra.mxu0 %v2678
    %3777 = vmatpush.bf16.msra.mxu0 %v2670
    %3778 = vmatmul.bf16.gmra.mxu0 %v3652
    %v3779 = vpop.f32.mrf.mxu0
    %v3780 = vadd.f32 %v3767, %v3779
    %v3781 = vpop.f32.mrf.mxu0
    %3782 = vdwg.mxu0
    %3783 = vmatpush.bf16.msra.mxu0 %v2663
    %3784 = vmatpush.bf16.msra.mxu0 %v2655
    %3785 = vmatpush.bf16.msra.mxu0 %v2647
    %3786 = vmatpush.bf16.msra.mxu0 %v2639
    %3787 = vmatpush.bf16.msra.mxu0 %v2631
    %3788 = vmatpush.bf16.msra.mxu0 %v2623
    %3789 = vmatpush.bf16.msra.mxu0 %v2615
    %3790 = vmatpush.bf16.msra.mxu0 %v2607
    %3791 = vmatmul.bf16.gmra.mxu0 %v3651
    %v3792 = vpop.f32.mrf.mxu0
    %v3793 = vadd.f32 0.0, %v3792
    %v3794 = vpop.f32.mrf.mxu0
    %3795 = vdwg.mxu0
    %3796 = vmatpush.bf16.msra.mxu0 %v2727
    %3797 = vmatpush.bf16.msra.mxu0 %v2719
    %3798 = vmatpush.bf16.msra.mxu0 %v2711
    %3799 = vmatpush.bf16.msra.mxu0 %v2703
    %3800 = vmatpush.bf16.msra.mxu0 %v2695
    %3801 = vmatpush.bf16.msra.mxu0 %v2687
    %3802 = vmatpush.bf16.msra.mxu0 %v2679
    %3803 = vmatpush.bf16.msra.mxu0 %v2671
    %3804 = vmatmul.bf16.gmra.mxu0 %v3652
    %v3805 = vpop.f32.mrf.mxu0
    %v3806 = vadd.f32 %v3793, %v3805
    %v3807 = vpop.f32.mrf.mxu0
    %3808 = vdwg.mxu0
    %3809 = vmatpush.bf16.msra.mxu0 %v2664
    %3810 = vmatpush.bf16.msra.mxu0 %v2656
    %3811 = vmatpush.bf16.msra.mxu0 %v2648
    %3812 = vmatpush.bf16.msra.mxu0 %v2640
    %3813 = vmatpush.bf16.msra.mxu0 %v2632
    %3814 = vmatpush.bf16.msra.mxu0 %v2624
    %3815 = vmatpush.bf16.msra.mxu0 %v2616
    %3816 = vmatpush.bf16.msra.mxu0 %v2608
    %3817 = vmatmul.bf16.gmra.mxu0 %v3651
    %v3818 = vpop.f32.mrf.mxu0
    %v3819 = vadd.f32 0.0, %v3818
    %v3820 = vpop.f32.mrf.mxu0
    %3821 = vdwg.mxu0
    %3822 = vmatpush.bf16.msra.mxu0 %v2728
    %3823 = vmatpush.bf16.msra.mxu0 %v2720
    %3824 = vmatpush.bf16.msra.mxu0 %v2712
    %3825 = vmatpush.bf16.msra.mxu0 %v2704
    %3826 = vmatpush.bf16.msra.mxu0 %v2696
    %3827 = vmatpush.bf16.msra.mxu0 %v2688
    %3828 = vmatpush.bf16.msra.mxu0 %v2680
    %3829 = vmatpush.bf16.msra.mxu0 %v2672
    %3830 = vmatmul.bf16.gmra.mxu0 %v3652
    %v3831 = vpop.f32.mrf.mxu0
    %v3832 = vadd.f32 %v3819, %v3831
    %v3833 = vpop.f32.mrf.mxu0
    %3834 = vdwg.mxu0
    %3835 = vmatpush.bf16.msra.mxu0 %v2665
    %3836 = vmatpush.bf16.msra.mxu0 %v2657
    %3837 = vmatpush.bf16.msra.mxu0 %v2649
    %3838 = vmatpush.bf16.msra.mxu0 %v2641
    %3839 = vmatpush.bf16.msra.mxu0 %v2633
    %3840 = vmatpush.bf16.msra.mxu0 %v2625
    %3841 = vmatpush.bf16.msra.mxu0 %v2617
    %3842 = vmatpush.bf16.msra.mxu0 %v2609
    %3843 = vmatmul.bf16.gmra.mxu0 %v3651
    %v3844 = vpop.f32.mrf.mxu0
    %v3845 = vadd.f32 0.0, %v3844
    %v3846 = vpop.f32.mrf.mxu0
    %3847 = vdwg.mxu0
    %3848 = vmatpush.bf16.msra.mxu0 %v2729
    %3849 = vmatpush.bf16.msra.mxu0 %v2721
    %3850 = vmatpush.bf16.msra.mxu0 %v2713
    %3851 = vmatpush.bf16.msra.mxu0 %v2705
    %3852 = vmatpush.bf16.msra.mxu0 %v2697
    %3853 = vmatpush.bf16.msra.mxu0 %v2689
    %3854 = vmatpush.bf16.msra.mxu0 %v2681
    %3855 = vmatpush.bf16.msra.mxu0 %v2673
    %3856 = vmatmul.bf16.gmra.mxu0 %v3652
    %v3857 = vpop.f32.mrf.mxu0
    %v3858 = vadd.f32 %v3845, %v3857
    %v3859 = vpop.f32.mrf.mxu0
    %3860 = vdwg.mxu0
    %v3861 = vadd.f32 %v3643, %v3676
    %v3862 = vadd.f32 %v3644, %v3702
    %v3863 = vadd.f32 %v3645, %v3728
    %v3864 = vadd.f32 %v3646, %v3754
    %v3865 = vadd.f32 %v3647, %v3780
    %v3866 = vadd.f32 %v3648, %v3806
    %v3867 = vadd.f32 %v3649, %v3832
    %v3868 = vadd.f32 %v3650, %v3858
    %v3869 = vmul.f32 %v3861, 0.5
    %v3870 = vmul.f32 %v3862, 0.5
    %v3871 = vtanh.pop %v3869
    %v3872 = vtanh.pop %v3870
    %v3873 = vadd.f32 %v3871, 1.0
    %v3874 = vadd.f32 %v3872, 1.0
    %v3875 = vmul.f32 %v3873, 0.5
    %v3876 = vmul.f32 %v3874, 0.5
    %v3877 = vmul.f32 %v3863, 0.5
    %v3878 = vmul.f32 %v3864, 0.5
    %v3879 = vtanh.pop %v3877
    %v3880 = vtanh.pop %v3878
    %v3881 = vadd.f32 %v3879, 1.0
    %v3882 = vadd.f32 %v3880, 1.0
    %v3883 = vmul.f32 %v3881, 0.5
    %v3884 = vmul.f32 %v3882, 0.5
    %v3885 = vtanh.pop %v3865
    %v3886 = vtanh.pop %v3866
    %v3887 = vmul.f32 %v3867, 0.5
    %v3888 = vmul.f32 %v3868, 0.5
    %v3889 = vtanh.pop %v3887
    %v3890 = vtanh.pop %v3888
    %v3891 = vadd.f32 %v3889, 1.0
    %v3892 = vadd.f32 %v3890, 1.0
    %v3893 = vmul.f32 %v3891, 0.5
    %v3894 = vmul.f32 %v3892, 0.5
    %v3895 = vmul.f32 %v3883, %v3634
    %v3896 = vmul.f32 %v3884, %v3635
    %v3897 = vmul.f32 %v3875, %v3885
    %v3898 = vmul.f32 %v3876, %v3886
    %v3899 = vadd.f32 %v3895, %v3897
    %v3900 = vadd.f32 %v3896, %v3898
    %v3901 = vtanh.pop %v3899
    %v3902 = vtanh.pop %v3900
    %v3903 = vmul.f32 %v3893, %v3901
    %v3904 = vmul.f32 %v3894, %v3902
    %s3905 = smul.u32 4, 8
    %s3906 = smul.addr %s3905, 8
    %s3907 = scalar_lea.vmem [#allocation2], %s3906
    %v3908 = vld [vmem:[%s3907] sm:$0xff]
    %v3909 = vld [vmem:[%s3907 + $0x8] sm:$0xff]
    %v3910 = vld [vmem:[%s3907 + $0x10] sm:$0xff]
    %v3911 = vld [vmem:[%s3907 + $0x18] sm:$0xff]
    %v3912 = vld [vmem:[%s3907 + $0x20] sm:$0xff]
    %v3913 = vld [vmem:[%s3907 + $0x28] sm:$0xff]
    %v3914 = vld [vmem:[%s3907 + $0x30] sm:$0xff]
    %v3915 = vld [vmem:[%s3907 + $0x38] sm:$0xff]
    %v3916 = vpack.c.bf16 %v3903, %v3903
    %v3917 = vpack.c.bf16 %v3904, %v3904
    %3918 = vmatpush.bf16.msra.mxu0 %v2658
    %3919 = vmatpush.bf16.msra.mxu0 %v2650
    %3920 = vmatpush.bf16.msra.mxu0 %v2642
    %3921 = vmatpush.bf16.msra.mxu0 %v2634
    %3922 = vmatpush.bf16.msra.mxu0 %v2626
    %3923 = vmatpush.bf16.msra.mxu0 %v2618
    %3924 = vmatpush.bf16.msra.mxu0 %v2610
    %3925 = vmatpush.bf16.msra.mxu0 %v2602
    %3926 = vmatmul.bf16.gmra.mxu0 %v3916
    %v3927 = vpop.f32.mrf.mxu0
    %v3928 = vadd.f32 0.0, %v3927
    %v3929 = vpop.f32.mrf.mxu0
    %3930 = vdwg.mxu0
    %3931 = vmatpush.bf16.msra.mxu0 %v2722
    %3932 = vmatpush.bf16.msra.mxu0 %v2714
    %3933 = vmatpush.bf16.msra.mxu0 %v2706
    %3934 = vmatpush.bf16.msra.mxu0 %v2698
    %3935 = vmatpush.bf16.msra.mxu0 %v2690
    %3936 = vmatpush.bf16.msra.mxu0 %v2682
    %3937 = vmatpush.bf16.msra.mxu0 %v2674
    %3938 = vmatpush.bf16.msra.mxu0 %v2666
    %3939 = vmatmul.bf16.gmra.mxu0 %v3917
    %v3940 = vpop.f32.mrf.mxu0
    %v3941 = vadd.f32 %v3928, %v3940
    %v3942 = vpop.f32.mrf.mxu0
    %3943 = vdwg.mxu0
    %3944 = vmatpush.bf16.msra.mxu0 %v2659
    %3945 = vmatpush.bf16.msra.mxu0 %v2651
    %3946 = vmatpush.bf16.msra.mxu0 %v2643
    %3947 = vmatpush.bf16.msra.mxu0 %v2635
    %3948 = vmatpush.bf16.msra.mxu0 %v2627
    %3949 = vmatpush.bf16.msra.mxu0 %v2619
    %3950 = vmatpush.bf16.msra.mxu0 %v2611
    %3951 = vmatpush.bf16.msra.mxu0 %v2603
    %3952 = vmatmul.bf16.gmra.mxu0 %v3916
    %v3953 = vpop.f32.mrf.mxu0
    %v3954 = vadd.f32 0.0, %v3953
    %v3955 = vpop.f32.mrf.mxu0
    %3956 = vdwg.mxu0
    %3957 = vmatpush.bf16.msra.mxu0 %v2723
    %3958 = vmatpush.bf16.msra.mxu0 %v2715
    %3959 = vmatpush.bf16.msra.mxu0 %v2707
    %3960 = vmatpush.bf16.msra.mxu0 %v2699
    %3961 = vmatpush.bf16.msra.mxu0 %v2691
    %3962 = vmatpush.bf16.msra.mxu0 %v2683
    %3963 = vmatpush.bf16.msra.mxu0 %v2675
    %3964 = vmatpush.bf16.msra.mxu0 %v2667
    %3965 = vmatmul.bf16.gmra.mxu0 %v3917
    %v3966 = vpop.f32.mrf.mxu0
    %v3967 = vadd.f32 %v3954, %v3966
    %v3968 = vpop.f32.mrf.mxu0
    %3969 = vdwg.mxu0
    %3970 = vmatpush.bf16.msra.mxu0 %v2660
    %3971 = vmatpush.bf16.msra.mxu0 %v2652
    %3972 = vmatpush.bf16.msra.mxu0 %v2644
    %3973 = vmatpush.bf16.msra.mxu0 %v2636
    %3974 = vmatpush.bf16.msra.mxu0 %v2628
    %3975 = vmatpush.bf16.msra.mxu0 %v2620
    %3976 = vmatpush.bf16.msra.mxu0 %v2612
    %3977 = vmatpush.bf16.msra.mxu0 %v2604
    %3978 = vmatmul.bf16.gmra.mxu0 %v3916
    %v3979 = vpop.f32.mrf.mxu0
    %v3980 = vadd.f32 0.0, %v3979
    %v3981 = vpop.f32.mrf.mxu0
    %3982 = vdwg.mxu0
    %3983 = vmatpush.bf16.msra.mxu0 %v2724
    %3984 = vmatpush.bf16.msra.mxu0 %v2716
    %3985 = vmatpush.bf16.msra.mxu0 %v2708
    %3986 = vmatpush.bf16.msra.mxu0 %v2700
    %3987 = vmatpush.bf16.msra.mxu0 %v2692
    %3988 = vmatpush.bf16.msra.mxu0 %v2684
    %3989 = vmatpush.bf16.msra.mxu0 %v2676
    %3990 = vmatpush.bf16.msra.mxu0 %v2668
    %3991 = vmatmul.bf16.gmra.mxu0 %v3917
    %v3992 = vpop.f32.mrf.mxu0
    %v3993 = vadd.f32 %v3980, %v3992
    %v3994 = vpop.f32.mrf.mxu0
    %3995 = vdwg.mxu0
    %3996 = vmatpush.bf16.msra.mxu0 %v2661
    %3997 = vmatpush.bf16.msra.mxu0 %v2653
    %3998 = vmatpush.bf16.msra.mxu0 %v2645
    %3999 = vmatpush.bf16.msra.mxu0 %v2637
    %4000 = vmatpush.bf16.msra.mxu0 %v2629
    %4001 = vmatpush.bf16.msra.mxu0 %v2621
    %4002 = vmatpush.bf16.msra.mxu0 %v2613
    %4003 = vmatpush.bf16.msra.mxu0 %v2605
    %4004 = vmatmul.bf16.gmra.mxu0 %v3916
    %v4005 = vpop.f32.mrf.mxu0
    %v4006 = vadd.f32 0.0, %v4005
    %v4007 = vpop.f32.mrf.mxu0
    %4008 = vdwg.mxu0
    %4009 = vmatpush.bf16.msra.mxu0 %v2725
    %4010 = vmatpush.bf16.msra.mxu0 %v2717
    %4011 = vmatpush.bf16.msra.mxu0 %v2709
    %4012 = vmatpush.bf16.msra.mxu0 %v2701
    %4013 = vmatpush.bf16.msra.mxu0 %v2693
    %4014 = vmatpush.bf16.msra.mxu0 %v2685
    %4015 = vmatpush.bf16.msra.mxu0 %v2677
    %4016 = vmatpush.bf16.msra.mxu0 %v2669
    %4017 = vmatmul.bf16.gmra.mxu0 %v3917
    %v4018 = vpop.f32.mrf.mxu0
    %v4019 = vadd.f32 %v4006, %v4018
    %v4020 = vpop.f32.mrf.mxu0
    %4021 = vdwg.mxu0
    %4022 = vmatpush.bf16.msra.mxu0 %v2662
    %4023 = vmatpush.bf16.msra.mxu0 %v2654
    %4024 = vmatpush.bf16.msra.mxu0 %v2646
    %4025 = vmatpush.bf16.msra.mxu0 %v2638
    %4026 = vmatpush.bf16.msra.mxu0 %v2630
    %4027 = vmatpush.bf16.msra.mxu0 %v2622
    %4028 = vmatpush.bf16.msra.mxu0 %v2614
    %4029 = vmatpush.bf16.msra.mxu0 %v2606
    %4030 = vmatmul.bf16.gmra.mxu0 %v3916
    %v4031 = vpop.f32.mrf.mxu0
    %v4032 = vadd.f32 0.0, %v4031
    %v4033 = vpop.f32.mrf.mxu0
    %4034 = vdwg.mxu0
    %4035 = vmatpush.bf16.msra.mxu0 %v2726
    %4036 = vmatpush.bf16.msra.mxu0 %v2718
    %4037 = vmatpush.bf16.msra.mxu0 %v2710
    %4038 = vmatpush.bf16.msra.mxu0 %v2702
    %4039 = vmatpush.bf16.msra.mxu0 %v2694
    %4040 = vmatpush.bf16.msra.mxu0 %v2686
    %4041 = vmatpush.bf16.msra.mxu0 %v2678
    %4042 = vmatpush.bf16.msra.mxu0 %v2670
    %4043 = vmatmul.bf16.gmra.mxu0 %v3917
    %v4044 = vpop.f32.mrf.mxu0
    %v4045 = vadd.f32 %v4032, %v4044
    %v4046 = vpop.f32.mrf.mxu0
    %4047 = vdwg.mxu0
    %4048 = vmatpush.bf16.msra.mxu0 %v2663
    %4049 = vmatpush.bf16.msra.mxu0 %v2655
    %4050 = vmatpush.bf16.msra.mxu0 %v2647
    %4051 = vmatpush.bf16.msra.mxu0 %v2639
    %4052 = vmatpush.bf16.msra.mxu0 %v2631
    %4053 = vmatpush.bf16.msra.mxu0 %v2623
    %4054 = vmatpush.bf16.msra.mxu0 %v2615
    %4055 = vmatpush.bf16.msra.mxu0 %v2607
    %4056 = vmatmul.bf16.gmra.mxu0 %v3916
    %v4057 = vpop.f32.mrf.mxu0
    %v4058 = vadd.f32 0.0, %v4057
    %v4059 = vpop.f32.mrf.mxu0
    %4060 = vdwg.mxu0
    %4061 = vmatpush.bf16.msra.mxu0 %v2727
    %4062 = vmatpush.bf16.msra.mxu0 %v2719
    %4063 = vmatpush.bf16.msra.mxu0 %v2711
    %4064 = vmatpush.bf16.msra.mxu0 %v2703
    %4065 = vmatpush.bf16.msra.mxu0 %v2695
    %4066 = vmatpush.bf16.msra.mxu0 %v2687
    %4067 = vmatpush.bf16.msra.mxu0 %v2679
    %4068 = vmatpush.bf16.msra.mxu0 %v2671
    %4069 = vmatmul.bf16.gmra.mxu0 %v3917
    %v4070 = vpop.f32.mrf.mxu0
    %v4071 = vadd.f32 %v4058, %v4070
    %v4072 = vpop.f32.mrf.mxu0
    %4073 = vdwg.mxu0
    %4074 = vmatpush.bf16.msra.mxu0 %v2664
    %4075 = vmatpush.bf16.msra.mxu0 %v2656
    %4076 = vmatpush.bf16.msra.mxu0 %v2648
    %4077 = vmatpush.bf16.msra.mxu0 %v2640
    %4078 = vmatpush.bf16.msra.mxu0 %v2632
    %4079 = vmatpush.bf16.msra.mxu0 %v2624
    %4080 = vmatpush.bf16.msra.mxu0 %v2616
    %4081 = vmatpush.bf16.msra.mxu0 %v2608
    %4082 = vmatmul.bf16.gmra.mxu0 %v3916
    %v4083 = vpop.f32.mrf.mxu0
    %v4084 = vadd.f32 0.0, %v4083
    %v4085 = vpop.f32.mrf.mxu0
    %4086 = vdwg.mxu0
    %4087 = vmatpush.bf16.msra.mxu0 %v2728
    %4088 = vmatpush.bf16.msra.mxu0 %v2720
    %4089 = vmatpush.bf16.msra.mxu0 %v2712
    %4090 = vmatpush.bf16.msra.mxu0 %v2704
    %4091 = vmatpush.bf16.msra.mxu0 %v2696
    %4092 = vmatpush.bf16.msra.mxu0 %v2688
    %4093 = vmatpush.bf16.msra.mxu0 %v2680
    %4094 = vmatpush.bf16.msra.mxu0 %v2672
    %4095 = vmatmul.bf16.gmra.mxu0 %v3917
    %v4096 = vpop.f32.mrf.mxu0
    %v4097 = vadd.f32 %v4084, %v4096
    %v4098 = vpop.f32.mrf.mxu0
    %4099 = vdwg.mxu0
    %4100 = vmatpush.bf16.msra.mxu0 %v2665
    %4101 = vmatpush.bf16.msra.mxu0 %v2657
    %4102 = vmatpush.bf16.msra.mxu0 %v2649
    %4103 = vmatpush.bf16.msra.mxu0 %v2641
    %4104 = vmatpush.bf16.msra.mxu0 %v2633
    %4105 = vmatpush.bf16.msra.mxu0 %v2625
    %4106 = vmatpush.bf16.msra.mxu0 %v2617
    %4107 = vmatpush.bf16.msra.mxu0 %v2609
    %4108 = vmatmul.bf16.gmra.mxu0 %v3916
    %v4109 = vpop.f32.mrf.mxu0
    %v4110 = vadd.f32 0.0, %v4109
    %v4111 = vpop.f32.mrf.mxu0
    %4112 = vdwg.mxu0
    %4113 = vmatpush.bf16.msra.mxu0 %v2729
    %4114 = vmatpush.bf16.msra.mxu0 %v2721
    %4115 = vmatpush.bf16.msra.mxu0 %v2713
    %4116 = vmatpush.bf16.msra.mxu0 %v2705
    %4117 = vmatpush.bf16.msra.mxu0 %v2697
    %4118 = vmatpush.bf16.msra.mxu0 %v2689
    %4119 = vmatpush.bf16.msra.mxu0 %v2681
    %4120 = vmatpush.bf16.msra.mxu0 %v2673
    %4121 = vmatmul.bf16.gmra.mxu0 %v3917
    %v4122 = vpop.f32.mrf.mxu0
    %v4123 = vadd.f32 %v4110, %v4122
    %v4124 = vpop.f32.mrf.mxu0
    %4125 = vdwg.mxu0
    %v4126 = vadd.f32 %v3908, %v3941
    %v4127 = vadd.f32 %v3909, %v3967
    %v4128 = vadd.f32 %v3910, %v3993
    %v4129 = vadd.f32 %v3911, %v4019
    %v4130 = vadd.f32 %v3912, %v4045
    %v4131 = vadd.f32 %v3913, %v4071
    %v4132 = vadd.f32 %v3914, %v4097
    %v4133 = vadd.f32 %v3915, %v4123
    %v4134 = vmul.f32 %v4126, 0.5
    %v4135 = vmul.f32 %v4127, 0.5
    %v4136 = vtanh.pop %v4134
    %v4137 = vtanh.pop %v4135
    %v4138 = vadd.f32 %v4136, 1.0
    %v4139 = vadd.f32 %v4137, 1.0
    %v4140 = vmul.f32 %v4138, 0.5
    %v4141 = vmul.f32 %v4139, 0.5
    %v4142 = vmul.f32 %v4128, 0.5
    %v4143 = vmul.f32 %v4129, 0.5
    %v4144 = vtanh.pop %v4142
    %v4145 = vtanh.pop %v4143
    %v4146 = vadd.f32 %v4144, 1.0
    %v4147 = vadd.f32 %v4145, 1.0
    %v4148 = vmul.f32 %v4146, 0.5
    %v4149 = vmul.f32 %v4147, 0.5
    %v4150 = vtanh.pop %v4130
    %v4151 = vtanh.pop %v4131
    %v4152 = vmul.f32 %v4132, 0.5
    %v4153 = vmul.f32 %v4133, 0.5
    %v4154 = vtanh.pop %v4152
    %v4155 = vtanh.pop %v4153
    %v4156 = vadd.f32 %v4154, 1.0
    %v4157 = vadd.f32 %v4155, 1.0
    %v4158 = vmul.f32 %v4156, 0.5
    %v4159 = vmul.f32 %v4157, 0.5
    %v4160 = vmul.f32 %v4148, %v3899
    %v4161 = vmul.f32 %v4149, %v3900
    %v4162 = vmul.f32 %v4140, %v4150
    %v4163 = vmul.f32 %v4141, %v4151
    %v4164 = vadd.f32 %v4160, %v4162
    %v4165 = vadd.f32 %v4161, %v4163
    %v4166 = vtanh.pop %v4164
    %v4167 = vtanh.pop %v4165
    %v4168 = vmul.f32 %v4158, %v4166
    %v4169 = vmul.f32 %v4159, %v4167
    %s4170 = smul.u32 5, 8
    %s4171 = smul.addr %s4170, 8
    %s4172 = scalar_lea.vmem [#allocation2], %s4171
    %v4173 = vld [vmem:[%s4172] sm:$0xff]
    %v4174 = vld [vmem:[%s4172 + $0x8] sm:$0xff]
    %v4175 = vld [vmem:[%s4172 + $0x10] sm:$0xff]
    %v4176 = vld [vmem:[%s4172 + $0x18] sm:$0xff]
    %v4177 = vld [vmem:[%s4172 + $0x20] sm:$0xff]
    %v4178 = vld [vmem:[%s4172 + $0x28] sm:$0xff]
    %v4179 = vld [vmem:[%s4172 + $0x30] sm:$0xff]
    %v4180 = vld [vmem:[%s4172 + $0x38] sm:$0xff]
    %v4181 = vpack.c.bf16 %v4168, %v4168
    %v4182 = vpack.c.bf16 %v4169, %v4169
    %4183 = vmatpush.bf16.msra.mxu0 %v2658
    %4184 = vmatpush.bf16.msra.mxu0 %v2650
    %4185 = vmatpush.bf16.msra.mxu0 %v2642
    %4186 = vmatpush.bf16.msra.mxu0 %v2634
    %4187 = vmatpush.bf16.msra.mxu0 %v2626
    %4188 = vmatpush.bf16.msra.mxu0 %v2618
    %4189 = vmatpush.bf16.msra.mxu0 %v2610
    %4190 = vmatpush.bf16.msra.mxu0 %v2602
    %4191 = vmatmul.bf16.gmra.mxu0 %v4181
    %v4192 = vpop.f32.mrf.mxu0
    %v4193 = vadd.f32 0.0, %v4192
    %v4194 = vpop.f32.mrf.mxu0
    %4195 = vdwg.mxu0
    %4196 = vmatpush.bf16.msra.mxu0 %v2722
    %4197 = vmatpush.bf16.msra.mxu0 %v2714
    %4198 = vmatpush.bf16.msra.mxu0 %v2706
    %4199 = vmatpush.bf16.msra.mxu0 %v2698
    %4200 = vmatpush.bf16.msra.mxu0 %v2690
    %4201 = vmatpush.bf16.msra.mxu0 %v2682
    %4202 = vmatpush.bf16.msra.mxu0 %v2674
    %4203 = vmatpush.bf16.msra.mxu0 %v2666
    %4204 = vmatmul.bf16.gmra.mxu0 %v4182
    %v4205 = vpop.f32.mrf.mxu0
    %v4206 = vadd.f32 %v4193, %v4205
    %v4207 = vpop.f32.mrf.mxu0
    %4208 = vdwg.mxu0
    %4209 = vmatpush.bf16.msra.mxu0 %v2659
    %4210 = vmatpush.bf16.msra.mxu0 %v2651
    %4211 = vmatpush.bf16.msra.mxu0 %v2643
    %4212 = vmatpush.bf16.msra.mxu0 %v2635
    %4213 = vmatpush.bf16.msra.mxu0 %v2627
    %4214 = vmatpush.bf16.msra.mxu0 %v2619
    %4215 = vmatpush.bf16.msra.mxu0 %v2611
    %4216 = vmatpush.bf16.msra.mxu0 %v2603
    %4217 = vmatmul.bf16.gmra.mxu0 %v4181
    %v4218 = vpop.f32.mrf.mxu0
    %v4219 = vadd.f32 0.0, %v4218
    %v4220 = vpop.f32.mrf.mxu0
    %4221 = vdwg.mxu0
    %4222 = vmatpush.bf16.msra.mxu0 %v2723
    %4223 = vmatpush.bf16.msra.mxu0 %v2715
    %4224 = vmatpush.bf16.msra.mxu0 %v2707
    %4225 = vmatpush.bf16.msra.mxu0 %v2699
    %4226 = vmatpush.bf16.msra.mxu0 %v2691
    %4227 = vmatpush.bf16.msra.mxu0 %v2683
    %4228 = vmatpush.bf16.msra.mxu0 %v2675
    %4229 = vmatpush.bf16.msra.mxu0 %v2667
    %4230 = vmatmul.bf16.gmra.mxu0 %v4182
    %v4231 = vpop.f32.mrf.mxu0
    %v4232 = vadd.f32 %v4219, %v4231
    %v4233 = vpop.f32.mrf.mxu0
    %4234 = vdwg.mxu0
    %4235 = vmatpush.bf16.msra.mxu0 %v2660
    %4236 = vmatpush.bf16.msra.mxu0 %v2652
    %4237 = vmatpush.bf16.msra.mxu0 %v2644
    %4238 = vmatpush.bf16.msra.mxu0 %v2636
    %4239 = vmatpush.bf16.msra.mxu0 %v2628
    %4240 = vmatpush.bf16.msra.mxu0 %v2620
    %4241 = vmatpush.bf16.msra.mxu0 %v2612
    %4242 = vmatpush.bf16.msra.mxu0 %v2604
    %4243 = vmatmul.bf16.gmra.mxu0 %v4181
    %v4244 = vpop.f32.mrf.mxu0
    %v4245 = vadd.f32 0.0, %v4244
    %v4246 = vpop.f32.mrf.mxu0
    %4247 = vdwg.mxu0
    %4248 = vmatpush.bf16.msra.mxu0 %v2724
    %4249 = vmatpush.bf16.msra.mxu0 %v2716
    %4250 = vmatpush.bf16.msra.mxu0 %v2708
    %4251 = vmatpush.bf16.msra.mxu0 %v2700
    %4252 = vmatpush.bf16.msra.mxu0 %v2692
    %4253 = vmatpush.bf16.msra.mxu0 %v2684
    %4254 = vmatpush.bf16.msra.mxu0 %v2676
    %4255 = vmatpush.bf16.msra.mxu0 %v2668
    %4256 = vmatmul.bf16.gmra.mxu0 %v4182
    %v4257 = vpop.f32.mrf.mxu0
    %v4258 = vadd.f32 %v4245, %v4257
    %v4259 = vpop.f32.mrf.mxu0
    %4260 = vdwg.mxu0
    %4261 = vmatpush.bf16.msra.mxu0 %v2661
    %4262 = vmatpush.bf16.msra.mxu0 %v2653
    %4263 = vmatpush.bf16.msra.mxu0 %v2645
    %4264 = vmatpush.bf16.msra.mxu0 %v2637
    %4265 = vmatpush.bf16.msra.mxu0 %v2629
    %4266 = vmatpush.bf16.msra.mxu0 %v2621
    %4267 = vmatpush.bf16.msra.mxu0 %v2613
    %4268 = vmatpush.bf16.msra.mxu0 %v2605
    %4269 = vmatmul.bf16.gmra.mxu0 %v4181
    %v4270 = vpop.f32.mrf.mxu0
    %v4271 = vadd.f32 0.0, %v4270
    %v4272 = vpop.f32.mrf.mxu0
    %4273 = vdwg.mxu0
    %4274 = vmatpush.bf16.msra.mxu0 %v2725
    %4275 = vmatpush.bf16.msra.mxu0 %v2717
    %4276 = vmatpush.bf16.msra.mxu0 %v2709
    %4277 = vmatpush.bf16.msra.mxu0 %v2701
    %4278 = vmatpush.bf16.msra.mxu0 %v2693
    %4279 = vmatpush.bf16.msra.mxu0 %v2685
    %4280 = vmatpush.bf16.msra.mxu0 %v2677
    %4281 = vmatpush.bf16.msra.mxu0 %v2669
    %4282 = vmatmul.bf16.gmra.mxu0 %v4182
    %v4283 = vpop.f32.mrf.mxu0
    %v4284 = vadd.f32 %v4271, %v4283
    %v4285 = vpop.f32.mrf.mxu0
    %4286 = vdwg.mxu0
    %4287 = vmatpush.bf16.msra.mxu0 %v2662
    %4288 = vmatpush.bf16.msra.mxu0 %v2654
    %4289 = vmatpush.bf16.msra.mxu0 %v2646
    %4290 = vmatpush.bf16.msra.mxu0 %v2638
    %4291 = vmatpush.bf16.msra.mxu0 %v2630
    %4292 = vmatpush.bf16.msra.mxu0 %v2622
    %4293 = vmatpush.bf16.msra.mxu0 %v2614
    %4294 = vmatpush.bf16.msra.mxu0 %v2606
    %4295 = vmatmul.bf16.gmra.mxu0 %v4181
    %v4296 = vpop.f32.mrf.mxu0
    %v4297 = vadd.f32 0.0, %v4296
    %v4298 = vpop.f32.mrf.mxu0
    %4299 = vdwg.mxu0
    %4300 = vmatpush.bf16.msra.mxu0 %v2726
    %4301 = vmatpush.bf16.msra.mxu0 %v2718
    %4302 = vmatpush.bf16.msra.mxu0 %v2710
    %4303 = vmatpush.bf16.msra.mxu0 %v2702
    %4304 = vmatpush.bf16.msra.mxu0 %v2694
    %4305 = vmatpush.bf16.msra.mxu0 %v2686
    %4306 = vmatpush.bf16.msra.mxu0 %v2678
    %4307 = vmatpush.bf16.msra.mxu0 %v2670
    %4308 = vmatmul.bf16.gmra.mxu0 %v4182
    %v4309 = vpop.f32.mrf.mxu0
    %v4310 = vadd.f32 %v4297, %v4309
    %v4311 = vpop.f32.mrf.mxu0
    %4312 = vdwg.mxu0
    %4313 = vmatpush.bf16.msra.mxu0 %v2663
    %4314 = vmatpush.bf16.msra.mxu0 %v2655
    %4315 = vmatpush.bf16.msra.mxu0 %v2647
    %4316 = vmatpush.bf16.msra.mxu0 %v2639
    %4317 = vmatpush.bf16.msra.mxu0 %v2631
    %4318 = vmatpush.bf16.msra.mxu0 %v2623
    %4319 = vmatpush.bf16.msra.mxu0 %v2615
    %4320 = vmatpush.bf16.msra.mxu0 %v2607
    %4321 = vmatmul.bf16.gmra.mxu0 %v4181
    %v4322 = vpop.f32.mrf.mxu0
    %v4323 = vadd.f32 0.0, %v4322
    %v4324 = vpop.f32.mrf.mxu0
    %4325 = vdwg.mxu0
    %4326 = vmatpush.bf16.msra.mxu0 %v2727
    %4327 = vmatpush.bf16.msra.mxu0 %v2719
    %4328 = vmatpush.bf16.msra.mxu0 %v2711
    %4329 = vmatpush.bf16.msra.mxu0 %v2703
    %4330 = vmatpush.bf16.msra.mxu0 %v2695
    %4331 = vmatpush.bf16.msra.mxu0 %v2687
    %4332 = vmatpush.bf16.msra.mxu0 %v2679
    %4333 = vmatpush.bf16.msra.mxu0 %v2671
    %4334 = vmatmul.bf16.gmra.mxu0 %v4182
    %v4335 = vpop.f32.mrf.mxu0
    %v4336 = vadd.f32 %v4323, %v4335
    %v4337 = vpop.f32.mrf.mxu0
    %4338 = vdwg.mxu0
    %4339 = vmatpush.bf16.msra.mxu0 %v2664
    %4340 = vmatpush.bf16.msra.mxu0 %v2656
    %4341 = vmatpush.bf16.msra.mxu0 %v2648
    %4342 = vmatpush.bf16.msra.mxu0 %v2640
    %4343 = vmatpush.bf16.msra.mxu0 %v2632
    %4344 = vmatpush.bf16.msra.mxu0 %v2624
    %4345 = vmatpush.bf16.msra.mxu0 %v2616
    %4346 = vmatpush.bf16.msra.mxu0 %v2608
    %4347 = vmatmul.bf16.gmra.mxu0 %v4181
    %v4348 = vpop.f32.mrf.mxu0
    %v4349 = vadd.f32 0.0, %v4348
    %v4350 = vpop.f32.mrf.mxu0
    %4351 = vdwg.mxu0
    %4352 = vmatpush.bf16.msra.mxu0 %v2728
    %4353 = vmatpush.bf16.msra.mxu0 %v2720
    %4354 = vmatpush.bf16.msra.mxu0 %v2712
    %4355 = vmatpush.bf16.msra.mxu0 %v2704
    %4356 = vmatpush.bf16.msra.mxu0 %v2696
    %4357 = vmatpush.bf16.msra.mxu0 %v2688
    %4358 = vmatpush.bf16.msra.mxu0 %v2680
    %4359 = vmatpush.bf16.msra.mxu0 %v2672
    %4360 = vmatmul.bf16.gmra.mxu0 %v4182
    %v4361 = vpop.f32.mrf.mxu0
    %v4362 = vadd.f32 %v4349, %v4361
    %v4363 = vpop.f32.mrf.mxu0
    %4364 = vdwg.mxu0
    %4365 = vmatpush.bf16.msra.mxu0 %v2665
    %4366 = vmatpush.bf16.msra.mxu0 %v2657
    %4367 = vmatpush.bf16.msra.mxu0 %v2649
    %4368 = vmatpush.bf16.msra.mxu0 %v2641
    %4369 = vmatpush.bf16.msra.mxu0 %v2633
    %4370 = vmatpush.bf16.msra.mxu0 %v2625
    %4371 = vmatpush.bf16.msra.mxu0 %v2617
    %4372 = vmatpush.bf16.msra.mxu0 %v2609
    %4373 = vmatmul.bf16.gmra.mxu0 %v4181
    %v4374 = vpop.f32.mrf.mxu0
    %v4375 = vadd.f32 0.0, %v4374
    %v4376 = vpop.f32.mrf.mxu0
    %4377 = vdwg.mxu0
    %4378 = vmatpush.bf16.msra.mxu0 %v2729
    %4379 = vmatpush.bf16.msra.mxu0 %v2721
    %4380 = vmatpush.bf16.msra.mxu0 %v2713
    %4381 = vmatpush.bf16.msra.mxu0 %v2705
    %4382 = vmatpush.bf16.msra.mxu0 %v2697
    %4383 = vmatpush.bf16.msra.mxu0 %v2689
    %4384 = vmatpush.bf16.msra.mxu0 %v2681
    %4385 = vmatpush.bf16.msra.mxu0 %v2673
    %4386 = vmatmul.bf16.gmra.mxu0 %v4182
    %v4387 = vpop.f32.mrf.mxu0
    %v4388 = vadd.f32 %v4375, %v4387
    %v4389 = vpop.f32.mrf.mxu0
    %4390 = vdwg.mxu0
    %v4391 = vadd.f32 %v4173, %v4206
    %v4392 = vadd.f32 %v4174, %v4232
    %v4393 = vadd.f32 %v4175, %v4258
    %v4394 = vadd.f32 %v4176, %v4284
    %v4395 = vadd.f32 %v4177, %v4310
    %v4396 = vadd.f32 %v4178, %v4336
    %v4397 = vadd.f32 %v4179, %v4362
    %v4398 = vadd.f32 %v4180, %v4388
    %v4399 = vmul.f32 %v4391, 0.5
    %v4400 = vmul.f32 %v4392, 0.5
    %v4401 = vtanh.pop %v4399
    %v4402 = vtanh.pop %v4400
    %v4403 = vadd.f32 %v4401, 1.0
    %v4404 = vadd.f32 %v4402, 1.0
    %v4405 = vmul.f32 %v4403, 0.5
    %v4406 = vmul.f32 %v4404, 0.5
    %v4407 = vmul.f32 %v4393, 0.5
    %v4408 = vmul.f32 %v4394, 0.5
    %v4409 = vtanh.pop %v4407
    %v4410 = vtanh.pop %v4408
    %v4411 = vadd.f32 %v4409, 1.0
    %v4412 = vadd.f32 %v4410, 1.0
    %v4413 = vmul.f32 %v4411, 0.5
    %v4414 = vmul.f32 %v4412, 0.5
    %v4415 = vtanh.pop %v4395
    %v4416 = vtanh.pop %v4396
    %v4417 = vmul.f32 %v4397, 0.5
    %v4418 = vmul.f32 %v4398, 0.5
    %v4419 = vtanh.pop %v4417
    %v4420 = vtanh.pop %v4418
    %v4421 = vadd.f32 %v4419, 1.0
    %v4422 = vadd.f32 %v4420, 1.0
    %v4423 = vmul.f32 %v4421, 0.5
    %v4424 = vmul.f32 %v4422, 0.5
    %v4425 = vmul.f32 %v4413, %v4164
    %v4426 = vmul.f32 %v4414, %v4165
    %v4427 = vmul.f32 %v4405, %v4415
    %v4428 = vmul.f32 %v4406, %v4416
    %v4429 = vadd.f32 %v4425, %v4427
    %v4430 = vadd.f32 %v4426, %v4428
    %v4431 = vtanh.pop %v4429
    %v4432 = vtanh.pop %v4430
    %v4433 = vmul.f32 %v4423, %v4431
    %v4434 = vmul.f32 %v4424, %v4432
    %s4435 = smul.u32 6, 8
    %s4436 = smul.addr %s4435, 8
    %s4437 = scalar_lea.vmem [#allocation2], %s4436
    %v4438 = vld [vmem:[%s4437] sm:$0xff]
    %v4439 = vld [vmem:[%s4437 + $0x8] sm:$0xff]
    %v4440 = vld [vmem:[%s4437 + $0x10] sm:$0xff]
    %v4441 = vld [vmem:[%s4437 + $0x18] sm:$0xff]
    %v4442 = vld [vmem:[%s4437 + $0x20] sm:$0xff]
    %v4443 = vld [vmem:[%s4437 + $0x28] sm:$0xff]
    %v4444 = vld [vmem:[%s4437 + $0x30] sm:$0xff]
    %v4445 = vld [vmem:[%s4437 + $0x38] sm:$0xff]
    %v4446 = vpack.c.bf16 %v4433, %v4433
    %v4447 = vpack.c.bf16 %v4434, %v4434
    %4448 = vmatpush.bf16.msra.mxu0 %v2658
    %4449 = vmatpush.bf16.msra.mxu0 %v2650
    %4450 = vmatpush.bf16.msra.mxu0 %v2642
    %4451 = vmatpush.bf16.msra.mxu0 %v2634
    %4452 = vmatpush.bf16.msra.mxu0 %v2626
    %4453 = vmatpush.bf16.msra.mxu0 %v2618
    %4454 = vmatpush.bf16.msra.mxu0 %v2610
    %4455 = vmatpush.bf16.msra.mxu0 %v2602
    %4456 = vmatmul.bf16.gmra.mxu0 %v4446
    %v4457 = vpop.f32.mrf.mxu0
    %v4458 = vadd.f32 0.0, %v4457
    %v4459 = vpop.f32.mrf.mxu0
    %4460 = vdwg.mxu0
    %4461 = vmatpush.bf16.msra.mxu0 %v2722
    %4462 = vmatpush.bf16.msra.mxu0 %v2714
    %4463 = vmatpush.bf16.msra.mxu0 %v2706
    %4464 = vmatpush.bf16.msra.mxu0 %v2698
    %4465 = vmatpush.bf16.msra.mxu0 %v2690
    %4466 = vmatpush.bf16.msra.mxu0 %v2682
    %4467 = vmatpush.bf16.msra.mxu0 %v2674
    %4468 = vmatpush.bf16.msra.mxu0 %v2666
    %4469 = vmatmul.bf16.gmra.mxu0 %v4447
    %v4470 = vpop.f32.mrf.mxu0
    %v4471 = vadd.f32 %v4458, %v4470
    %v4472 = vpop.f32.mrf.mxu0
    %4473 = vdwg.mxu0
    %4474 = vmatpush.bf16.msra.mxu0 %v2659
    %4475 = vmatpush.bf16.msra.mxu0 %v2651
    %4476 = vmatpush.bf16.msra.mxu0 %v2643
    %4477 = vmatpush.bf16.msra.mxu0 %v2635
    %4478 = vmatpush.bf16.msra.mxu0 %v2627
    %4479 = vmatpush.bf16.msra.mxu0 %v2619
    %4480 = vmatpush.bf16.msra.mxu0 %v2611
    %4481 = vmatpush.bf16.msra.mxu0 %v2603
    %4482 = vmatmul.bf16.gmra.mxu0 %v4446
    %v4483 = vpop.f32.mrf.mxu0
    %v4484 = vadd.f32 0.0, %v4483
    %v4485 = vpop.f32.mrf.mxu0
    %4486 = vdwg.mxu0
    %4487 = vmatpush.bf16.msra.mxu0 %v2723
    %4488 = vmatpush.bf16.msra.mxu0 %v2715
    %4489 = vmatpush.bf16.msra.mxu0 %v2707
    %4490 = vmatpush.bf16.msra.mxu0 %v2699
    %4491 = vmatpush.bf16.msra.mxu0 %v2691
    %4492 = vmatpush.bf16.msra.mxu0 %v2683
    %4493 = vmatpush.bf16.msra.mxu0 %v2675
    %4494 = vmatpush.bf16.msra.mxu0 %v2667
    %4495 = vmatmul.bf16.gmra.mxu0 %v4447
    %v4496 = vpop.f32.mrf.mxu0
    %v4497 = vadd.f32 %v4484, %v4496
    %v4498 = vpop.f32.mrf.mxu0
    %4499 = vdwg.mxu0
    %4500 = vmatpush.bf16.msra.mxu0 %v2660
    %4501 = vmatpush.bf16.msra.mxu0 %v2652
    %4502 = vmatpush.bf16.msra.mxu0 %v2644
    %4503 = vmatpush.bf16.msra.mxu0 %v2636
    %4504 = vmatpush.bf16.msra.mxu0 %v2628
    %4505 = vmatpush.bf16.msra.mxu0 %v2620
    %4506 = vmatpush.bf16.msra.mxu0 %v2612
    %4507 = vmatpush.bf16.msra.mxu0 %v2604
    %4508 = vmatmul.bf16.gmra.mxu0 %v4446
    %v4509 = vpop.f32.mrf.mxu0
    %v4510 = vadd.f32 0.0, %v4509
    %v4511 = vpop.f32.mrf.mxu0
    %4512 = vdwg.mxu0
    %4513 = vmatpush.bf16.msra.mxu0 %v2724
    %4514 = vmatpush.bf16.msra.mxu0 %v2716
    %4515 = vmatpush.bf16.msra.mxu0 %v2708
    %4516 = vmatpush.bf16.msra.mxu0 %v2700
    %4517 = vmatpush.bf16.msra.mxu0 %v2692
    %4518 = vmatpush.bf16.msra.mxu0 %v2684
    %4519 = vmatpush.bf16.msra.mxu0 %v2676
    %4520 = vmatpush.bf16.msra.mxu0 %v2668
    %4521 = vmatmul.bf16.gmra.mxu0 %v4447
    %v4522 = vpop.f32.mrf.mxu0
    %v4523 = vadd.f32 %v4510, %v4522
    %v4524 = vpop.f32.mrf.mxu0
    %4525 = vdwg.mxu0
    %4526 = vmatpush.bf16.msra.mxu0 %v2661
    %4527 = vmatpush.bf16.msra.mxu0 %v2653
    %4528 = vmatpush.bf16.msra.mxu0 %v2645
    %4529 = vmatpush.bf16.msra.mxu0 %v2637
    %4530 = vmatpush.bf16.msra.mxu0 %v2629
    %4531 = vmatpush.bf16.msra.mxu0 %v2621
    %4532 = vmatpush.bf16.msra.mxu0 %v2613
    %4533 = vmatpush.bf16.msra.mxu0 %v2605
    %4534 = vmatmul.bf16.gmra.mxu0 %v4446
    %v4535 = vpop.f32.mrf.mxu0
    %v4536 = vadd.f32 0.0, %v4535
    %v4537 = vpop.f32.mrf.mxu0
    %4538 = vdwg.mxu0
    %4539 = vmatpush.bf16.msra.mxu0 %v2725
    %4540 = vmatpush.bf16.msra.mxu0 %v2717
    %4541 = vmatpush.bf16.msra.mxu0 %v2709
    %4542 = vmatpush.bf16.msra.mxu0 %v2701
    %4543 = vmatpush.bf16.msra.mxu0 %v2693
    %4544 = vmatpush.bf16.msra.mxu0 %v2685
    %4545 = vmatpush.bf16.msra.mxu0 %v2677
    %4546 = vmatpush.bf16.msra.mxu0 %v2669
    %4547 = vmatmul.bf16.gmra.mxu0 %v4447
    %v4548 = vpop.f32.mrf.mxu0
    %v4549 = vadd.f32 %v4536, %v4548
    %v4550 = vpop.f32.mrf.mxu0
    %4551 = vdwg.mxu0
    %4552 = vmatpush.bf16.msra.mxu0 %v2662
    %4553 = vmatpush.bf16.msra.mxu0 %v2654
    %4554 = vmatpush.bf16.msra.mxu0 %v2646
    %4555 = vmatpush.bf16.msra.mxu0 %v2638
    %4556 = vmatpush.bf16.msra.mxu0 %v2630
    %4557 = vmatpush.bf16.msra.mxu0 %v2622
    %4558 = vmatpush.bf16.msra.mxu0 %v2614
    %4559 = vmatpush.bf16.msra.mxu0 %v2606
    %4560 = vmatmul.bf16.gmra.mxu0 %v4446
    %v4561 = vpop.f32.mrf.mxu0
    %v4562 = vadd.f32 0.0, %v4561
    %v4563 = vpop.f32.mrf.mxu0
    %4564 = vdwg.mxu0
    %4565 = vmatpush.bf16.msra.mxu0 %v2726
    %4566 = vmatpush.bf16.msra.mxu0 %v2718
    %4567 = vmatpush.bf16.msra.mxu0 %v2710
    %4568 = vmatpush.bf16.msra.mxu0 %v2702
    %4569 = vmatpush.bf16.msra.mxu0 %v2694
    %4570 = vmatpush.bf16.msra.mxu0 %v2686
    %4571 = vmatpush.bf16.msra.mxu0 %v2678
    %4572 = vmatpush.bf16.msra.mxu0 %v2670
    %4573 = vmatmul.bf16.gmra.mxu0 %v4447
    %v4574 = vpop.f32.mrf.mxu0
    %v4575 = vadd.f32 %v4562, %v4574
    %v4576 = vpop.f32.mrf.mxu0
    %4577 = vdwg.mxu0
    %4578 = vmatpush.bf16.msra.mxu0 %v2663
    %4579 = vmatpush.bf16.msra.mxu0 %v2655
    %4580 = vmatpush.bf16.msra.mxu0 %v2647
    %4581 = vmatpush.bf16.msra.mxu0 %v2639
    %4582 = vmatpush.bf16.msra.mxu0 %v2631
    %4583 = vmatpush.bf16.msra.mxu0 %v2623
    %4584 = vmatpush.bf16.msra.mxu0 %v2615
    %4585 = vmatpush.bf16.msra.mxu0 %v2607
    %4586 = vmatmul.bf16.gmra.mxu0 %v4446
    %v4587 = vpop.f32.mrf.mxu0
    %v4588 = vadd.f32 0.0, %v4587
    %v4589 = vpop.f32.mrf.mxu0
    %4590 = vdwg.mxu0
    %4591 = vmatpush.bf16.msra.mxu0 %v2727
    %4592 = vmatpush.bf16.msra.mxu0 %v2719
    %4593 = vmatpush.bf16.msra.mxu0 %v2711
    %4594 = vmatpush.bf16.msra.mxu0 %v2703
    %4595 = vmatpush.bf16.msra.mxu0 %v2695
    %4596 = vmatpush.bf16.msra.mxu0 %v2687
    %4597 = vmatpush.bf16.msra.mxu0 %v2679
    %4598 = vmatpush.bf16.msra.mxu0 %v2671
    %4599 = vmatmul.bf16.gmra.mxu0 %v4447
    %v4600 = vpop.f32.mrf.mxu0
    %v4601 = vadd.f32 %v4588, %v4600
    %v4602 = vpop.f32.mrf.mxu0
    %4603 = vdwg.mxu0
    %4604 = vmatpush.bf16.msra.mxu0 %v2664
    %4605 = vmatpush.bf16.msra.mxu0 %v2656
    %4606 = vmatpush.bf16.msra.mxu0 %v2648
    %4607 = vmatpush.bf16.msra.mxu0 %v2640
    %4608 = vmatpush.bf16.msra.mxu0 %v2632
    %4609 = vmatpush.bf16.msra.mxu0 %v2624
    %4610 = vmatpush.bf16.msra.mxu0 %v2616
    %4611 = vmatpush.bf16.msra.mxu0 %v2608
    %4612 = vmatmul.bf16.gmra.mxu0 %v4446
    %v4613 = vpop.f32.mrf.mxu0
    %v4614 = vadd.f32 0.0, %v4613
    %v4615 = vpop.f32.mrf.mxu0
    %4616 = vdwg.mxu0
    %4617 = vmatpush.bf16.msra.mxu0 %v2728
    %4618 = vmatpush.bf16.msra.mxu0 %v2720
    %4619 = vmatpush.bf16.msra.mxu0 %v2712
    %4620 = vmatpush.bf16.msra.mxu0 %v2704
    %4621 = vmatpush.bf16.msra.mxu0 %v2696
    %4622 = vmatpush.bf16.msra.mxu0 %v2688
    %4623 = vmatpush.bf16.msra.mxu0 %v2680
    %4624 = vmatpush.bf16.msra.mxu0 %v2672
    %4625 = vmatmul.bf16.gmra.mxu0 %v4447
    %v4626 = vpop.f32.mrf.mxu0
    %v4627 = vadd.f32 %v4614, %v4626
    %v4628 = vpop.f32.mrf.mxu0
    %4629 = vdwg.mxu0
    %4630 = vmatpush.bf16.msra.mxu0 %v2665
    %4631 = vmatpush.bf16.msra.mxu0 %v2657
    %4632 = vmatpush.bf16.msra.mxu0 %v2649
    %4633 = vmatpush.bf16.msra.mxu0 %v2641
    %4634 = vmatpush.bf16.msra.mxu0 %v2633
    %4635 = vmatpush.bf16.msra.mxu0 %v2625
    %4636 = vmatpush.bf16.msra.mxu0 %v2617
    %4637 = vmatpush.bf16.msra.mxu0 %v2609
    %4638 = vmatmul.bf16.gmra.mxu0 %v4446
    %v4639 = vpop.f32.mrf.mxu0
    %v4640 = vadd.f32 0.0, %v4639
    %v4641 = vpop.f32.mrf.mxu0
    %4642 = vdwg.mxu0
    %4643 = vmatpush.bf16.msra.mxu0 %v2729
    %4644 = vmatpush.bf16.msra.mxu0 %v2721
    %4645 = vmatpush.bf16.msra.mxu0 %v2713
    %4646 = vmatpush.bf16.msra.mxu0 %v2705
    %4647 = vmatpush.bf16.msra.mxu0 %v2697
    %4648 = vmatpush.bf16.msra.mxu0 %v2689
    %4649 = vmatpush.bf16.msra.mxu0 %v2681
    %4650 = vmatpush.bf16.msra.mxu0 %v2673
    %4651 = vmatmul.bf16.gmra.mxu0 %v4447
    %v4652 = vpop.f32.mrf.mxu0
    %v4653 = vadd.f32 %v4640, %v4652
    %v4654 = vpop.f32.mrf.mxu0
    %4655 = vdwg.mxu0
    %v4656 = vadd.f32 %v4438, %v4471
    %v4657 = vadd.f32 %v4439, %v4497
    %v4658 = vadd.f32 %v4440, %v4523
    %v4659 = vadd.f32 %v4441, %v4549
    %v4660 = vadd.f32 %v4442, %v4575
    %v4661 = vadd.f32 %v4443, %v4601
    %v4662 = vadd.f32 %v4444, %v4627
    %v4663 = vadd.f32 %v4445, %v4653
    %v4664 = vmul.f32 %v4656, 0.5
    %v4665 = vmul.f32 %v4657, 0.5
    %v4666 = vtanh.pop %v4664
    %v4667 = vtanh.pop %v4665
    %v4668 = vadd.f32 %v4666, 1.0
    %v4669 = vadd.f32 %v4667, 1.0
    %v4670 = vmul.f32 %v4668, 0.5
    %v4671 = vmul.f32 %v4669, 0.5
    %v4672 = vmul.f32 %v4658, 0.5
    %v4673 = vmul.f32 %v4659, 0.5
    %v4674 = vtanh.pop %v4672
    %v4675 = vtanh.pop %v4673
    %v4676 = vadd.f32 %v4674, 1.0
    %v4677 = vadd.f32 %v4675, 1.0
    %v4678 = vmul.f32 %v4676, 0.5
    %v4679 = vmul.f32 %v4677, 0.5
    %v4680 = vtanh.pop %v4660
    %v4681 = vtanh.pop %v4661
    %v4682 = vmul.f32 %v4662, 0.5
    %v4683 = vmul.f32 %v4663, 0.5
    %v4684 = vtanh.pop %v4682
    %v4685 = vtanh.pop %v4683
    %v4686 = vadd.f32 %v4684, 1.0
    %v4687 = vadd.f32 %v4685, 1.0
    %v4688 = vmul.f32 %v4686, 0.5
    %v4689 = vmul.f32 %v4687, 0.5
    %v4690 = vmul.f32 %v4678, %v4429
    %v4691 = vmul.f32 %v4679, %v4430
    %v4692 = vmul.f32 %v4670, %v4680
    %v4693 = vmul.f32 %v4671, %v4681
    %v4694 = vadd.f32 %v4690, %v4692
    %v4695 = vadd.f32 %v4691, %v4693
    %v4696 = vtanh.pop %v4694
    %v4697 = vtanh.pop %v4695
    %v4698 = vmul.f32 %v4688, %v4696
    %v4699 = vmul.f32 %v4689, %v4697
    %s4700 = smul.u32 7, 8
    %s4701 = smul.addr %s4700, 8
    %s4702 = scalar_lea.vmem [#allocation2], %s4701
    %v4703 = vld [vmem:[%s4702] sm:$0xff]
    %v4704 = vld [vmem:[%s4702 + $0x8] sm:$0xff]
    %v4705 = vld [vmem:[%s4702 + $0x10] sm:$0xff]
    %v4706 = vld [vmem:[%s4702 + $0x18] sm:$0xff]
    %v4707 = vld [vmem:[%s4702 + $0x20] sm:$0xff]
    %v4708 = vld [vmem:[%s4702 + $0x28] sm:$0xff]
    %v4709 = vld [vmem:[%s4702 + $0x30] sm:$0xff]
    %v4710 = vld [vmem:[%s4702 + $0x38] sm:$0xff]
    %v4711 = vpack.c.bf16 %v4698, %v4698
    %v4712 = vpack.c.bf16 %v4699, %v4699
    %4713 = vmatpush.bf16.msra.mxu0 %v2658
    %4714 = vmatpush.bf16.msra.mxu0 %v2650
    %4715 = vmatpush.bf16.msra.mxu0 %v2642
    %4716 = vmatpush.bf16.msra.mxu0 %v2634
    %4717 = vmatpush.bf16.msra.mxu0 %v2626
    %4718 = vmatpush.bf16.msra.mxu0 %v2618
    %4719 = vmatpush.bf16.msra.mxu0 %v2610
    %4720 = vmatpush.bf16.msra.mxu0 %v2602
    %4721 = vmatmul.bf16.gmra.mxu0 %v4711
    %v4722 = vpop.f32.mrf.mxu0
    %v4723 = vadd.f32 0.0, %v4722
    %v4724 = vpop.f32.mrf.mxu0
    %4725 = vdwg.mxu0
    %4726 = vmatpush.bf16.msra.mxu0 %v2722
    %4727 = vmatpush.bf16.msra.mxu0 %v2714
    %4728 = vmatpush.bf16.msra.mxu0 %v2706
    %4729 = vmatpush.bf16.msra.mxu0 %v2698
    %4730 = vmatpush.bf16.msra.mxu0 %v2690
    %4731 = vmatpush.bf16.msra.mxu0 %v2682
    %4732 = vmatpush.bf16.msra.mxu0 %v2674
    %4733 = vmatpush.bf16.msra.mxu0 %v2666
    %4734 = vmatmul.bf16.gmra.mxu0 %v4712
    %v4735 = vpop.f32.mrf.mxu0
    %v4736 = vadd.f32 %v4723, %v4735
    %v4737 = vpop.f32.mrf.mxu0
    %4738 = vdwg.mxu0
    %4739 = vmatpush.bf16.msra.mxu0 %v2659
    %4740 = vmatpush.bf16.msra.mxu0 %v2651
    %4741 = vmatpush.bf16.msra.mxu0 %v2643
    %4742 = vmatpush.bf16.msra.mxu0 %v2635
    %4743 = vmatpush.bf16.msra.mxu0 %v2627
    %4744 = vmatpush.bf16.msra.mxu0 %v2619
    %4745 = vmatpush.bf16.msra.mxu0 %v2611
    %4746 = vmatpush.bf16.msra.mxu0 %v2603
    %4747 = vmatmul.bf16.gmra.mxu0 %v4711
    %v4748 = vpop.f32.mrf.mxu0
    %v4749 = vadd.f32 0.0, %v4748
    %v4750 = vpop.f32.mrf.mxu0
    %4751 = vdwg.mxu0
    %4752 = vmatpush.bf16.msra.mxu0 %v2723
    %4753 = vmatpush.bf16.msra.mxu0 %v2715
    %4754 = vmatpush.bf16.msra.mxu0 %v2707
    %4755 = vmatpush.bf16.msra.mxu0 %v2699
    %4756 = vmatpush.bf16.msra.mxu0 %v2691
    %4757 = vmatpush.bf16.msra.mxu0 %v2683
    %4758 = vmatpush.bf16.msra.mxu0 %v2675
    %4759 = vmatpush.bf16.msra.mxu0 %v2667
    %4760 = vmatmul.bf16.gmra.mxu0 %v4712
    %v4761 = vpop.f32.mrf.mxu0
    %v4762 = vadd.f32 %v4749, %v4761
    %v4763 = vpop.f32.mrf.mxu0
    %4764 = vdwg.mxu0
    %4765 = vmatpush.bf16.msra.mxu0 %v2660
    %4766 = vmatpush.bf16.msra.mxu0 %v2652
    %4767 = vmatpush.bf16.msra.mxu0 %v2644
    %4768 = vmatpush.bf16.msra.mxu0 %v2636
    %4769 = vmatpush.bf16.msra.mxu0 %v2628
    %4770 = vmatpush.bf16.msra.mxu0 %v2620
    %4771 = vmatpush.bf16.msra.mxu0 %v2612
    %4772 = vmatpush.bf16.msra.mxu0 %v2604
    %4773 = vmatmul.bf16.gmra.mxu0 %v4711
    %v4774 = vpop.f32.mrf.mxu0
    %v4775 = vadd.f32 0.0, %v4774
    %v4776 = vpop.f32.mrf.mxu0
    %4777 = vdwg.mxu0
    %4778 = vmatpush.bf16.msra.mxu0 %v2724
    %4779 = vmatpush.bf16.msra.mxu0 %v2716
    %4780 = vmatpush.bf16.msra.mxu0 %v2708
    %4781 = vmatpush.bf16.msra.mxu0 %v2700
    %4782 = vmatpush.bf16.msra.mxu0 %v2692
    %4783 = vmatpush.bf16.msra.mxu0 %v2684
    %4784 = vmatpush.bf16.msra.mxu0 %v2676
    %4785 = vmatpush.bf16.msra.mxu0 %v2668
    %4786 = vmatmul.bf16.gmra.mxu0 %v4712
    %v4787 = vpop.f32.mrf.mxu0
    %v4788 = vadd.f32 %v4775, %v4787
    %v4789 = vpop.f32.mrf.mxu0
    %4790 = vdwg.mxu0
    %4791 = vmatpush.bf16.msra.mxu0 %v2661
    %4792 = vmatpush.bf16.msra.mxu0 %v2653
    %4793 = vmatpush.bf16.msra.mxu0 %v2645
    %4794 = vmatpush.bf16.msra.mxu0 %v2637
    %4795 = vmatpush.bf16.msra.mxu0 %v2629
    %4796 = vmatpush.bf16.msra.mxu0 %v2621
    %4797 = vmatpush.bf16.msra.mxu0 %v2613
    %4798 = vmatpush.bf16.msra.mxu0 %v2605
    %4799 = vmatmul.bf16.gmra.mxu0 %v4711
    %v4800 = vpop.f32.mrf.mxu0
    %v4801 = vadd.f32 0.0, %v4800
    %v4802 = vpop.f32.mrf.mxu0
    %4803 = vdwg.mxu0
    %4804 = vmatpush.bf16.msra.mxu0 %v2725
    %4805 = vmatpush.bf16.msra.mxu0 %v2717
    %4806 = vmatpush.bf16.msra.mxu0 %v2709
    %4807 = vmatpush.bf16.msra.mxu0 %v2701
    %4808 = vmatpush.bf16.msra.mxu0 %v2693
    %4809 = vmatpush.bf16.msra.mxu0 %v2685
    %4810 = vmatpush.bf16.msra.mxu0 %v2677
    %4811 = vmatpush.bf16.msra.mxu0 %v2669
    %4812 = vmatmul.bf16.gmra.mxu0 %v4712
    %v4813 = vpop.f32.mrf.mxu0
    %v4814 = vadd.f32 %v4801, %v4813
    %v4815 = vpop.f32.mrf.mxu0
    %4816 = vdwg.mxu0
    %4817 = vmatpush.bf16.msra.mxu0 %v2662
    %4818 = vmatpush.bf16.msra.mxu0 %v2654
    %4819 = vmatpush.bf16.msra.mxu0 %v2646
    %4820 = vmatpush.bf16.msra.mxu0 %v2638
    %4821 = vmatpush.bf16.msra.mxu0 %v2630
    %4822 = vmatpush.bf16.msra.mxu0 %v2622
    %4823 = vmatpush.bf16.msra.mxu0 %v2614
    %4824 = vmatpush.bf16.msra.mxu0 %v2606
    %4825 = vmatmul.bf16.gmra.mxu0 %v4711
    %v4826 = vpop.f32.mrf.mxu0
    %v4827 = vadd.f32 0.0, %v4826
    %v4828 = vpop.f32.mrf.mxu0
    %4829 = vdwg.mxu0
    %4830 = vmatpush.bf16.msra.mxu0 %v2726
    %4831 = vmatpush.bf16.msra.mxu0 %v2718
    %4832 = vmatpush.bf16.msra.mxu0 %v2710
    %4833 = vmatpush.bf16.msra.mxu0 %v2702
    %4834 = vmatpush.bf16.msra.mxu0 %v2694
    %4835 = vmatpush.bf16.msra.mxu0 %v2686
    %4836 = vmatpush.bf16.msra.mxu0 %v2678
    %4837 = vmatpush.bf16.msra.mxu0 %v2670
    %4838 = vmatmul.bf16.gmra.mxu0 %v4712
    %v4839 = vpop.f32.mrf.mxu0
    %v4840 = vadd.f32 %v4827, %v4839
    %v4841 = vpop.f32.mrf.mxu0
    %4842 = vdwg.mxu0
    %4843 = vmatpush.bf16.msra.mxu0 %v2663
    %4844 = vmatpush.bf16.msra.mxu0 %v2655
    %4845 = vmatpush.bf16.msra.mxu0 %v2647
    %4846 = vmatpush.bf16.msra.mxu0 %v2639
    %4847 = vmatpush.bf16.msra.mxu0 %v2631
    %4848 = vmatpush.bf16.msra.mxu0 %v2623
    %4849 = vmatpush.bf16.msra.mxu0 %v2615
    %4850 = vmatpush.bf16.msra.mxu0 %v2607
    %4851 = vmatmul.bf16.gmra.mxu0 %v4711
    %v4852 = vpop.f32.mrf.mxu0
    %v4853 = vadd.f32 0.0, %v4852
    %v4854 = vpop.f32.mrf.mxu0
    %4855 = vdwg.mxu0
    %4856 = vmatpush.bf16.msra.mxu0 %v2727
    %4857 = vmatpush.bf16.msra.mxu0 %v2719
    %4858 = vmatpush.bf16.msra.mxu0 %v2711
    %4859 = vmatpush.bf16.msra.mxu0 %v2703
    %4860 = vmatpush.bf16.msra.mxu0 %v2695
    %4861 = vmatpush.bf16.msra.mxu0 %v2687
    %4862 = vmatpush.bf16.msra.mxu0 %v2679
    %4863 = vmatpush.bf16.msra.mxu0 %v2671
    %4864 = vmatmul.bf16.gmra.mxu0 %v4712
    %v4865 = vpop.f32.mrf.mxu0
    %v4866 = vadd.f32 %v4853, %v4865
    %v4867 = vpop.f32.mrf.mxu0
    %4868 = vdwg.mxu0
    %4869 = vmatpush.bf16.msra.mxu0 %v2664
    %4870 = vmatpush.bf16.msra.mxu0 %v2656
    %4871 = vmatpush.bf16.msra.mxu0 %v2648
    %4872 = vmatpush.bf16.msra.mxu0 %v2640
    %4873 = vmatpush.bf16.msra.mxu0 %v2632
    %4874 = vmatpush.bf16.msra.mxu0 %v2624
    %4875 = vmatpush.bf16.msra.mxu0 %v2616
    %4876 = vmatpush.bf16.msra.mxu0 %v2608
    %4877 = vmatmul.bf16.gmra.mxu0 %v4711
    %v4878 = vpop.f32.mrf.mxu0
    %v4879 = vadd.f32 0.0, %v4878
    %v4880 = vpop.f32.mrf.mxu0
    %4881 = vdwg.mxu0
    %4882 = vmatpush.bf16.msra.mxu0 %v2728
    %4883 = vmatpush.bf16.msra.mxu0 %v2720
    %4884 = vmatpush.bf16.msra.mxu0 %v2712
    %4885 = vmatpush.bf16.msra.mxu0 %v2704
    %4886 = vmatpush.bf16.msra.mxu0 %v2696
    %4887 = vmatpush.bf16.msra.mxu0 %v2688
    %4888 = vmatpush.bf16.msra.mxu0 %v2680
    %4889 = vmatpush.bf16.msra.mxu0 %v2672
    %4890 = vmatmul.bf16.gmra.mxu0 %v4712
    %v4891 = vpop.f32.mrf.mxu0
    %v4892 = vadd.f32 %v4879, %v4891
    %v4893 = vpop.f32.mrf.mxu0
    %4894 = vdwg.mxu0
    %4895 = vmatpush.bf16.msra.mxu0 %v2665
    %4896 = vmatpush.bf16.msra.mxu0 %v2657
    %4897 = vmatpush.bf16.msra.mxu0 %v2649
    %4898 = vmatpush.bf16.msra.mxu0 %v2641
    %4899 = vmatpush.bf16.msra.mxu0 %v2633
    %4900 = vmatpush.bf16.msra.mxu0 %v2625
    %4901 = vmatpush.bf16.msra.mxu0 %v2617
    %4902 = vmatpush.bf16.msra.mxu0 %v2609
    %4903 = vmatmul.bf16.gmra.mxu0 %v4711
    %v4904 = vpop.f32.mrf.mxu0
    %v4905 = vadd.f32 0.0, %v4904
    %v4906 = vpop.f32.mrf.mxu0
    %4907 = vdwg.mxu0
    %4908 = vmatpush.bf16.msra.mxu0 %v2729
    %4909 = vmatpush.bf16.msra.mxu0 %v2721
    %4910 = vmatpush.bf16.msra.mxu0 %v2713
    %4911 = vmatpush.bf16.msra.mxu0 %v2705
    %4912 = vmatpush.bf16.msra.mxu0 %v2697
    %4913 = vmatpush.bf16.msra.mxu0 %v2689
    %4914 = vmatpush.bf16.msra.mxu0 %v2681
    %4915 = vmatpush.bf16.msra.mxu0 %v2673
    %4916 = vmatmul.bf16.gmra.mxu0 %v4712
    %v4917 = vpop.f32.mrf.mxu0
    %v4918 = vadd.f32 %v4905, %v4917
    %v4919 = vpop.f32.mrf.mxu0
    %4920 = vdwg.mxu0
    %v4921 = vadd.f32 %v4703, %v4736
    %v4922 = vadd.f32 %v4704, %v4762
    %v4923 = vadd.f32 %v4705, %v4788
    %v4924 = vadd.f32 %v4706, %v4814
    %v4925 = vadd.f32 %v4707, %v4840
    %v4926 = vadd.f32 %v4708, %v4866
    %v4927 = vadd.f32 %v4709, %v4892
    %v4928 = vadd.f32 %v4710, %v4918
    %v4929 = vmul.f32 %v4921, 0.5
    %v4930 = vmul.f32 %v4922, 0.5
    %v4931 = vtanh.pop %v4929
    %v4932 = vtanh.pop %v4930
    %v4933 = vadd.f32 %v4931, 1.0
    %v4934 = vadd.f32 %v4932, 1.0
    %v4935 = vmul.f32 %v4933, 0.5
    %v4936 = vmul.f32 %v4934, 0.5
    %v4937 = vmul.f32 %v4923, 0.5
    %v4938 = vmul.f32 %v4924, 0.5
    %v4939 = vtanh.pop %v4937
    %v4940 = vtanh.pop %v4938
    %v4941 = vadd.f32 %v4939, 1.0
    %v4942 = vadd.f32 %v4940, 1.0
    %v4943 = vmul.f32 %v4941, 0.5
    %v4944 = vmul.f32 %v4942, 0.5
    %v4945 = vtanh.pop %v4925
    %v4946 = vtanh.pop %v4926
    %v4947 = vmul.f32 %v4927, 0.5
    %v4948 = vmul.f32 %v4928, 0.5
    %v4949 = vtanh.pop %v4947
    %v4950 = vtanh.pop %v4948
    %v4951 = vadd.f32 %v4949, 1.0
    %v4952 = vadd.f32 %v4950, 1.0
    %v4953 = vmul.f32 %v4951, 0.5
    %v4954 = vmul.f32 %v4952, 0.5
    %v4955 = vmul.f32 %v4943, %v4694
    %v4956 = vmul.f32 %v4944, %v4695
    %v4957 = vmul.f32 %v4935, %v4945
    %v4958 = vmul.f32 %v4936, %v4946
    %v4959 = vadd.f32 %v4955, %v4957
    %v4960 = vadd.f32 %v4956, %v4958
    %v4961 = vtanh.pop %v4959
    %v4962 = vtanh.pop %v4960
    %v4963 = vmul.f32 %v4953, %v4961
    %v4964 = vmul.f32 %v4954, %v4962
    %4965 = vst [vmem:[#allocation3] sm:$0xff] %v4963
    %4966 = vst [vmem:[#allocation3 + $0x8] sm:$0xff] %v4964
    %4967 = vst [vmem:[#allocation4] sm:$0xff] %v4959
    %4968 = vst [vmem:[#allocation4 + $0x8] sm:$0xff] %v4960
    // Predicated region
    $region38: #{encoder_forward.1} parent=1 // pred_check
      %p4969 = pneg %p55
    $region39: #{encoder_forward.1} parent=1 // pred_check_branch
      %4971 = sbr.rel (%p4969) target = $region41
    $region40: #{encoder_forward.1} parent=1 // pred_region
      %v4972 = vmax.f32 %v4963, 0.0
      %v4973 = vmax.f32 %v4964, 0.0
      %v4974 = vand.u32 2147483647, %v4963
      %v4975 = vand.u32 2147483647, %v4964
      %v4976 = vsub.f32 0.0, %v4974
      %v4977 = vsub.f32 0.0, %v4975
      %v4978 = vmul.f32 %v4976, 1.442695
      %v4979 = vpow.pop %v4978
      %v4980 = vmul.f32 %v4977, 1.442695
      %v4981 = vpow.pop %v4980
      %v4982 = vadd.f32 %v4979, 1.0
      %v4983 = vadd.f32 %v4981, 1.0
      %v4984 = vlog2.pop %v4982
      %v4985 = vmul.f32 %v4984, 0.6931472
      %v4986 = vlog2.pop %v4983
      %v4987 = vmul.f32 %v4986, 0.6931472
      %v4988 = vadd.f32 %v4972, %v4985
      %v4989 = vadd.f32 %v4973, %v4987
      %v4990 = vpack.c.bf16 %v4988, %v4988
      %v4991 = vpack.c.bf16 %v4989, %v4989
      %v4992 = vld [vmem:[%s4] sm:$0xff]
      %v4993 = vld [vmem:[%s4 + $0x8] sm:$0xff]
      %v4994 = vld [vmem:[%s4 + $0x10] sm:$0xff]
      %v4995 = vld [vmem:[%s4 + $0x18] sm:$0xff]
      %v4996 = vld [vmem:[%s4 + $0x20] sm:$0xff]
      %v4997 = vld [vmem:[%s4 + $0x28] sm:$0xff]
      %v4998 = vld [vmem:[%s4 + $0x30] sm:$0xff]
      %v4999 = vld [vmem:[%s4 + $0x38] sm:$0xff]
      %v5000 = vld [vmem:[%s4 + $0x40] sm:$0xff]
      %v5001 = vld [vmem:[%s4 + $0x48] sm:$0xff]
      %v5002 = vld [vmem:[%s4 + $0x50] sm:$0xff]
      %v5003 = vld [vmem:[%s4 + $0x58] sm:$0xff]
      %v5004 = vld [vmem:[%s4 + $0x60] sm:$0xff]
      %v5005 = vld [vmem:[%s4 + $0x68] sm:$0xff]
      %v5006 = vld [vmem:[%s4 + $0x70] sm:$0xff]
      %v5007 = vld [vmem:[%s4 + $0x78] sm:$0xff]
      %v5008 = vld [vmem:[%s4 + $0x80] sm:$0xff]
      %v5009 = vld [vmem:[%s4 + $0x88] sm:$0xff]
      %v5010 = vld [vmem:[%s4 + $0x90] sm:$0xff]
      %v5011 = vld [vmem:[%s4 + $0x98] sm:$0xff]
      %v5012 = vld [vmem:[%s4 + $0xa0] sm:$0xff]
      %v5013 = vld [vmem:[%s4 + $0xa8] sm:$0xff]
      %v5014 = vld [vmem:[%s4 + $0xb0] sm:$0xff]
      %v5015 = vld [vmem:[%s4 + $0xb8] sm:$0xff]
      %v5016 = vld [vmem:[%s4 + $0xc0] sm:$0xff]
      %v5017 = vld [vmem:[%s4 + $0xc8] sm:$0xff]
      %v5018 = vld [vmem:[%s4 + $0xd0] sm:$0xff]
      %v5019 = vld [vmem:[%s4 + $0xd8] sm:$0xff]
      %v5020 = vld [vmem:[%s4 + $0xe0] sm:$0xff]
      %v5021 = vld [vmem:[%s4 + $0xe8] sm:$0xff]
      %v5022 = vld [vmem:[%s4 + $0xf0] sm:$0xff]
      %v5023 = vld [vmem:[%s4 + $0xf8] sm:$0xff]
      %v5024 = vld [vmem:[%s5] sm:$0x3]
      %v5026 = vperm.slane %v5024, 0
      %v5027 = vperm.slane %v5024, 1
      %v5062 = vunpack.c.l.b16 %v4992
      %v5063 = vunpack.c.h.b16 %v4992
      %v5064 = vunpack.c.l.b16 %v4993
      %v5065 = vunpack.c.h.b16 %v4993
      %v5066 = vunpack.c.l.b16 %v4994
      %v5067 = vunpack.c.h.b16 %v4994
      %v5068 = vunpack.c.l.b16 %v4995
      %v5069 = vunpack.c.h.b16 %v4995
      %v5070 = vunpack.c.l.b16 %v4996
      %v5071 = vunpack.c.h.b16 %v4996
      %v5072 = vunpack.c.l.b16 %v4997
      %v5073 = vunpack.c.h.b16 %v4997
      %v5074 = vunpack.c.l.b16 %v4998
      %v5075 = vunpack.c.h.b16 %v4998
      %v5076 = vunpack.c.l.b16 %v4999
      %v5077 = vunpack.c.h.b16 %v4999
      %v5078 = vunpack.c.l.b16 %v5000
      %v5079 = vunpack.c.h.b16 %v5000
      %v5080 = vunpack.c.l.b16 %v5001
      %v5081 = vunpack.c.h.b16 %v5001
      %v5082 = vunpack.c.l.b16 %v5002
      %v5083 = vunpack.c.h.b16 %v5002
      %v5084 = vunpack.c.l.b16 %v5003
      %v5085 = vunpack.c.h.b16 %v5003
      %v5086 = vunpack.c.l.b16 %v5004
      %v5087 = vunpack.c.h.b16 %v5004
      %v5088 = vunpack.c.l.b16 %v5005
      %v5089 = vunpack.c.h.b16 %v5005
      %v5090 = vunpack.c.l.b16 %v5006
      %v5091 = vunpack.c.h.b16 %v5006
      %v5092 = vunpack.c.l.b16 %v5007
      %v5093 = vunpack.c.h.b16 %v5007
      %v5094 = vunpack.c.l.b16 %v5008
      %v5095 = vunpack.c.h.b16 %v5008
      %v5096 = vunpack.c.l.b16 %v5009
      %v5097 = vunpack.c.h.b16 %v5009
      %v5098 = vunpack.c.l.b16 %v5010
      %v5099 = vunpack.c.h.b16 %v5010
      %v5100 = vunpack.c.l.b16 %v5011
      %v5101 = vunpack.c.h.b16 %v5011
      %v5102 = vunpack.c.l.b16 %v5012
      %v5103 = vunpack.c.h.b16 %v5012
      %v5104 = vunpack.c.l.b16 %v5013
      %v5105 = vunpack.c.h.b16 %v5013
      %v5106 = vunpack.c.l.b16 %v5014
      %v5107 = vunpack.c.h.b16 %v5014
      %v5108 = vunpack.c.l.b16 %v5015
      %v5109 = vunpack.c.h.b16 %v5015
      %v5110 = vunpack.c.l.b16 %v5016
      %v5111 = vunpack.c.h.b16 %v5016
      %v5112 = vunpack.c.l.b16 %v5017
      %v5113 = vunpack.c.h.b16 %v5017
      %v5114 = vunpack.c.l.b16 %v5018
      %v5115 = vunpack.c.h.b16 %v5018
      %v5116 = vunpack.c.l.b16 %v5019
      %v5117 = vunpack.c.h.b16 %v5019
      %v5118 = vunpack.c.l.b16 %v5020
      %v5119 = vunpack.c.h.b16 %v5020
      %v5120 = vunpack.c.l.b16 %v5021
      %v5121 = vunpack.c.h.b16 %v5021
      %v5122 = vunpack.c.l.b16 %v5022
      %v5123 = vunpack.c.h.b16 %v5022
      %v5124 = vunpack.c.l.b16 %v5023
      %v5125 = vunpack.c.h.b16 %v5023
      %v5126 = vpack.c.b16 %v5064, %v5062
      %v5127 = vpack.c.b16 %v5065, %v5063
      %v5128 = vpack.c.b16 %v5068, %v5066
      %v5129 = vpack.c.b16 %v5069, %v5067
      %v5130 = vpack.c.b16 %v5072, %v5070
      %v5131 = vpack.c.b16 %v5073, %v5071
      %v5132 = vpack.c.b16 %v5076, %v5074
      %v5133 = vpack.c.b16 %v5077, %v5075
      %v5134 = vpack.c.b16 %v5080, %v5078
      %v5135 = vpack.c.b16 %v5081, %v5079
      %v5136 = vpack.c.b16 %v5084, %v5082
      %v5137 = vpack.c.b16 %v5085, %v5083
      %v5138 = vpack.c.b16 %v5088, %v5086
      %v5139 = vpack.c.b16 %v5089, %v5087
      %v5140 = vpack.c.b16 %v5092, %v5090
      %v5141 = vpack.c.b16 %v5093, %v5091
      %v5142 = vpack.c.b16 %v5096, %v5094
      %v5143 = vpack.c.b16 %v5097, %v5095
      %v5144 = vpack.c.b16 %v5100, %v5098
      %v5145 = vpack.c.b16 %v5101, %v5099
      %v5146 = vpack.c.b16 %v5104, %v5102
      %v5147 = vpack.c.b16 %v5105, %v5103
      %v5148 = vpack.c.b16 %v5108, %v5106
      %v5149 = vpack.c.b16 %v5109, %v5107
      %v5150 = vpack.c.b16 %v5112, %v5110
      %v5151 = vpack.c.b16 %v5113, %v5111
      %v5152 = vpack.c.b16 %v5116, %v5114
      %v5153 = vpack.c.b16 %v5117, %v5115
      %v5154 = vpack.c.b16 %v5120, %v5118
      %v5155 = vpack.c.b16 %v5121, %v5119
      %v5156 = vpack.c.b16 %v5124, %v5122
      %v5157 = vpack.c.b16 %v5125, %v5123
      %5190 = vmatpush.bf16.msra.mxu0 %v5140
      %5191 = vmatpush.bf16.msra.mxu0 %v5138
      %5192 = vmatpush.bf16.msra.mxu0 %v5136
      %5193 = vmatpush.bf16.msra.mxu0 %v5134
      %5194 = vmatpush.bf16.msra.mxu0 %v5132
      %5195 = vmatpush.bf16.msra.mxu0 %v5130
      %5196 = vmatpush.bf16.msra.mxu0 %v5128
      %5197 = vmatpush.bf16.msra.mxu0 %v5126
      %5198 = vmatmul.bf16.gmra.mxu0 %v4990
      %v5199 = vpop.f32.mrf.mxu0
      %v5200 = vadd.f32 %v5026, %v5199
      %v5201 = vpop.f32.mrf.mxu0
      %5202 = vdwg.mxu0
      %5203 = vmatpush.bf16.msra.mxu0 %v5156
      %5204 = vmatpush.bf16.msra.mxu0 %v5154
      %5205 = vmatpush.bf16.msra.mxu0 %v5152
      %5206 = vmatpush.bf16.msra.mxu0 %v5150
      %5207 = vmatpush.bf16.msra.mxu0 %v5148
      %5208 = vmatpush.bf16.msra.mxu0 %v5146
      %5209 = vmatpush.bf16.msra.mxu0 %v5144
      %5210 = vmatpush.bf16.msra.mxu0 %v5142
      %5211 = vmatmul.bf16.gmra.mxu0 %v4991
      %v5212 = vpop.f32.mrf.mxu0
      %v5213 = vadd.f32 %v5200, %v5212
      %v5214 = vpop.f32.mrf.mxu0
      %5215 = vdwg.mxu0
      %5216 = vmatpush.bf16.msra.mxu0 %v5141
      %5217 = vmatpush.bf16.msra.mxu0 %v5139
      %5218 = vmatpush.bf16.msra.mxu0 %v5137
      %5219 = vmatpush.bf16.msra.mxu0 %v5135
      %5220 = vmatpush.bf16.msra.mxu0 %v5133
      %5221 = vmatpush.bf16.msra.mxu0 %v5131
      %5222 = vmatpush.bf16.msra.mxu0 %v5129
      %5223 = vmatpush.bf16.msra.mxu0 %v5127
      %5224 = vmatmul.bf16.gmra.mxu0 %v4990
      %v5225 = vpop.f32.mrf.mxu0
      %v5226 = vadd.f32 %v5027, %v5225
      %v5227 = vpop.f32.mrf.mxu0
      %5228 = vdwg.mxu0
      %5229 = vmatpush.bf16.msra.mxu0 %v5157
      %5230 = vmatpush.bf16.msra.mxu0 %v5155
      %5231 = vmatpush.bf16.msra.mxu0 %v5153
      %5232 = vmatpush.bf16.msra.mxu0 %v5151
      %5233 = vmatpush.bf16.msra.mxu0 %v5149
      %5234 = vmatpush.bf16.msra.mxu0 %v5147
      %5235 = vmatpush.bf16.msra.mxu0 %v5145
      %5236 = vmatpush.bf16.msra.mxu0 %v5143
      %5237 = vmatmul.bf16.gmra.mxu0 %v4991
      %v5238 = vpop.f32.mrf.mxu0
      %v5239 = vadd.f32 %v5226, %v5238
      %v5240 = vpop.f32.mrf.mxu0
      %5241 = vdwg.mxu0
      %5242 = vst [vmem:[%s6] sm:$0xff] %v5213
      %vm5243 = vcmask 424960
      %5244 = vst.msk [vmem:[%s6 + $0x8] sm:$0xff] %vm5243, %v5239
    $region41: #{encoder_forward.1} parent=1 // pred_fallthru
      _
    // Predicated region
    $region42: #{encoder_forward.1} parent=1 // pred_check
      _
    $region43: #{encoder_forward.1} parent=1 // pred_check_branch
      %5246 = sbr.rel (0) target = $region45
    $region44: #{encoder_forward.1} parent=1 // pred_region
      _
    $region45: #{encoder_forward.1} parent=1 // pred_fallthru
      _
    // Predicated region
    $region46: #{encoder_forward.1} parent=1 // pred_check
      _
    $region47: #{encoder_forward.1} parent=1 // pred_check_branch
      %5248 = sbr.rel (0) target = $region49
    $region48: #{encoder_forward.1} parent=1 // pred_region
      _
    $region49: #{encoder_forward.1} parent=1 // pred_fallthru
      _
    %5249 = vsyncpa [#allocation6], 1
    %5250 = vsyncpa [#allocation8], 1

</llo_original>
